<compile_context>
chip_gen: v5e
topology: v5e:2x2
jax: 0.10.0
libtpu: 0.0.40
codegen_flags: <defaults>
</compile_context>

<pallas_src>
import functools
import math

import numpy as np
import jax
import jax.numpy as jnp
from jax.experimental import pallas as pl
from jax.experimental.pallas import tpu as pltpu


# ----------------------------------------------------------------------------
# Small helper specs
# ----------------------------------------------------------------------------

def _full_spec(shape):
    return pl.BlockSpec(shape, lambda: (0,) * len(shape))


# ----------------------------------------------------------------------------
# Fused encoder kernel: grid = (batch, layers)
# ----------------------------------------------------------------------------

def _encoder_kernel(x0_ref, pos_ref, mask_ref,
                    ln1_g_ref, ln1_b_ref, qkv_w_ref, qkv_b_ref,
                    o_w_ref, o_b_ref, ln2_g_ref, ln2_b_ref,
                    fc1_w_ref, fc1_b_ref, fc2_w_ref, fc2_b_ref,
                    fln_g_ref, fln_b_ref, head_w_ref,
                    out_ref, cls_ref, x_scr,
                    *, num_heads, eps, with_head, out_norm):
    l = pl.program_id(1)
    n_layers = pl.num_programs(1)
    S, D = x_scr.shape
    Dh = D // num_heads
    scale = Dh ** -0.5

    @pl.when(l == 0)
    def _():
        # Positional-embedding add fused into the first layer step.
        x_scr[...] = x0_ref[0].astype(jnp.float32) + pos_ref[...].astype(jnp.float32)

    def layernorm(x, g, b):
        mu = jnp.mean(x, axis=-1, keepdims=True)
        var = jnp.mean(jnp.square(x - mu), axis=-1, keepdims=True)
        return (x - mu) * jax.lax.rsqrt(var + eps) * g + b

    def matmul_t(x_f32, w_bf16, bias):
        # y = x @ W^T + b  (nn.Linear semantics); bf16 MXU inputs, f32 accumulate.
        y = jax.lax.dot_general(
            x_f32.astype(jnp.bfloat16), w_bf16,
            dimension_numbers=(((1,), (1,)), ((), ())),
            preferred_element_type=jnp.float32)
        return y + bias

    x = x_scr[...]                                      # (S, D) f32, VMEM resident
    mask = mask_ref[0].astype(jnp.float32)              # (1, S) additive key mask

    # ---- self-attention sub-block (pre-LN) ----
    h = layernorm(x, ln1_g_ref[0], ln1_b_ref[0])
    qkv = matmul_t(h, qkv_w_ref[0], qkv_b_ref[0])       # (S, 3D), fused QKV matmul
    q = qkv[:, 0 * D:1 * D] * scale
    k = qkv[:, 1 * D:2 * D]
    v = qkv[:, 2 * D:3 * D]

    head_outs = []
    for hh in range(num_heads):                         # unrolled, all in VMEM
        sl = slice(hh * Dh, (hh + 1) * Dh)
        qh = q[:, sl].astype(jnp.bfloat16)              # (S, Dh)
        kh = k[:, sl].astype(jnp.bfloat16)
        vh = v[:, sl].astype(jnp.bfloat16)
        s = jax.lax.dot_general(                        # (S, S) scores, f32
            qh, kh, dimension_numbers=(((1,), (1,)), ((), ())),
            preferred_element_type=jnp.float32)
        s = s + mask                                    # broadcast over queries
        s = s - jnp.max(s, axis=-1, keepdims=True)
        p = jnp.exp(s)
        p = p * pl.reciprocal(jnp.sum(p, axis=-1, keepdims=True), approx=True)
        oh = jax.lax.dot_general(                       # (S, Dh)
            p.astype(jnp.bfloat16), vh,
            dimension_numbers=(((1,), (0,)), ((), ())),
            preferred_element_type=jnp.float32)
        head_outs.append(oh)
    attn = jnp.concatenate(head_outs, axis=-1)          # (S, D), merge heads in VMEM
    attn = matmul_t(attn, o_w_ref[0], o_b_ref[0])
    x = x + attn                                        # residual

    # ---- FFN sub-block (pre-LN) ----
    h = layernorm(x, ln2_g_ref[0], ln2_b_ref[0])
    h = matmul_t(h, fc1_w_ref[0], fc1_b_ref[0])         # (S, Fd)
    h = 0.5 * h * (1.0 + jax.lax.erf(h * 0.7071067811865476))   # exact GELU
    h = matmul_t(h, fc2_w_ref[0], fc2_b_ref[0])         # (S, D)
    x = x + h                                           # residual

    x_scr[...] = x

    @pl.when(l == n_layers - 1)
    def _():
        y = layernorm(x, fln_g_ref[...], fln_b_ref[...])
        out_ref[0] = y.astype(out_ref.dtype)
        # Fused epilogue: CLS token -> (optional) head matmul -> (optional) L2 norm.
        cls = y[0:1, :]                                  # (1, D)
        if with_head:
            cls = jax.lax.dot_general(
                cls.astype(jnp.bfloat16), head_w_ref[...],
                dimension_numbers=(((1,), (1,)), ((), ())),
                preferred_element_type=jnp.float32)
        if out_norm:
            ssq = jnp.sum(cls * cls, axis=-1, keepdims=True)
            cls = cls * jax.lax.rsqrt(jnp.maximum(ssq, 1e-24))   # F.normalize
        cls_ref[0] = cls.astype(cls_ref.dtype)


def pallas_encoder(x0, pos, mask_add, bp, head_w, num_heads, *,
                   with_head, out_norm, eps=1e-5):
    """x0: (B, S, D) f32; pos: (S, D); mask_add: (B, 1, S) additive key mask.

    Returns (encoder_out (B,S,D) f32, cls_embed (B,D) f32 with fused head/norm).
    """
    B, S, D = x0.shape
    L = bp["qkv_w"].shape[0]
    Fd = bp["fc1_w"].shape[1]

    def wspec(shape):
        nd = len(shape)
        return pl.BlockSpec((1,) + tuple(shape[1:]),
                            lambda b, l, _nd=nd: (l,) + (0,) * (_nd - 1))

    in_specs = [
        pl.BlockSpec((1, S, D), lambda b, l: (b, 0, 0)),       # x0
        pl.BlockSpec((S, D), lambda b, l: (0, 0)),             # positional embed
        pl.BlockSpec((1, 1, S), lambda b, l: (b, 0, 0)),       # additive mask
        wspec((L, 1, D)), wspec((L, 1, D)),                    # ln1 gamma, beta
        wspec((L, 3 * D, D)), wspec((L, 1, 3 * D)),            # fused qkv W, b
        wspec((L, D, D)), wspec((L, 1, D)),                    # out-proj W, b
        wspec((L, 1, D)), wspec((L, 1, D)),                    # ln2 gamma, beta
        wspec((L, Fd, D)), wspec((L, 1, Fd)),                  # fc1 W, b
        wspec((L, D, Fd)), wspec((L, 1, D)),                   # fc2 W, b
        pl.BlockSpec((1, D), lambda b, l: (0, 0)),             # final LN gamma
        pl.BlockSpec((1, D), lambda b, l: (0, 0)),             # final LN beta
        pl.BlockSpec((D, D), lambda b, l: (0, 0)),             # head W (bias-free)
    ]
    grid_spec = pltpu.PrefetchScalarGridSpec(
        num_scalar_prefetch=0,
        grid=(B, L),
        in_specs=in_specs,
        out_specs=[pl.BlockSpec((1, S, D), lambda b, l: (b, 0, 0)),
                   pl.BlockSpec((1, 1, D), lambda b, l: (b, 0, 0))],
        scratch_shapes=[pltpu.VMEM((S, D), jnp.float32)],
    )
    seq_out, cls_out = pl.pallas_call(
        functools.partial(_encoder_kernel, num_heads=num_heads, eps=eps,
                          with_head=with_head, out_norm=out_norm),
        out_shape=(jax.ShapeDtypeStruct((B, S, D), jnp.float32),
                   jax.ShapeDtypeStruct((B, 1, D), jnp.float32)),
        grid_spec=grid_spec,
        compiler_params=pltpu.CompilerParams(
            dimension_semantics=("parallel", "arbitrary")),
    )(x0, pos, mask_add,
      bp["ln1_g"], bp["ln1_b"], bp["qkv_w"], bp["qkv_b"],
      bp["o_w"], bp["o_b"], bp["ln2_g"], bp["ln2_b"],
      bp["fc1_w"], bp["fc1_b"], bp["fc2_w"], bp["fc2_b"],
      bp["final_ln_g"], bp["final_ln_b"], head_w)
    return seq_out, cls_out[:, 0, :]


# ----------------------------------------------------------------------------
# Small standalone kernels: patch-embed matmul, head + L2-normalize (non-global)
# ----------------------------------------------------------------------------

def _linear_kernel(x_ref, w_ref, b_ref, o_ref):
    y = jax.lax.dot_general(
        x_ref[...].astype(jnp.bfloat16), w_ref[...],
        dimension_numbers=(((1,), (1,)), ((), ())),
        preferred_element_type=jnp.float32)
    o_ref[...] = (y + b_ref[...]).astype(o_ref.dtype)


def pallas_linear(x2, w_bf16, b_f32):
    M, K = x2.shape
    N = w_bf16.shape[0]
    return pl.pallas_call(
        _linear_kernel,
        out_shape=jax.ShapeDtypeStruct((M, N), jnp.float32),
        in_specs=[_full_spec((M, K)), _full_spec((N, K)), _full_spec((1, N))],
        out_specs=_full_spec((M, N)),
    )(x2, w_bf16, b_f32)


def _head_norm_kernel(x_ref, w_ref, o_ref, *, with_head, out_norm):
    x = x_ref[...].astype(jnp.float32)
    if with_head:
        x = jax.lax.dot_general(
            x.astype(jnp.bfloat16), w_ref[...],
            dimension_numbers=(((1,), (1,)), ((), ())),
            preferred_element_type=jnp.float32)
    if out_norm:
        ssq = jnp.sum(x * x, axis=-1, keepdims=True)
        x = x * jax.lax.rsqrt(jnp.maximum(ssq, 1e-24))   # F.normalize
    o_ref[...] = x.astype(o_ref.dtype)


def pallas_head_norm(x2, w_bf16, with_head, out_norm):
    M, D = x2.shape
    N = w_bf16.shape[0] if with_head else D
    return pl.pallas_call(
        functools.partial(_head_norm_kernel, with_head=with_head,
                          out_norm=out_norm),
        out_shape=jax.ShapeDtypeStruct((M, N), jnp.float32),
        in_specs=[_full_spec((M, D)), _full_spec(tuple(w_bf16.shape))],
        out_specs=_full_spec((M, N)),
    )(x2, w_bf16)


# ----------------------------------------------------------------------------
# Model definition (BEiT3-style multiway transformer) on top of the kernels
# ----------------------------------------------------------------------------

class Args:
    encoder_embed_dim = 128          # lane-dense model dim (multiple of 128)
    encoder_attention_heads = 4
    encoder_ffn_embed_dim = 256
    encoder_layers = 2
    img_size = 16
    patch_size = 8
    in_chans = 3
    vocab_size = 64
    max_source_positions = 16


def init_params(args, key):
    D = args.encoder_embed_dim
    Fd = args.encoder_ffn_embed_dim
    L = args.encoder_layers
    C, P = args.in_chans, args.patch_size
    n_patches = (args.img_size // P) ** 2
    kit = iter(jax.random.split(key, 256))

    def tn(shape, std=0.02):
        # approximation of trunc_normal_(std=0.02, a=-std, b=std)
        return jnp.clip(jax.random.normal(next(kit), shape, jnp.float32) * std,
                        -std, std)

    def branch():
        # per-branch (multiway) weights, stacked over layers; matmul weights bf16
        return {
            "ln1_g": jnp.ones((L, 1, D), jnp.float32),
            "ln1_b": jnp.zeros((L, 1, D), jnp.float32),
            "qkv_w": tn((L, 3 * D, D)).astype(jnp.bfloat16),   # rows: [q; k; v]
            "qkv_b": jnp.zeros((L, 1, 3 * D), jnp.float32),
            "o_w": tn((L, D, D)).astype(jnp.bfloat16),
            "o_b": jnp.zeros((L, 1, D), jnp.float32),
            "ln2_g": jnp.ones((L, 1, D), jnp.float32),
            "ln2_b": jnp.zeros((L, 1, D), jnp.float32),
            "fc1_w": tn((L, Fd, D)).astype(jnp.bfloat16),
            "fc1_b": jnp.zeros((L, 1, Fd), jnp.float32),
            "fc2_w": tn((L, D, Fd)).astype(jnp.bfloat16),
            "fc2_b": jnp.zeros((L, 1, D), jnp.float32),
            "final_ln_g": jnp.ones((1, D), jnp.float32),
            "final_ln_b": jnp.zeros((1, D), jnp.float32),
        }

    return {
        "patch_w": tn((D, C * P * P)).astype(jnp.bfloat16),  # conv as matmul
        "patch_b": jnp.zeros((1, D), jnp.float32),
        "cls_token": tn((1, 1, D)),
        "token_embed": tn((args.vocab_size, D)),
        "pos_embed_A": tn((n_patches + 1, D)),
        "pos_embed_B": tn((args.max_source_positions, D)),
        "vision_head_w": tn((D, D)).astype(jnp.bfloat16),    # bias=False in MUSK
        "language_head_w": tn((D, D)).astype(jnp.bfloat16),  # bias=False in MUSK
        "logit_scale": jnp.array(np.log(1 / 0.07), jnp.float32),
        "A": branch(),   # vision branch
        "B": branch(),   # text branch
    }


def vision_encode(params, args, image, with_head, out_norm):
    # image: NCHW. stride==kernel Conv2d patch embedding == patch-extract + matmul.
    B, C, H, W = image.shape
    P, D = args.patch_size, args.encoder_embed_dim
    nH, nW = H // P, W // P
    patches = image.reshape(B, C, nH, P, nW, P).transpose(0, 2, 4, 1, 3, 5)
    patches = patches.reshape(B * nH * nW, C * P * P)
    x = pallas_linear(patches, params["patch_w"], params["patch_b"])
    x = x.reshape(B, nH * nW, D)
    cls = jnp.broadcast_to(params["cls_token"], (B, 1, D)).astype(jnp.float32)
    x = jnp.concatenate([cls, x], axis=1)
    S = x.shape[1]
    mask_add = jnp.zeros((B, 1, S), jnp.float32)            # no padding for vision
    return pallas_encoder(x, params["pos_embed_A"][:S], mask_add, params["A"],
                          params["vision_head_w"], args.encoder_attention_heads,
                          with_head=with_head, out_norm=out_norm)


def text_encode(params, args, tokens, padding_mask, with_head, out_norm):
    # TODO(synk): torchscale PositionalEmbedding padding-idx (+2) offset omitted.
    B, S = tokens.shape
    x = jnp.take(params["token_embed"], tokens, axis=0)     # embedding lookup (glue)
    if padding_mask is None:
        mask_add = jnp.zeros((B, 1, S), jnp.float32)
    else:
        mask_add = jnp.where(padding_mask.astype(bool), -1e9, 0.0)
        mask_add = mask_add.astype(jnp.float32)[:, None, :]
    return pallas_encoder(x, params["pos_embed_B"][:S], mask_add, params["B"],
                          params["language_head_w"], args.encoder_attention_heads,
                          with_head=with_head, out_norm=out_norm)


def _apply_head_norm(x, w, with_head, out_norm):
    if not (with_head or out_norm):
        return x
    shp = x.shape
    y = pallas_head_norm(x.reshape(-1, shp[-1]), w, with_head, out_norm)
    return y.reshape(shp[:-1] + (y.shape[-1],))


def musk_forward(params, args, image=None, text_description=None,
                 padding_mask=None, return_global=True, with_head=True,
                 out_norm=True, ms_aug=False):
    # TODO(synk): ms_aug=True (MultiScaleForward) path is not implemented.
    vision_cls = None
    if image is not None:
        seq, cls = vision_encode(params, args, image, with_head, out_norm)
        if return_global:
            vision_cls = cls                      # fused head+norm inside encoder
        else:
            vision_cls = _apply_head_norm(seq, params["vision_head_w"],
                                          with_head, out_norm)
    language_cls = None
    if text_description is not None:
        seq, cls = text_encode(params, args, text_description, padding_mask,
                               with_head, out_norm)
        if return_global:
            language_cls = cls
        else:
            language_cls = _apply_head_norm(seq, params["language_head_w"],
                                            with_head, out_norm)
    return vision_cls, language_cls


if __name__ == "__main__":
    args = Args()
    root = jax.random.PRNGKey(0)
    k_params, k_img, k_txt = jax.random.split(root, 3)

    params = init_params(args, k_params)

    B, T = 2, 8
    image = jax.random.normal(
        k_img, (B, args.in_chans, args.img_size, args.img_size), jnp.float32)
    text = jax.random.randint(k_txt, (B, T), 0, args.vocab_size, jnp.int32)
    padding_mask = jnp.zeros((B, T), jnp.int32).at[:, 6:].set(1)

    fwd = jax.jit(lambda p, img, txt, pm: musk_forward(
        p, args, image=img, text_description=txt, padding_mask=pm,
        return_global=True, with_head=True, out_norm=True))

    vision_cls, language_cls = fwd(params, image, text, padding_mask)
    jax.block_until_ready((vision_cls, language_cls))

    assert vision_cls.shape == (B, args.encoder_embed_dim)
    assert language_cls.shape == (B, args.encoder_embed_dim)
    assert bool(jnp.all(jnp.isfinite(vision_cls))) and bool(jnp.all(jnp.isfinite(language_cls)))
    print("KERNEL_OK")
</pallas_src>

<mosaic_0001>
module attributes {stable_mosaic.version = 11 : i64} {
  func.func @_encoder_kernel(%arg0: i32, %arg1: i32, %arg2: memref<1x8x128xf32, #tpu.memory_space<vmem>>, %arg3: memref<8x128xf32, #tpu.memory_space<vmem>>, %arg4: memref<1x1x8xf32, #tpu.memory_space<vmem>>, %arg5: memref<1x1x128xf32, #tpu.memory_space<vmem>>, %arg6: memref<1x1x128xf32, #tpu.memory_space<vmem>>, %arg7: memref<1x384x128xbf16, #tpu.memory_space<vmem>>, %arg8: memref<1x1x384xf32, #tpu.memory_space<vmem>>, %arg9: memref<1x128x128xbf16, #tpu.memory_space<vmem>>, %arg10: memref<1x1x128xf32, #tpu.memory_space<vmem>>, %arg11: memref<1x1x128xf32, #tpu.memory_space<vmem>>, %arg12: memref<1x1x128xf32, #tpu.memory_space<vmem>>, %arg13: memref<1x256x128xbf16, #tpu.memory_space<vmem>>, %arg14: memref<1x1x256xf32, #tpu.memory_space<vmem>>, %arg15: memref<1x128x256xbf16, #tpu.memory_space<vmem>>, %arg16: memref<1x1x128xf32, #tpu.memory_space<vmem>>, %arg17: memref<1x128xf32, #tpu.memory_space<vmem>>, %arg18: memref<1x128xf32, #tpu.memory_space<vmem>>, %arg19: memref<128x128xbf16, #tpu.memory_space<vmem>>, %arg20: memref<1x8x128xf32, #tpu.memory_space<vmem>>, %arg21: memref<1x1x128xf32, #tpu.memory_space<vmem>>, %arg22: memref<8x128xf32, #tpu.memory_space<vmem>>) attributes {dimension_semantics = [#tpu.dimension_semantics<parallel>, #tpu.dimension_semantics<arbitrary>], iteration_bounds = array<i64: 2, 2>, scalar_prefetch = 0 : i64, scratch_operands = 1 : i64, tpu.core_type = #tpu.core_type<tc>, window_params = [{transform_indices = @transform_0, window_bounds = array<i64: 1, 8, 128>}, {pipeline_mode = #tpu.pipeline_mode<synchronous>, transform_indices = @transform_1, window_bounds = array<i64: 8, 128>}, {transform_indices = @transform_2, window_bounds = array<i64: 1, 1, 8>}, {transform_indices = @transform_3, window_bounds = array<i64: 1, 1, 128>}, {transform_indices = @transform_4, window_bounds = array<i64: 1, 1, 128>}, {transform_indices = @transform_5, window_bounds = array<i64: 1, 384, 128>}, {transform_indices = @transform_6, window_bounds = array<i64: 1, 1, 384>}, {transform_indices = @transform_7, window_bounds = array<i64: 1, 128, 128>}, {transform_indices = @transform_8, window_bounds = array<i64: 1, 1, 128>}, {transform_indices = @transform_9, window_bounds = array<i64: 1, 1, 128>}, {transform_indices = @transform_10, window_bounds = array<i64: 1, 1, 128>}, {transform_indices = @transform_11, window_bounds = array<i64: 1, 256, 128>}, {transform_indices = @transform_12, window_bounds = array<i64: 1, 1, 256>}, {transform_indices = @transform_13, window_bounds = array<i64: 1, 128, 256>}, {transform_indices = @transform_14, window_bounds = array<i64: 1, 1, 128>}, {pipeline_mode = #tpu.pipeline_mode<synchronous>, transform_indices = @transform_15, window_bounds = array<i64: 1, 128>}, {pipeline_mode = #tpu.pipeline_mode<synchronous>, transform_indices = @transform_16, window_bounds = array<i64: 1, 128>}, {pipeline_mode = #tpu.pipeline_mode<synchronous>, transform_indices = @transform_17, window_bounds = array<i64: 128, 128>}, {transform_indices = @transform_18, window_bounds = array<i64: 1, 8, 128>}, {transform_indices = @transform_19, window_bounds = array<i64: 1, 1, 128>}]} {
    %c0_i32 = arith.constant 0 : i32
    %0 = arith.cmpi eq, %arg1, %c0_i32 : i32
    %1 = arith.extui %0 : i1 to i32
    %c0_i32_0 = arith.constant 0 : i32
    %2 = arith.cmpi ne, %1, %c0_i32_0 : i32
    scf.if %2 {
      %c0_77 = arith.constant 0 : index
      %c0_78 = arith.constant 0 : index
      %c0_79 = arith.constant 0 : index
      %194 = vector.load %arg2[%c0_77, %c0_78, %c0_79] : memref<1x8x128xf32, #tpu.memory_space<vmem>>, vector<1x8x128xf32>
      %195 = vector.shape_cast %194 : vector<1x8x128xf32> to vector<8x128xf32>
      %c0_80 = arith.constant 0 : index
      %c0_81 = arith.constant 0 : index
      %196 = vector.load %arg3[%c0_80, %c0_81] : memref<8x128xf32, #tpu.memory_space<vmem>>, vector<8x128xf32>
      %197 = arith.addf %195, %196 : vector<8x128xf32>
      %c0_82 = arith.constant 0 : index
      %c0_83 = arith.constant 0 : index
      %198 = vector.load %arg22[%c0_82, %c0_83] : memref<8x128xf32, #tpu.memory_space<vmem>>, vector<8x128xf32>
      tpu.vector_store %arg22[%c0_82, %c0_83], %197 {strides = array<i32>} : memref<8x128xf32, #tpu.memory_space<vmem>>, vector<8x128xf32>,
    } else {
    }
    %c0 = arith.constant 0 : index
    %c0_1 = arith.constant 0 : index
    %3 = vector.load %arg22[%c0, %c0_1] : memref<8x128xf32, #tpu.memory_space<vmem>>, vector<8x128xf32>
    %c0_2 = arith.constant 0 : index
    %c0_3 = arith.constant 0 : index
    %c0_4 = arith.constant 0 : index
    %4 = vector.load %arg4[%c0_2, %c0_3, %c0_4] : memref<1x1x8xf32, #tpu.memory_space<vmem>>, vector<1x1x8xf32>
    %5 = vector.shape_cast %4 : vector<1x1x8xf32> to vector<1x8xf32>
    %c0_5 = arith.constant 0 : index
    %c0_6 = arith.constant 0 : index
    %c0_7 = arith.constant 0 : index
    %6 = vector.load %arg5[%c0_5, %c0_6, %c0_7] : memref<1x1x128xf32, #tpu.memory_space<vmem>>, vector<1x1x128xf32>
    %7 = vector.shape_cast %6 : vector<1x1x128xf32> to vector<1x128xf32>
    %c0_8 = arith.constant 0 : index
    %c0_9 = arith.constant 0 : index
    %c0_10 = arith.constant 0 : index
    %8 = vector.load %arg6[%c0_8, %c0_9, %c0_10] : memref<1x1x128xf32, #tpu.memory_space<vmem>>, vector<1x1x128xf32>
    %9 = vector.shape_cast %8 : vector<1x1x128xf32> to vector<1x128xf32>
    %cst = arith.constant dense<0.000000e+00> : vector<8xf32>
    %10 = vector.multi_reduction <add>, %3, %cst [1] : vector<8x128xf32> to vector<8xf32>
    %11 = vector.shape_cast %10 : vector<8xf32> to vector<8x1xf32>
    %cst_11 = arith.constant 1.280000e+02 : f32
    %12 = vector.broadcast %cst_11 : f32 to vector<8x1xf32>
    %13 = arith.divf %11, %12 : vector<8x1xf32>
    %14 = vector.broadcast %13 : vector<8x1xf32> to vector<8x128xf32>
    %15 = arith.subf %3, %14 : vector<8x128xf32>
    %16 = arith.mulf %15, %15 : vector<8x128xf32>
    %cst_12 = arith.constant dense<0.000000e+00> : vector<8xf32>
    %17 = vector.multi_reduction <add>, %16, %cst_12 [1] : vector<8x128xf32> to vector<8xf32>
    %18 = vector.shape_cast %17 : vector<8xf32> to vector<8x1xf32>
    %cst_13 = arith.constant 1.280000e+02 : f32
    %19 = vector.broadcast %cst_13 : f32 to vector<8x1xf32>
    %20 = arith.divf %18, %19 : vector<8x1xf32>
    %21 = vector.broadcast %13 : vector<8x1xf32> to vector<8x128xf32>
    %22 = arith.subf %3, %21 : vector<8x128xf32>
    %cst_14 = arith.constant 9.99999974E-6 : f32
    %23 = vector.broadcast %cst_14 : f32 to vector<8x1xf32>
    %24 = arith.addf %20, %23 : vector<8x1xf32>
    %25 = math.rsqrt %24 : vector<8x1xf32>
    %26 = vector.broadcast %25 : vector<8x1xf32> to vector<8x128xf32>
    %27 = arith.mulf %22, %26 : vector<8x128xf32>
    %28 = vector.broadcast %7 : vector<1x128xf32> to vector<8x128xf32>
    %29 = arith.mulf %27, %28 : vector<8x128xf32>
    %30 = vector.broadcast %9 : vector<1x128xf32> to vector<8x128xf32>
    %31 = arith.addf %29, %30 : vector<8x128xf32>
    %c0_15 = arith.constant 0 : index
    %c0_16 = arith.constant 0 : index
    %c0_17 = arith.constant 0 : index
    %32 = vector.load %arg7[%c0_15, %c0_16, %c0_17] : memref<1x384x128xbf16, #tpu.memory_space<vmem>>, vector<1x384x128xbf16>
    %33 = vector.shape_cast %32 : vector<1x384x128xbf16> to vector<384x128xbf16>
    %c0_18 = arith.constant 0 : index
    %c0_19 = arith.constant 0 : index
    %c0_20 = arith.constant 0 : index
    %34 = vector.load %arg8[%c0_18, %c0_19, %c0_20] : memref<1x1x384xf32, #tpu.memory_space<vmem>>, vector<1x1x384xf32>
    %35 = vector.shape_cast %34 : vector<1x1x384xf32> to vector<1x384xf32>
    %36 = arith.truncf %31 : vector<8x128xf32> to vector<8x128xbf16>
    %cst_21 = arith.constant dense<0.000000e+00> : vector<8x384xf32>
    %37 = tpu.matmul %36, %33, %cst_21 {dimension_numbers = #tpu.dot_dimension_numbers<[1], [1], [0], [0], [0, 0, 1, 0], [], []>} : vector<8x128xbf16>, vector<384x128xbf16>, vector<8x384xf32> -> vector<8x384xf32>
    %38 = vector.broadcast %35 : vector<1x384xf32> to vector<8x384xf32>
    %39 = arith.addf %37, %38 : vector<8x384xf32>
    %40 = vector.extract_strided_slice %39 {offsets = [0, 0], sizes = [8, 128], strides = [1, 1]} : vector<8x384xf32> to vector<8x128xf32>
    %cst_22 = arith.constant 0.176776692 : f32
    %41 = vector.broadcast %cst_22 : f32 to vector<8x128xf32>
    %42 = arith.mulf %40, %41 : vector<8x128xf32>
    %43 = vector.extract_strided_slice %39 {offsets = [0, 128], sizes = [8, 128], strides = [1, 1]} : vector<8x384xf32> to vector<8x128xf32>
    %44 = vector.extract_strided_slice %39 {offsets = [0, 256], sizes = [8, 128], strides = [1, 1]} : vector<8x384xf32> to vector<8x128xf32>
    %45 = vector.extract_strided_slice %42 {offsets = [0, 0], sizes = [8, 32], strides = [1, 1]} : vector<8x128xf32> to vector<8x32xf32>
    %46 = arith.truncf %45 : vector<8x32xf32> to vector<8x32xbf16>
    %47 = vector.extract_strided_slice %43 {offsets = [0, 0], sizes = [8, 32], strides = [1, 1]} : vector<8x128xf32> to vector<8x32xf32>
    %48 = arith.truncf %47 : vector<8x32xf32> to vector<8x32xbf16>
    %49 = vector.extract_strided_slice %44 {offsets = [0, 0], sizes = [8, 32], strides = [1, 1]} : vector<8x128xf32> to vector<8x32xf32>
    %50 = arith.truncf %49 : vector<8x32xf32> to vector<8x32xbf16>
    %cst_23 = arith.constant dense<0.000000e+00> : vector<8x8xf32>
    %51 = tpu.matmul %46, %48, %cst_23 {dimension_numbers = #tpu.dot_dimension_numbers<[1], [1], [0], [0], [0, 0, 1, 0], [], []>} : vector<8x32xbf16>, vector<8x32xbf16>, vector<8x8xf32> -> vector<8x8xf32>
    %52 = vector.broadcast %5 : vector<1x8xf32> to vector<8x8xf32>
    %53 = arith.addf %51, %52 : vector<8x8xf32>
    %cst_24 = arith.constant dense<0xFF800000> : vector<8xf32>
    %54 = vector.multi_reduction <maximumf>, %53, %cst_24 [1] : vector<8x8xf32> to vector<8xf32>
    %55 = vector.shape_cast %54 : vector<8xf32> to vector<8x1xf32>
    %56 = vector.broadcast %55 : vector<8x1xf32> to vector<8x8xf32>
    %57 = arith.subf %53, %56 : vector<8x8xf32>
    %58 = math.exp %57 : vector<8x8xf32>
    %cst_25 = arith.constant dense<0.000000e+00> : vector<8xf32>
    %59 = vector.multi_reduction <add>, %58, %cst_25 [1] : vector<8x8xf32> to vector<8xf32>
    %60 = vector.shape_cast %59 : vector<8xf32> to vector<8x1xf32>
    %61 = tpu.reciprocal %60 {approx = true} : vector<8x1xf32> -> vector<8x1xf32>
    %62 = vector.broadcast %61 : vector<8x1xf32> to vector<8x8xf32>
    %63 = arith.mulf %58, %62 : vector<8x8xf32>
    %64 = arith.truncf %63 : vector<8x8xf32> to vector<8x8xbf16>
    %cst_26 = arith.constant dense<0.000000e+00> : vector<8x32xf32>
    %65 = tpu.matmul %64, %50, %cst_26 {dimension_numbers = #tpu.dot_dimension_numbers<[1], [0], [0], [1], [0, 0, 1, 1], [], []>} : vector<8x8xbf16>, vector<8x32xbf16>, vector<8x32xf32> -> vector<8x32xf32>
    %66 = vector.extract_strided_slice %42 {offsets = [0, 32], sizes = [8, 32], strides = [1, 1]} : vector<8x128xf32> to vector<8x32xf32>
    %67 = arith.truncf %66 : vector<8x32xf32> to vector<8x32xbf16>
    %68 = vector.extract_strided_slice %43 {offsets = [0, 32], sizes = [8, 32], strides = [1, 1]} : vector<8x128xf32> to vector<8x32xf32>
    %69 = arith.truncf %68 : vector<8x32xf32> to vector<8x32xbf16>
    %70 = vector.extract_strided_slice %44 {offsets = [0, 32], sizes = [8, 32], strides = [1, 1]} : vector<8x128xf32> to vector<8x32xf32>
    %71 = arith.truncf %70 : vector<8x32xf32> to vector<8x32xbf16>
    %cst_27 = arith.constant dense<0.000000e+00> : vector<8x8xf32>
    %72 = tpu.matmul %67, %69, %cst_27 {dimension_numbers = #tpu.dot_dimension_numbers<[1], [1], [0], [0], [0, 0, 1, 0], [], []>} : vector<8x32xbf16>, vector<8x32xbf16>, vector<8x8xf32> -> vector<8x8xf32>
    %73 = vector.broadcast %5 : vector<1x8xf32> to vector<8x8xf32>
    %74 = arith.addf %72, %73 : vector<8x8xf32>
    %cst_28 = arith.constant dense<0xFF800000> : vector<8xf32>
    %75 = vector.multi_reduction <maximumf>, %74, %cst_28 [1] : vector<8x8xf32> to vector<8xf32>
    %76 = vector.shape_cast %75 : vector<8xf32> to vector<8x1xf32>
    %77 = vector.broadcast %76 : vector<8x1xf32> to vector<8x8xf32>
    %78 = arith.subf %74, %77 : vector<8x8xf32>
    %79 = math.exp %78 : vector<8x8xf32>
    %cst_29 = arith.constant dense<0.000000e+00> : vector<8xf32>
    %80 = vector.multi_reduction <add>, %79, %cst_29 [1] : vector<8x8xf32> to vector<8xf32>
    %81 = vector.shape_cast %80 : vector<8xf32> to vector<8x1xf32>
    %82 = tpu.reciprocal %81 {approx = true} : vector<8x1xf32> -> vector<8x1xf32>
    %83 = vector.broadcast %82 : vector<8x1xf32> to vector<8x8xf32>
    %84 = arith.mulf %79, %83 : vector<8x8xf32>
    %85 = arith.truncf %84 : vector<8x8xf32> to vector<8x8xbf16>
    %cst_30 = arith.constant dense<0.000000e+00> : vector<8x32xf32>
    %86 = tpu.matmul %85, %71, %cst_30 {dimension_numbers = #tpu.dot_dimension_numbers<[1], [0], [0], [1], [0, 0, 1, 1], [], []>} : vector<8x8xbf16>, vector<8x32xbf16>, vector<8x32xf32> -> vector<8x32xf32>
    %87 = vector.extract_strided_slice %42 {offsets = [0, 64], sizes = [8, 32], strides = [1, 1]} : vector<8x128xf32> to vector<8x32xf32>
    %88 = arith.truncf %87 : vector<8x32xf32> to vector<8x32xbf16>
    %89 = vector.extract_strided_slice %43 {offsets = [0, 64], sizes = [8, 32], strides = [1, 1]} : vector<8x128xf32> to vector<8x32xf32>
    %90 = arith.truncf %89 : vector<8x32xf32> to vector<8x32xbf16>
    %91 = vector.extract_strided_slice %44 {offsets = [0, 64], sizes = [8, 32], strides = [1, 1]} : vector<8x128xf32> to vector<8x32xf32>
    %92 = arith.truncf %91 : vector<8x32xf32> to vector<8x32xbf16>
    %cst_31 = arith.constant dense<0.000000e+00> : vector<8x8xf32>
    %93 = tpu.matmul %88, %90, %cst_31 {dimension_numbers = #tpu.dot_dimension_numbers<[1], [1], [0], [0], [0, 0, 1, 0], [], []>} : vector<8x32xbf16>, vector<8x32xbf16>, vector<8x8xf32> -> vector<8x8xf32>
    %94 = vector.broadcast %5 : vector<1x8xf32> to vector<8x8xf32>
    %95 = arith.addf %93, %94 : vector<8x8xf32>
    %cst_32 = arith.constant dense<0xFF800000> : vector<8xf32>
    %96 = vector.multi_reduction <maximumf>, %95, %cst_32 [1] : vector<8x8xf32> to vector<8xf32>
    %97 = vector.shape_cast %96 : vector<8xf32> to vector<8x1xf32>
    %98 = vector.broadcast %97 : vector<8x1xf32> to vector<8x8xf32>
    %99 = arith.subf %95, %98 : vector<8x8xf32>
    %100 = math.exp %99 : vector<8x8xf32>
    %cst_33 = arith.constant dense<0.000000e+00> : vector<8xf32>
    %101 = vector.multi_reduction <add>, %100, %cst_33 [1] : vector<8x8xf32> to vector<8xf32>
    %102 = vector.shape_cast %101 : vector<8xf32> to vector<8x1xf32>
    %103 = tpu.reciprocal %102 {approx = true} : vector<8x1xf32> -> vector<8x1xf32>
    %104 = vector.broadcast %103 : vector<8x1xf32> to vector<8x8xf32>
    %105 = arith.mulf %100, %104 : vector<8x8xf32>
    %106 = arith.truncf %105 : vector<8x8xf32> to vector<8x8xbf16>
    %cst_34 = arith.constant dense<0.000000e+00> : vector<8x32xf32>
    %107 = tpu.matmul %106, %92, %cst_34 {dimension_numbers = #tpu.dot_dimension_numbers<[1], [0], [0], [1], [0, 0, 1, 1], [], []>} : vector<8x8xbf16>, vector<8x32xbf16>, vector<8x32xf32> -> vector<8x32xf32>
    %108 = vector.extract_strided_slice %42 {offsets = [0, 96], sizes = [8, 32], strides = [1, 1]} : vector<8x128xf32> to vector<8x32xf32>
    %109 = arith.truncf %108 : vector<8x32xf32> to vector<8x32xbf16>
    %110 = vector.extract_strided_slice %43 {offsets = [0, 96], sizes = [8, 32], strides = [1, 1]} : vector<8x128xf32> to vector<8x32xf32>
    %111 = arith.truncf %110 : vector<8x32xf32> to vector<8x32xbf16>
    %112 = vector.extract_strided_slice %44 {offsets = [0, 96], sizes = [8, 32], strides = [1, 1]} : vector<8x128xf32> to vector<8x32xf32>
    %113 = arith.truncf %112 : vector<8x32xf32> to vector<8x32xbf16>
    %cst_35 = arith.constant dense<0.000000e+00> : vector<8x8xf32>
    %114 = tpu.matmul %109, %111, %cst_35 {dimension_numbers = #tpu.dot_dimension_numbers<[1], [1], [0], [0], [0, 0, 1, 0], [], []>} : vector<8x32xbf16>, vector<8x32xbf16>, vector<8x8xf32> -> vector<8x8xf32>
    %115 = vector.broadcast %5 : vector<1x8xf32> to vector<8x8xf32>
    %116 = arith.addf %114, %115 : vector<8x8xf32>
    %cst_36 = arith.constant dense<0xFF800000> : vector<8xf32>
    %117 = vector.multi_reduction <maximumf>, %116, %cst_36 [1] : vector<8x8xf32> to vector<8xf32>
    %118 = vector.shape_cast %117 : vector<8xf32> to vector<8x1xf32>
    %119 = vector.broadcast %118 : vector<8x1xf32> to vector<8x8xf32>
    %120 = arith.subf %116, %119 : vector<8x8xf32>
    %121 = math.exp %120 : vector<8x8xf32>
    %cst_37 = arith.constant dense<0.000000e+00> : vector<8xf32>
    %122 = vector.multi_reduction <add>, %121, %cst_37 [1] : vector<8x8xf32> to vector<8xf32>
    %123 = vector.shape_cast %122 : vector<8xf32> to vector<8x1xf32>
    %124 = tpu.reciprocal %123 {approx = true} : vector<8x1xf32> -> vector<8x1xf32>
    %125 = vector.broadcast %124 : vector<8x1xf32> to vector<8x8xf32>
    %126 = arith.mulf %121, %125 : vector<8x8xf32>
    %127 = arith.truncf %126 : vector<8x8xf32> to vector<8x8xbf16>
    %cst_38 = arith.constant dense<0.000000e+00> : vector<8x32xf32>
    %128 = tpu.matmul %127, %113, %cst_38 {dimension_numbers = #tpu.dot_dimension_numbers<[1], [0], [0], [1], [0, 0, 1, 1], [], []>} : vector<8x8xbf16>, vector<8x32xbf16>, vector<8x32xf32> -> vector<8x32xf32>
    %129 = tpu.concatenate %65, %86, %107, %128 in 1 : vector<8x32xf32>, vector<8x32xf32>, vector<8x32xf32>, vector<8x32xf32> -> vector<8x128xf32>
    %c0_39 = arith.constant 0 : index
    %c0_40 = arith.constant 0 : index
    %c0_41 = arith.constant 0 : index
    %130 = vector.load %arg9[%c0_39, %c0_40, %c0_41] : memref<1x128x128xbf16, #tpu.memory_space<vmem>>, vector<1x128x128xbf16>
    %131 = vector.shape_cast %130 : vector<1x128x128xbf16> to vector<128x128xbf16>
    %c0_42 = arith.constant 0 : index
    %c0_43 = arith.constant 0 : index
    %c0_44 = arith.constant 0 : index
    %132 = vector.load %arg10[%c0_42, %c0_43, %c0_44] : memref<1x1x128xf32, #tpu.memory_space<vmem>>, vector<1x1x128xf32>
    %133 = vector.shape_cast %132 : vector<1x1x128xf32> to vector<1x128xf32>
    %134 = arith.truncf %129 : vector<8x128xf32> to vector<8x128xbf16>
    %cst_45 = arith.constant dense<0.000000e+00> : vector<8x128xf32>
    %135 = tpu.matmul %134, %131, %cst_45 {dimension_numbers = #tpu.dot_dimension_numbers<[1], [1], [0], [0], [0, 0, 1, 0], [], []>} : vector<8x128xbf16>, vector<128x128xbf16>, vector<8x128xf32> -> vector<8x128xf32>
    %136 = vector.broadcast %133 : vector<1x128xf32> to vector<8x128xf32>
    %137 = arith.addf %135, %136 : vector<8x128xf32>
    %138 = arith.addf %3, %137 : vector<8x128xf32>
    %c0_46 = arith.constant 0 : index
    %c0_47 = arith.constant 0 : index
    %c0_48 = arith.constant 0 : index
    %139 = vector.load %arg11[%c0_46, %c0_47, %c0_48] : memref<1x1x128xf32, #tpu.memory_space<vmem>>, vector<1x1x128xf32>
    %140 = vector.shape_cast %139 : vector<1x1x128xf32> to vector<1x128xf32>
    %c0_49 = arith.constant 0 : index
    %c0_50 = arith.constant 0 : index
    %c0_51 = arith.constant 0 : index
    %141 = vector.load %arg12[%c0_49, %c0_50, %c0_51] : memref<1x1x128xf32, #tpu.memory_space<vmem>>, vector<1x1x128xf32>
    %142 = vector.shape_cast %141 : vector<1x1x128xf32> to vector<1x128xf32>
    %cst_52 = arith.constant dense<0.000000e+00> : vector<8xf32>
    %143 = vector.multi_reduction <add>, %138, %cst_52 [1] : vector<8x128xf32> to vector<8xf32>
    %144 = vector.shape_cast %143 : vector<8xf32> to vector<8x1xf32>
    %cst_53 = arith.constant 1.280000e+02 : f32
    %145 = vector.broadcast %cst_53 : f32 to vector<8x1xf32>
    %146 = arith.divf %144, %145 : vector<8x1xf32>
    %147 = vector.broadcast %146 : vector<8x1xf32> to vector<8x128xf32>
    %148 = arith.subf %138, %147 : vector<8x128xf32>
    %149 = arith.mulf %148, %148 : vector<8x128xf32>
    %cst_54 = arith.constant dense<0.000000e+00> : vector<8xf32>
    %150 = vector.multi_reduction <add>, %149, %cst_54 [1] : vector<8x128xf32> to vector<8xf32>
    %151 = vector.shape_cast %150 : vector<8xf32> to vector<8x1xf32>
    %cst_55 = arith.constant 1.280000e+02 : f32
    %152 = vector.broadcast %cst_55 : f32 to vector<8x1xf32>
    %153 = arith.divf %151, %152 : vector<8x1xf32>
    %154 = vector.broadcast %146 : vector<8x1xf32> to vector<8x128xf32>
    %155 = arith.subf %138, %154 : vector<8x128xf32>
    %cst_56 = arith.constant 9.99999974E-6 : f32
    %156 = vector.broadcast %cst_56 : f32 to vector<8x1xf32>
    %157 = arith.addf %153, %156 : vector<8x1xf32>
    %158 = math.rsqrt %157 : vector<8x1xf32>
    %159 = vector.broadcast %158 : vector<8x1xf32> to vector<8x128xf32>
    %160 = arith.mulf %155, %159 : vector<8x128xf32>
    %161 = vector.broadcast %140 : vector<1x128xf32> to vector<8x128xf32>
    %162 = arith.mulf %160, %161 : vector<8x128xf32>
    %163 = vector.broadcast %142 : vector<1x128xf32> to vector<8x128xf32>
    %164 = arith.addf %162, %163 : vector<8x128xf32>
    %c0_57 = arith.constant 0 : index
    %c0_58 = arith.constant 0 : index
    %c0_59 = arith.constant 0 : index
    %165 = vector.load %arg13[%c0_57, %c0_58, %c0_59] : memref<1x256x128xbf16, #tpu.memory_space<vmem>>, vector<1x256x128xbf16>
    %166 = vector.shape_cast %165 : vector<1x256x128xbf16> to vector<256x128xbf16>
    %c0_60 = arith.constant 0 : index
    %c0_61 = arith.constant 0 : index
    %c0_62 = arith.constant 0 : index
    %167 = vector.load %arg14[%c0_60, %c0_61, %c0_62] : memref<1x1x256xf32, #tpu.memory_space<vmem>>, vector<1x1x256xf32>
    %168 = vector.shape_cast %167 : vector<1x1x256xf32> to vector<1x256xf32>
    %169 = arith.truncf %164 : vector<8x128xf32> to vector<8x128xbf16>
    %cst_63 = arith.constant dense<0.000000e+00> : vector<8x256xf32>
    %170 = tpu.matmul %169, %166, %cst_63 {dimension_numbers = #tpu.dot_dimension_numbers<[1], [1], [0], [0], [0, 0, 1, 0], [], []>} : vector<8x128xbf16>, vector<256x128xbf16>, vector<8x256xf32> -> vector<8x256xf32>
    %171 = vector.broadcast %168 : vector<1x256xf32> to vector<8x256xf32>
    %172 = arith.addf %170, %171 : vector<8x256xf32>
    %cst_64 = arith.constant 5.000000e-01 : f32
    %173 = vector.broadcast %cst_64 : f32 to vector<8x256xf32>
    %174 = arith.mulf %173, %172 : vector<8x256xf32>
    %cst_65 = arith.constant 0.707106769 : f32
    %175 = vector.broadcast %cst_65 : f32 to vector<8x256xf32>
    %176 = arith.mulf %172, %175 : vector<8x256xf32>
    %177 = math.erf %176 : vector<8x256xf32>
    %cst_66 = arith.constant 1.000000e+00 : f32
    %178 = vector.broadcast %cst_66 : f32 to vector<8x256xf32>
    %179 = arith.addf %178, %177 : vector<8x256xf32>
    %180 = arith.mulf %174, %179 : vector<8x256xf32>
    %c0_67 = arith.constant 0 : index
    %c0_68 = arith.constant 0 : index
    %c0_69 = arith.constant 0 : index
    %181 = vector.load %arg15[%c0_67, %c0_68, %c0_69] : memref<1x128x256xbf16, #tpu.memory_space<vmem>>, vector<1x128x256xbf16>
    %182 = vector.shape_cast %181 : vector<1x128x256xbf16> to vector<128x256xbf16>
    %c0_70 = arith.constant 0 : index
    %c0_71 = arith.constant 0 : index
    %c0_72 = arith.constant 0 : index
    %183 = vector.load %arg16[%c0_70, %c0_71, %c0_72] : memref<1x1x128xf32, #tpu.memory_space<vmem>>, vector<1x1x128xf32>
    %184 = vector.shape_cast %183 : vector<1x1x128xf32> to vector<1x128xf32>
    %185 = arith.truncf %180 : vector<8x256xf32> to vector<8x256xbf16>
    %cst_73 = arith.constant dense<0.000000e+00> : vector<8x128xf32>
    %186 = tpu.matmul %185, %182, %cst_73 {dimension_numbers = #tpu.dot_dimension_numbers<[1], [1], [0], [0], [0, 0, 1, 0], [], []>} : vector<8x256xbf16>, vector<128x256xbf16>, vector<8x128xf32> -> vector<8x128xf32>
    %187 = vector.broadcast %184 : vector<1x128xf32> to vector<8x128xf32>
    %188 = arith.addf %186, %187 : vector<8x128xf32>
    %189 = arith.addf %138, %188 : vector<8x128xf32>
    %c0_74 = arith.constant 0 : index
    %c0_75 = arith.constant 0 : index
    %190 = vector.load %arg22[%c0_74, %c0_75] : memref<8x128xf32, #tpu.memory_space<vmem>>, vector<8x128xf32>
    tpu.vector_store %arg22[%c0_74, %c0_75], %189 {strides = array<i32>} : memref<8x128xf32, #tpu.memory_space<vmem>>, vector<8x128xf32>,
    %c1_i32 = arith.constant 1 : i32
    %191 = arith.cmpi eq, %arg1, %c1_i32 : i32
    %192 = arith.extui %191 : i1 to i32
    %c0_i32_76 = arith.constant 0 : i32
    %193 = arith.cmpi ne, %192, %c0_i32_76 : i32
    scf.if %193 {
      %c0_77 = arith.constant 0 : index
      %c0_78 = arith.constant 0 : index
      %194 = vector.load %arg17[%c0_77, %c0_78] : memref<1x128xf32, #tpu.memory_space<vmem>>, vector<1x128xf32>
      %c0_79 = arith.constant 0 : index
      %c0_80 = arith.constant 0 : index
      %195 = vector.load %arg18[%c0_79, %c0_80] : memref<1x128xf32, #tpu.memory_space<vmem>>, vector<1x128xf32>
      %cst_81 = arith.constant dense<0.000000e+00> : vector<8xf32>
      %196 = vector.multi_reduction <add>, %189, %cst_81 [1] : vector<8x128xf32> to vector<8xf32>
      %197 = vector.shape_cast %196 : vector<8xf32> to vector<8x1xf32>
      %cst_82 = arith.constant 1.280000e+02 : f32
      %198 = vector.broadcast %cst_82 : f32 to vector<8x1xf32>
      %199 = arith.divf %197, %198 : vector<8x1xf32>
      %200 = vector.broadcast %199 : vector<8x1xf32> to vector<8x128xf32>
      %201 = arith.subf %189, %200 : vector<8x128xf32>
      %202 = arith.mulf %201, %201 : vector<8x128xf32>
      %cst_83 = arith.constant dense<0.000000e+00> : vector<8xf32>
      %203 = vector.multi_reduction <add>, %202, %cst_83 [1] : vector<8x128xf32> to vector<8xf32>
      %204 = vector.shape_cast %203 : vector<8xf32> to vector<8x1xf32>
      %cst_84 = arith.constant 1.280000e+02 : f32
      %205 = vector.broadcast %cst_84 : f32 to vector<8x1xf32>
      %206 = arith.divf %204, %205 : vector<8x1xf32>
      %207 = vector.broadcast %199 : vector<8x1xf32> to vector<8x128xf32>
      %208 = arith.subf %189, %207 : vector<8x128xf32>
      %cst_85 = arith.constant 9.99999974E-6 : f32
      %209 = vector.broadcast %cst_85 : f32 to vector<8x1xf32>
      %210 = arith.addf %206, %209 : vector<8x1xf32>
      %211 = math.rsqrt %210 : vector<8x1xf32>
      %212 = vector.broadcast %211 : vector<8x1xf32> to vector<8x128xf32>
      %213 = arith.mulf %208, %212 : vector<8x128xf32>
      %214 = vector.broadcast %194 : vector<1x128xf32> to vector<8x128xf32>
      %215 = arith.mulf %213, %214 : vector<8x128xf32>
      %216 = vector.broadcast %195 : vector<1x128xf32> to vector<8x128xf32>
      %217 = arith.addf %215, %216 : vector<8x128xf32>
      %c0_86 = arith.constant 0 : index
      %c0_87 = arith.constant 0 : index
      %c0_88 = arith.constant 0 : index
      %218 = vector.load %arg20[%c0_86, %c0_87, %c0_88] : memref<1x8x128xf32, #tpu.memory_space<vmem>>, vector<1x8x128xf32>
      %219 = vector.shape_cast %218 : vector<1x8x128xf32> to vector<8x128xf32>
      %220 = vector.shape_cast %217 : vector<8x128xf32> to vector<1x8x128xf32>
      tpu.vector_store %arg20[%c0_86, %c0_87, %c0_88], %220 {strides = array<i32>} : memref<1x8x128xf32, #tpu.memory_space<vmem>>, vector<1x8x128xf32>,
      %221 = vector.extract_strided_slice %217 {offsets = [0, 0], sizes = [1, 128], strides = [1, 1]} : vector<8x128xf32> to vector<1x128xf32>
      %222 = arith.truncf %221 : vector<1x128xf32> to vector<1x128xbf16>
      %c0_89 = arith.constant 0 : index
      %c0_90 = arith.constant 0 : index
      %223 = vector.load %arg19[%c0_89, %c0_90] : memref<128x128xbf16, #tpu.memory_space<vmem>>, vector<128x128xbf16>
      %cst_91 = arith.constant dense<0.000000e+00> : vector<1x128xf32>
      %224 = tpu.matmul %222, %223, %cst_91 {dimension_numbers = #tpu.dot_dimension_numbers<[1], [1], [0], [0], [0, 0, 1, 0], [], []>} : vector<1x128xbf16>, vector<128x128xbf16>, vector<1x128xf32> -> vector<1x128xf32>
      %225 = arith.mulf %224, %224 : vector<1x128xf32>
      %cst_92 = arith.constant dense<0.000000e+00> : vector<1xf32>
      %226 = vector.multi_reduction <add>, %225, %cst_92 [1] : vector<1x128xf32> to vector<1xf32>
      %227 = vector.shape_cast %226 : vector<1xf32> to vector<1x1xf32>
      %cst_93 = arith.constant 1.000000e-24 : f32
      %228 = vector.broadcast %cst_93 : f32 to vector<1x1xf32>
      %229 = arith.maximumf %227, %228 : vector<1x1xf32>
      %230 = math.rsqrt %229 : vector<1x1xf32>
      %231 = vector.broadcast %230 : vector<1x1xf32> to vector<1x128xf32>
      %232 = arith.mulf %224, %231 : vector<1x128xf32>
      %c0_94 = arith.constant 0 : index
      %c0_95 = arith.constant 0 : index
      %c0_96 = arith.constant 0 : index
      %233 = vector.load %arg21[%c0_94, %c0_95, %c0_96] : memref<1x1x128xf32, #tpu.memory_space<vmem>>, vector<1x1x128xf32>
      %234 = vector.shape_cast %233 : vector<1x1x128xf32> to vector<1x128xf32>
      %235 = vector.shape_cast %232 : vector<1x128xf32> to vector<1x1x128xf32>
      tpu.vector_store %arg21[%c0_94, %c0_95, %c0_96], %235 {strides = array<i32>} : memref<1x1x128xf32, #tpu.memory_space<vmem>>, vector<1x1x128xf32>,
    } else {
    }
    return
  }
  func.func @transform_0(%arg0: i32, %arg1: i32) -> (i32, i32, i32) {
    %c0_i32 = arith.constant 0 : i32
    %c0_i32_0 = arith.constant 0 : i32
    %c0_i32_1 = arith.constant 0 : i32
    return %arg0, %c0_i32, %c0_i32_0 : i32, i32, i32
  }
  func.func @transform_1(%arg0: i32, %arg1: i32) -> (i32, i32) {
    %c0_i32 = arith.constant 0 : i32
    %c0_i32_0 = arith.constant 0 : i32
    %c0_i32_1 = arith.constant 0 : i32
    return %c0_i32, %c0_i32_0 : i32, i32
  }
  func.func @transform_2(%arg0: i32, %arg1: i32) -> (i32, i32, i32) {
    %c0_i32 = arith.constant 0 : i32
    %c0_i32_0 = arith.constant 0 : i32
    %c0_i32_1 = arith.constant 0 : i32
    return %arg0, %c0_i32, %c0_i32_0 : i32, i32, i32
  }
  func.func @transform_3(%arg0: i32, %arg1: i32) -> (i32, i32, i32) {
    %c0_i32 = arith.constant 0 : i32
    %c0_i32_0 = arith.constant 0 : i32
    %c0_i32_1 = arith.constant 0 : i32
    return %arg1, %c0_i32, %c0_i32_0 : i32, i32, i32
  }
  func.func @transform_4(%arg0: i32, %arg1: i32) -> (i32, i32, i32) {
    %c0_i32 = arith.constant 0 : i32
    %c0_i32_0 = arith.constant 0 : i32
    %c0_i32_1 = arith.constant 0 : i32
    return %arg1, %c0_i32, %c0_i32_0 : i32, i32, i32
  }
  func.func @transform_5(%arg0: i32, %arg1: i32) -> (i32, i32, i32) {
    %c0_i32 = arith.constant 0 : i32
    %c0_i32_0 = arith.constant 0 : i32
    %c0_i32_1 = arith.constant 0 : i32
    return %arg1, %c0_i32, %c0_i32_0 : i32, i32, i32
  }
  func.func @transform_6(%arg0: i32, %arg1: i32) -> (i32, i32, i32) {
    %c0_i32 = arith.constant 0 : i32
    %c0_i32_0 = arith.constant 0 : i32
    %c0_i32_1 = arith.constant 0 : i32
    return %arg1, %c0_i32, %c0_i32_0 : i32, i32, i32
  }
  func.func @transform_7(%arg0: i32, %arg1: i32) -> (i32, i32, i32) {
    %c0_i32 = arith.constant 0 : i32
    %c0_i32_0 = arith.constant 0 : i32
    %c0_i32_1 = arith.constant 0 : i32
    return %arg1, %c0_i32, %c0_i32_0 : i32, i32, i32
  }
  func.func @transform_8(%arg0: i32, %arg1: i32) -> (i32, i32, i32) {
    %c0_i32 = arith.constant 0 : i32
    %c0_i32_0 = arith.constant 0 : i32
    %c0_i32_1 = arith.constant 0 : i32
    return %arg1, %c0_i32, %c0_i32_0 : i32, i32, i32
  }
  func.func @transform_9(%arg0: i32, %arg1: i32) -> (i32, i32, i32) {
    %c0_i32 = arith.constant 0 : i32
    %c0_i32_0 = arith.constant 0 : i32
    %c0_i32_1 = arith.constant 0 : i32
    return %arg1, %c0_i32, %c0_i32_0 : i32, i32, i32
  }
  func.func @transform_10(%arg0: i32, %arg1: i32) -> (i32, i32, i32) {
    %c0_i32 = arith.constant 0 : i32
    %c0_i32_0 = arith.constant 0 : i32
    %c0_i32_1 = arith.constant 0 : i32
    return %arg1, %c0_i32, %c0_i32_0 : i32, i32, i32
  }
  func.func @transform_11(%arg0: i32, %arg1: i32) -> (i32, i32, i32) {
    %c0_i32 = arith.constant 0 : i32
    %c0_i32_0 = arith.constant 0 : i32
    %c0_i32_1 = arith.constant 0 : i32
    return %arg1, %c0_i32, %c0_i32_0 : i32, i32, i32
  }
  func.func @transform_12(%arg0: i32, %arg1: i32) -> (i32, i32, i32) {
    %c0_i32 = arith.constant 0 : i32
    %c0_i32_0 = arith.constant 0 : i32
    %c0_i32_1 = arith.constant 0 : i32
    return %arg1, %c0_i32, %c0_i32_0 : i32, i32, i32
  }
  func.func @transform_13(%arg0: i32, %arg1: i32) -> (i32, i32, i32) {
    %c0_i32 = arith.constant 0 : i32
    %c0_i32_0 = arith.constant 0 : i32
    %c0_i32_1 = arith.constant 0 : i32
    return %arg1, %c0_i32, %c0_i32_0 : i32, i32, i32
  }
  func.func @transform_14(%arg0: i32, %arg1: i32) -> (i32, i32, i32) {
    %c0_i32 = arith.constant 0 : i32
    %c0_i32_0 = arith.constant 0 : i32
    %c0_i32_1 = arith.constant 0 : i32
    return %arg1, %c0_i32, %c0_i32_0 : i32, i32, i32
  }
  func.func @transform_15(%arg0: i32, %arg1: i32) -> (i32, i32) {
    %c0_i32 = arith.constant 0 : i32
    %c0_i32_0 = arith.constant 0 : i32
    %c0_i32_1 = arith.constant 0 : i32
    return %c0_i32, %c0_i32_0 : i32, i32
  }
  func.func @transform_16(%arg0: i32, %arg1: i32) -> (i32, i32) {
    %c0_i32 = arith.constant 0 : i32
    %c0_i32_0 = arith.constant 0 : i32
    %c0_i32_1 = arith.constant 0 : i32
    return %c0_i32, %c0_i32_0 : i32, i32
  }
  func.func @transform_17(%arg0: i32, %arg1: i32) -> (i32, i32) {
    %c0_i32 = arith.constant 0 : i32
    %c0_i32_0 = arith.constant 0 : i32
    %c0_i32_1 = arith.constant 0 : i32
    return %c0_i32, %c0_i32_0 : i32, i32
  }
  func.func @transform_18(%arg0: i32, %arg1: i32) -> (i32, i32, i32) {
    %c0_i32 = arith.constant 0 : i32
    %c0_i32_0 = arith.constant 0 : i32
    %c0_i32_1 = arith.constant 0 : i32
    return %arg0, %c0_i32, %c0_i32_0 : i32, i32, i32
  }
  func.func @transform_19(%arg0: i32, %arg1: i32) -> (i32, i32, i32) {
    %c0_i32 = arith.constant 0 : i32
    %c0_i32_0 = arith.constant 0 : i32
    %c0_i32_1 = arith.constant 0 : i32
    return %arg0, %c0_i32, %c0_i32_0 : i32, i32, i32
  }
}

module attributes {stable_mosaic.version = 11 : i64} {
  func.func @_linear_kernel(%arg0: memref<8x192xf32, #tpu.memory_space<vmem>>, %arg1: memref<128x192xbf16, #tpu.memory_space<vmem>>, %arg2: memref<1x128xf32, #tpu.memory_space<vmem>>, %arg3: memref<8x128xf32, #tpu.memory_space<vmem>>) attributes {dimension_semantics = [], scalar_prefetch = 0 : i64, scratch_operands = 0 : i64, tpu.core_type = #tpu.core_type<tc>} {
    %c0 = arith.constant 0 : index
    %c0_0 = arith.constant 0 : index
    %0 = vector.load %arg0[%c0, %c0_0] : memref<8x192xf32, #tpu.memory_space<vmem>>, vector<8x192xf32>
    %1 = arith.truncf %0 : vector<8x192xf32> to vector<8x192xbf16>
    %c0_1 = arith.constant 0 : index
    %c0_2 = arith.constant 0 : index
    %2 = vector.load %arg1[%c0_1, %c0_2] : memref<128x192xbf16, #tpu.memory_space<vmem>>, vector<128x192xbf16>
    %cst = arith.constant dense<0.000000e+00> : vector<8x128xf32>
    %3 = tpu.matmul %1, %2, %cst {dimension_numbers = #tpu.dot_dimension_numbers<[1], [1], [0], [0], [0, 0, 1, 0], [], []>} : vector<8x192xbf16>, vector<128x192xbf16>, vector<8x128xf32> -> vector<8x128xf32>
    %c0_3 = arith.constant 0 : index
    %c0_4 = arith.constant 0 : index
    %4 = vector.load %arg2[%c0_3, %c0_4] : memref<1x128xf32, #tpu.memory_space<vmem>>, vector<1x128xf32>
    %5 = vector.broadcast %4 : vector<1x128xf32> to vector<8x128xf32>
    %6 = arith.addf %3, %5 : vector<8x128xf32>
    %c0_5 = arith.constant 0 : index
    %c0_6 = arith.constant 0 : index
    %7 = vector.load %arg3[%c0_5, %c0_6] : memref<8x128xf32, #tpu.memory_space<vmem>>, vector<8x128xf32>
    tpu.vector_store %arg3[%c0_5, %c0_6], %6 {strides = array<i32>} : memref<8x128xf32, #tpu.memory_space<vmem>>, vector<8x128xf32>,
    return
  }
}

module attributes {stable_mosaic.version = 11 : i64} {
  func.func @_encoder_kernel(%arg0: i32, %arg1: i32, %arg2: memref<1x5x128xf32, #tpu.memory_space<vmem>>, %arg3: memref<5x128xf32, #tpu.memory_space<vmem>>, %arg4: memref<1x1x5xf32, #tpu.memory_space<vmem>>, %arg5: memref<1x1x128xf32, #tpu.memory_space<vmem>>, %arg6: memref<1x1x128xf32, #tpu.memory_space<vmem>>, %arg7: memref<1x384x128xbf16, #tpu.memory_space<vmem>>, %arg8: memref<1x1x384xf32, #tpu.memory_space<vmem>>, %arg9: memref<1x128x128xbf16, #tpu.memory_space<vmem>>, %arg10: memref<1x1x128xf32, #tpu.memory_space<vmem>>, %arg11: memref<1x1x128xf32, #tpu.memory_space<vmem>>, %arg12: memref<1x1x128xf32, #tpu.memory_space<vmem>>, %arg13: memref<1x256x128xbf16, #tpu.memory_space<vmem>>, %arg14: memref<1x1x256xf32, #tpu.memory_space<vmem>>, %arg15: memref<1x128x256xbf16, #tpu.memory_space<vmem>>, %arg16: memref<1x1x128xf32, #tpu.memory_space<vmem>>, %arg17: memref<1x128xf32, #tpu.memory_space<vmem>>, %arg18: memref<1x128xf32, #tpu.memory_space<vmem>>, %arg19: memref<128x128xbf16, #tpu.memory_space<vmem>>, %arg20: memref<1x5x128xf32, #tpu.memory_space<vmem>>, %arg21: memref<1x1x128xf32, #tpu.memory_space<vmem>>, %arg22: memref<5x128xf32, #tpu.memory_space<vmem>>) attributes {dimension_semantics = [#tpu.dimension_semantics<parallel>, #tpu.dimension_semantics<arbitrary>], iteration_bounds = array<i64: 2, 2>, scalar_prefetch = 0 : i64, scratch_operands = 1 : i64, tpu.core_type = #tpu.core_type<tc>, window_params = [{transform_indices = @transform_0, window_bounds = array<i64: 1, 5, 128>}, {pipeline_mode = #tpu.pipeline_mode<synchronous>, transform_indices = @transform_1, window_bounds = array<i64: 5, 128>}, {transform_indices = @transform_2, window_bounds = array<i64: 1, 1, 5>}, {transform_indices = @transform_3, window_bounds = array<i64: 1, 1, 128>}, {transform_indices = @transform_4, window_bounds = array<i64: 1, 1, 128>}, {transform_indices = @transform_5, window_bounds = array<i64: 1, 384, 128>}, {transform_indices = @transform_6, window_bounds = array<i64: 1, 1, 384>}, {transform_indices = @transform_7, window_bounds = array<i64: 1, 128, 128>}, {transform_indices = @transform_8, window_bounds = array<i64: 1, 1, 128>}, {transform_indices = @transform_9, window_bounds = array<i64: 1, 1, 128>}, {transform_indices = @transform_10, window_bounds = array<i64: 1, 1, 128>}, {transform_indices = @transform_11, window_bounds = array<i64: 1, 256, 128>}, {transform_indices = @transform_12, window_bounds = array<i64: 1, 1, 256>}, {transform_indices = @transform_13, window_bounds = array<i64: 1, 128, 256>}, {transform_indices = @transform_14, window_bounds = array<i64: 1, 1, 128>}, {pipeline_mode = #tpu.pipeline_mode<synchronous>, transform_indices = @transform_15, window_bounds = array<i64: 1, 128>}, {pipeline_mode = #tpu.pipeline_mode<synchronous>, transform_indices = @transform_16, window_bounds = array<i64: 1, 128>}, {pipeline_mode = #tpu.pipeline_mode<synchronous>, transform_indices = @transform_17, window_bounds = array<i64: 128, 128>}, {transform_indices = @transform_18, window_bounds = array<i64: 1, 5, 128>}, {transform_indices = @transform_19, window_bounds = array<i64: 1, 1, 128>}]} {
    %c0_i32 = arith.constant 0 : i32
    %0 = arith.cmpi eq, %arg1, %c0_i32 : i32
    %1 = arith.extui %0 : i1 to i32
    %c0_i32_0 = arith.constant 0 : i32
    %2 = arith.cmpi ne, %1, %c0_i32_0 : i32
    scf.if %2 {
      %c0_77 = arith.constant 0 : index
      %c0_78 = arith.constant 0 : index
      %c0_79 = arith.constant 0 : index
      %194 = vector.load %arg2[%c0_77, %c0_78, %c0_79] : memref<1x5x128xf32, #tpu.memory_space<vmem>>, vector<1x5x128xf32>
      %195 = vector.shape_cast %194 : vector<1x5x128xf32> to vector<5x128xf32>
      %c0_80 = arith.constant 0 : index
      %c0_81 = arith.constant 0 : index
      %196 = vector.load %arg3[%c0_80, %c0_81] : memref<5x128xf32, #tpu.memory_space<vmem>>, vector<5x128xf32>
      %197 = arith.addf %195, %196 : vector<5x128xf32>
      %c0_82 = arith.constant 0 : index
      %c0_83 = arith.constant 0 : index
      %198 = vector.load %arg22[%c0_82, %c0_83] : memref<5x128xf32, #tpu.memory_space<vmem>>, vector<5x128xf32>
      tpu.vector_store %arg22[%c0_82, %c0_83], %197 {strides = array<i32>} : memref<5x128xf32, #tpu.memory_space<vmem>>, vector<5x128xf32>,
    } else {
    }
    %c0 = arith.constant 0 : index
    %c0_1 = arith.constant 0 : index
    %3 = vector.load %arg22[%c0, %c0_1] : memref<5x128xf32, #tpu.memory_space<vmem>>, vector<5x128xf32>
    %c0_2 = arith.constant 0 : index
    %c0_3 = arith.constant 0 : index
    %c0_4 = arith.constant 0 : index
    %4 = vector.load %arg4[%c0_2, %c0_3, %c0_4] : memref<1x1x5xf32, #tpu.memory_space<vmem>>, vector<1x1x5xf32>
    %5 = vector.shape_cast %4 : vector<1x1x5xf32> to vector<1x5xf32>
    %c0_5 = arith.constant 0 : index
    %c0_6 = arith.constant 0 : index
    %c0_7 = arith.constant 0 : index
    %6 = vector.load %arg5[%c0_5, %c0_6, %c0_7] : memref<1x1x128xf32, #tpu.memory_space<vmem>>, vector<1x1x128xf32>
    %7 = vector.shape_cast %6 : vector<1x1x128xf32> to vector<1x128xf32>
    %c0_8 = arith.constant 0 : index
    %c0_9 = arith.constant 0 : index
    %c0_10 = arith.constant 0 : index
    %8 = vector.load %arg6[%c0_8, %c0_9, %c0_10] : memref<1x1x128xf32, #tpu.memory_space<vmem>>, vector<1x1x128xf32>
    %9 = vector.shape_cast %8 : vector<1x1x128xf32> to vector<1x128xf32>
    %cst = arith.constant dense<0.000000e+00> : vector<5xf32>
    %10 = vector.multi_reduction <add>, %3, %cst [1] : vector<5x128xf32> to vector<5xf32>
    %11 = vector.shape_cast %10 : vector<5xf32> to vector<5x1xf32>
    %cst_11 = arith.constant 1.280000e+02 : f32
    %12 = vector.broadcast %cst_11 : f32 to vector<5x1xf32>
    %13 = arith.divf %11, %12 : vector<5x1xf32>
    %14 = vector.broadcast %13 : vector<5x1xf32> to vector<5x128xf32>
    %15 = arith.subf %3, %14 : vector<5x128xf32>
    %16 = arith.mulf %15, %15 : vector<5x128xf32>
    %cst_12 = arith.constant dense<0.000000e+00> : vector<5xf32>
    %17 = vector.multi_reduction <add>, %16, %cst_12 [1] : vector<5x128xf32> to vector<5xf32>
    %18 = vector.shape_cast %17 : vector<5xf32> to vector<5x1xf32>
    %cst_13 = arith.constant 1.280000e+02 : f32
    %19 = vector.broadcast %cst_13 : f32 to vector<5x1xf32>
    %20 = arith.divf %18, %19 : vector<5x1xf32>
    %21 = vector.broadcast %13 : vector<5x1xf32> to vector<5x128xf32>
    %22 = arith.subf %3, %21 : vector<5x128xf32>
    %cst_14 = arith.constant 9.99999974E-6 : f32
    %23 = vector.broadcast %cst_14 : f32 to vector<5x1xf32>
    %24 = arith.addf %20, %23 : vector<5x1xf32>
    %25 = math.rsqrt %24 : vector<5x1xf32>
    %26 = vector.broadcast %25 : vector<5x1xf32> to vector<5x128xf32>
    %27 = arith.mulf %22, %26 : vector<5x128xf32>
    %28 = vector.broadcast %7 : vector<1x128xf32> to vector<5x128xf32>
    %29 = arith.mulf %27, %28 : vector<5x128xf32>
    %30 = vector.broadcast %9 : vector<1x128xf32> to vector<5x128xf32>
    %31 = arith.addf %29, %30 : vector<5x128xf32>
    %c0_15 = arith.constant 0 : index
    %c0_16 = arith.constant 0 : index
    %c0_17 = arith.constant 0 : index
    %32 = vector.load %arg7[%c0_15, %c0_16, %c0_17] : memref<1x384x128xbf16, #tpu.memory_space<vmem>>, vector<1x384x128xbf16>
    %33 = vector.shape_cast %32 : vector<1x384x128xbf16> to vector<384x128xbf16>
    %c0_18 = arith.constant 0 : index
    %c0_19 = arith.constant 0 : index
    %c0_20 = arith.constant 0 : index
    %34 = vector.load %arg8[%c0_18, %c0_19, %c0_20] : memref<1x1x384xf32, #tpu.memory_space<vmem>>, vector<1x1x384xf32>
    %35 = vector.shape_cast %34 : vector<1x1x384xf32> to vector<1x384xf32>
    %36 = arith.truncf %31 : vector<5x128xf32> to vector<5x128xbf16>
    %cst_21 = arith.constant dense<0.000000e+00> : vector<5x384xf32>
    %37 = tpu.matmul %36, %33, %cst_21 {dimension_numbers = #tpu.dot_dimension_numbers<[1], [1], [0], [0], [0, 0, 1, 0], [], []>} : vector<5x128xbf16>, vector<384x128xbf16>, vector<5x384xf32> -> vector<5x384xf32>
    %38 = vector.broadcast %35 : vector<1x384xf32> to vector<5x384xf32>
    %39 = arith.addf %37, %38 : vector<5x384xf32>
    %40 = vector.extract_strided_slice %39 {offsets = [0, 0], sizes = [5, 128], strides = [1, 1]} : vector<5x384xf32> to vector<5x128xf32>
    %cst_22 = arith.constant 0.176776692 : f32
    %41 = vector.broadcast %cst_22 : f32 to vector<5x128xf32>
    %42 = arith.mulf %40, %41 : vector<5x128xf32>
    %43 = vector.extract_strided_slice %39 {offsets = [0, 128], sizes = [5, 128], strides = [1, 1]} : vector<5x384xf32> to vector<5x128xf32>
    %44 = vector.extract_strided_slice %39 {offsets = [0, 256], sizes = [5, 128], strides = [1, 1]} : vector<5x384xf32> to vector<5x128xf32>
    %45 = vector.extract_strided_slice %42 {offsets = [0, 0], sizes = [5, 32], strides = [1, 1]} : vector<5x128xf32> to vector<5x32xf32>
    %46 = arith.truncf %45 : vector<5x32xf32> to vector<5x32xbf16>
    %47 = vector.extract_strided_slice %43 {offsets = [0, 0], sizes = [5, 32], strides = [1, 1]} : vector<5x128xf32> to vector<5x32xf32>
    %48 = arith.truncf %47 : vector<5x32xf32> to vector<5x32xbf16>
    %49 = vector.extract_strided_slice %44 {offsets = [0, 0], sizes = [5, 32], strides = [1, 1]} : vector<5x128xf32> to vector<5x32xf32>
    %50 = arith.truncf %49 : vector<5x32xf32> to vector<5x32xbf16>
    %cst_23 = arith.constant dense<0.000000e+00> : vector<5x5xf32>
    %51 = tpu.matmul %46, %48, %cst_23 {dimension_numbers = #tpu.dot_dimension_numbers<[1], [1], [0], [0], [0, 0, 1, 0], [], []>} : vector<5x32xbf16>, vector<5x32xbf16>, vector<5x5xf32> -> vector<5x5xf32>
    %52 = vector.broadcast %5 : vector<1x5xf32> to vector<5x5xf32>
    %53 = arith.addf %51, %52 : vector<5x5xf32>
    %cst_24 = arith.constant dense<0xFF800000> : vector<5xf32>
    %54 = vector.multi_reduction <maximumf>, %53, %cst_24 [1] : vector<5x5xf32> to vector<5xf32>
    %55 = vector.shape_cast %54 : vector<5xf32> to vector<5x1xf32>
    %56 = vector.broadcast %55 : vector<5x1xf32> to vector<5x5xf32>
    %57 = arith.subf %53, %56 : vector<5x5xf32>
    %58 = math.exp %57 : vector<5x5xf32>
    %cst_25 = arith.constant dense<0.000000e+00> : vector<5xf32>
    %59 = vector.multi_reduction <add>, %58, %cst_25 [1] : vector<5x5xf32> to vector<5xf32>
    %60 = vector.shape_cast %59 : vector<5xf32> to vector<5x1xf32>
    %61 = tpu.reciprocal %60 {approx = true} : vector<5x1xf32> -> vector<5x1xf32>
    %62 = vector.broadcast %61 : vector<5x1xf32> to vector<5x5xf32>
    %63 = arith.mulf %58, %62 : vector<5x5xf32>
    %64 = arith.truncf %63 : vector<5x5xf32> to vector<5x5xbf16>
    %cst_26 = arith.constant dense<0.000000e+00> : vector<5x32xf32>
    %65 = tpu.matmul %64, %50, %cst_26 {dimension_numbers = #tpu.dot_dimension_numbers<[1], [0], [0], [1], [0, 0, 1, 1], [], []>} : vector<5x5xbf16>, vector<5x32xbf16>, vector<5x32xf32> -> vector<5x32xf32>
    %66 = vector.extract_strided_slice %42 {offsets = [0, 32], sizes = [5, 32], strides = [1, 1]} : vector<5x128xf32> to vector<5x32xf32>
    %67 = arith.truncf %66 : vector<5x32xf32> to vector<5x32xbf16>
    %68 = vector.extract_strided_slice %43 {offsets = [0, 32], sizes = [5, 32], strides = [1, 1]} : vector<5x128xf32> to vector<5x32xf32>
    %69 = arith.truncf %68 : vector<5x32xf32> to vector<5x32xbf16>
    %70 = vector.extract_strided_slice %44 {offsets = [0, 32], sizes = [5, 32], strides = [1, 1]} : vector<5x128xf32> to vector<5x32xf32>
    %71 = arith.truncf %70 : vector<5x32xf32> to vector<5x32xbf16>
    %cst_27 = arith.constant dense<0.000000e+00> : vector<5x5xf32>
    %72 = tpu.matmul %67, %69, %cst_27 {dimension_numbers = #tpu.dot_dimension_numbers<[1], [1], [0], [0], [0, 0, 1, 0], [], []>} : vector<5x32xbf16>, vector<5x32xbf16>, vector<5x5xf32> -> vector<5x5xf32>
    %73 = vector.broadcast %5 : vector<1x5xf32> to vector<5x5xf32>
    %74 = arith.addf %72, %73 : vector<5x5xf32>
    %cst_28 = arith.constant dense<0xFF800000> : vector<5xf32>
    %75 = vector.multi_reduction <maximumf>, %74, %cst_28 [1] : vector<5x5xf32> to vector<5xf32>
    %76 = vector.shape_cast %75 : vector<5xf32> to vector<5x1xf32>
    %77 = vector.broadcast %76 : vector<5x1xf32> to vector<5x5xf32>
    %78 = arith.subf %74, %77 : vector<5x5xf32>
    %79 = math.exp %78 : vector<5x5xf32>
    %cst_29 = arith.constant dense<0.000000e+00> : vector<5xf32>
    %80 = vector.multi_reduction <add>, %79, %cst_29 [1] : vector<5x5xf32> to vector<5xf32>
    %81 = vector.shape_cast %80 : vector<5xf32> to vector<5x1xf32>
    %82 = tpu.reciprocal %81 {approx = true} : vector<5x1xf32> -> vector<5x1xf32>
    %83 = vector.broadcast %82 : vector<5x1xf32> to vector<5x5xf32>
    %84 = arith.mulf %79, %83 : vector<5x5xf32>
    %85 = arith.truncf %84 : vector<5x5xf32> to vector<5x5xbf16>
    %cst_30 = arith.constant dense<0.000000e+00> : vector<5x32xf32>
    %86 = tpu.matmul %85, %71, %cst_30 {dimension_numbers = #tpu.dot_dimension_numbers<[1], [0], [0], [1], [0, 0, 1, 1], [], []>} : vector<5x5xbf16>, vector<5x32xbf16>, vector<5x32xf32> -> vector<5x32xf32>
    %87 = vector.extract_strided_slice %42 {offsets = [0, 64], sizes = [5, 32], strides = [1, 1]} : vector<5x128xf32> to vector<5x32xf32>
    %88 = arith.truncf %87 : vector<5x32xf32> to vector<5x32xbf16>
    %89 = vector.extract_strided_slice %43 {offsets = [0, 64], sizes = [5, 32], strides = [1, 1]} : vector<5x128xf32> to vector<5x32xf32>
    %90 = arith.truncf %89 : vector<5x32xf32> to vector<5x32xbf16>
    %91 = vector.extract_strided_slice %44 {offsets = [0, 64], sizes = [5, 32], strides = [1, 1]} : vector<5x128xf32> to vector<5x32xf32>
    %92 = arith.truncf %91 : vector<5x32xf32> to vector<5x32xbf16>
    %cst_31 = arith.constant dense<0.000000e+00> : vector<5x5xf32>
    %93 = tpu.matmul %88, %90, %cst_31 {dimension_numbers = #tpu.dot_dimension_numbers<[1], [1], [0], [0], [0, 0, 1, 0], [], []>} : vector<5x32xbf16>, vector<5x32xbf16>, vector<5x5xf32> -> vector<5x5xf32>
    %94 = vector.broadcast %5 : vector<1x5xf32> to vector<5x5xf32>
    %95 = arith.addf %93, %94 : vector<5x5xf32>
    %cst_32 = arith.constant dense<0xFF800000> : vector<5xf32>
    %96 = vector.multi_reduction <maximumf>, %95, %cst_32 [1] : vector<5x5xf32> to vector<5xf32>
    %97 = vector.shape_cast %96 : vector<5xf32> to vector<5x1xf32>
    %98 = vector.broadcast %97 : vector<5x1xf32> to vector<5x5xf32>
    %99 = arith.subf %95, %98 : vector<5x5xf32>
    %100 = math.exp %99 : vector<5x5xf32>
    %cst_33 = arith.constant dense<0.000000e+00> : vector<5xf32>
    %101 = vector.multi_reduction <add>, %100, %cst_33 [1] : vector<5x5xf32> to vector<5xf32>
    %102 = vector.shape_cast %101 : vector<5xf32> to vector<5x1xf32>
    %103 = tpu.reciprocal %102 {approx = true} : vector<5x1xf32> -> vector<5x1xf32>
    %104 = vector.broadcast %103 : vector<5x1xf32> to vector<5x5xf32>
    %105 = arith.mulf %100, %104 : vector<5x5xf32>
    %106 = arith.truncf %105 : vector<5x5xf32> to vector<5x5xbf16>
    %cst_34 = arith.constant dense<0.000000e+00> : vector<5x32xf32>
    %107 = tpu.matmul %106, %92, %cst_34 {dimension_numbers = #tpu.dot_dimension_numbers<[1], [0], [0], [1], [0, 0, 1, 1], [], []>} : vector<5x5xbf16>, vector<5x32xbf16>, vector<5x32xf32> -> vector<5x32xf32>
    %108 = vector.extract_strided_slice %42 {offsets = [0, 96], sizes = [5, 32], strides = [1, 1]} : vector<5x128xf32> to vector<5x32xf32>
    %109 = arith.truncf %108 : vector<5x32xf32> to vector<5x32xbf16>
    %110 = vector.extract_strided_slice %43 {offsets = [0, 96], sizes = [5, 32], strides = [1, 1]} : vector<5x128xf32> to vector<5x32xf32>
    %111 = arith.truncf %110 : vector<5x32xf32> to vector<5x32xbf16>
    %112 = vector.extract_strided_slice %44 {offsets = [0, 96], sizes = [5, 32], strides = [1, 1]} : vector<5x128xf32> to vector<5x32xf32>
    %113 = arith.truncf %112 : vector<5x32xf32> to vector<5x32xbf16>
    %cst_35 = arith.constant dense<0.000000e+00> : vector<5x5xf32>
    %114 = tpu.matmul %109, %111, %cst_35 {dimension_numbers = #tpu.dot_dimension_numbers<[1], [1], [0], [0], [0, 0, 1, 0], [], []>} : vector<5x32xbf16>, vector<5x32xbf16>, vector<5x5xf32> -> vector<5x5xf32>
    %115 = vector.broadcast %5 : vector<1x5xf32> to vector<5x5xf32>
    %116 = arith.addf %114, %115 : vector<5x5xf32>
    %cst_36 = arith.constant dense<0xFF800000> : vector<5xf32>
    %117 = vector.multi_reduction <maximumf>, %116, %cst_36 [1] : vector<5x5xf32> to vector<5xf32>
    %118 = vector.shape_cast %117 : vector<5xf32> to vector<5x1xf32>
    %119 = vector.broadcast %118 : vector<5x1xf32> to vector<5x5xf32>
    %120 = arith.subf %116, %119 : vector<5x5xf32>
    %121 = math.exp %120 : vector<5x5xf32>
    %cst_37 = arith.constant dense<0.000000e+00> : vector<5xf32>
    %122 = vector.multi_reduction <add>, %121, %cst_37 [1] : vector<5x5xf32> to vector<5xf32>
    %123 = vector.shape_cast %122 : vector<5xf32> to vector<5x1xf32>
    %124 = tpu.reciprocal %123 {approx = true} : vector<5x1xf32> -> vector<5x1xf32>
    %125 = vector.broadcast %124 : vector<5x1xf32> to vector<5x5xf32>
    %126 = arith.mulf %121, %125 : vector<5x5xf32>
    %127 = arith.truncf %126 : vector<5x5xf32> to vector<5x5xbf16>
    %cst_38 = arith.constant dense<0.000000e+00> : vector<5x32xf32>
    %128 = tpu.matmul %127, %113, %cst_38 {dimension_numbers = #tpu.dot_dimension_numbers<[1], [0], [0], [1], [0, 0, 1, 1], [], []>} : vector<5x5xbf16>, vector<5x32xbf16>, vector<5x32xf32> -> vector<5x32xf32>
    %129 = tpu.concatenate %65, %86, %107, %128 in 1 : vector<5x32xf32>, vector<5x32xf32>, vector<5x32xf32>, vector<5x32xf32> -> vector<5x128xf32>
    %c0_39 = arith.constant 0 : index
    %c0_40 = arith.constant 0 : index
    %c0_41 = arith.constant 0 : index
    %130 = vector.load %arg9[%c0_39, %c0_40, %c0_41] : memref<1x128x128xbf16, #tpu.memory_space<vmem>>, vector<1x128x128xbf16>
    %131 = vector.shape_cast %130 : vector<1x128x128xbf16> to vector<128x128xbf16>
    %c0_42 = arith.constant 0 : index
    %c0_43 = arith.constant 0 : index
    %c0_44 = arith.constant 0 : index
    %132 = vector.load %arg10[%c0_42, %c0_43, %c0_44] : memref<1x1x128xf32, #tpu.memory_space<vmem>>, vector<1x1x128xf32>
    %133 = vector.shape_cast %132 : vector<1x1x128xf32> to vector<1x128xf32>
    %134 = arith.truncf %129 : vector<5x128xf32> to vector<5x128xbf16>
    %cst_45 = arith.constant dense<0.000000e+00> : vector<5x128xf32>
    %135 = tpu.matmul %134, %131, %cst_45 {dimension_numbers = #tpu.dot_dimension_numbers<[1], [1], [0], [0], [0, 0, 1, 0], [], []>} : vector<5x128xbf16>, vector<128x128xbf16>, vector<5x128xf32> -> vector<5x128xf32>
    %136 = vector.broadcast %133 : vector<1x128xf32> to vector<5x128xf32>
    %137 = arith.addf %135, %136 : vector<5x128xf32>
    %138 = arith.addf %3, %137 : vector<5x128xf32>
    %c0_46 = arith.constant 0 : index
    %c0_47 = arith.constant 0 : index
    %c0_48 = arith.constant 0 : index
    %139 = vector.load %arg11[%c0_46, %c0_47, %c0_48] : memref<1x1x128xf32, #tpu.memory_space<vmem>>, vector<1x1x128xf32>
    %140 = vector.shape_cast %139 : vector<1x1x128xf32> to vector<1x128xf32>
    %c0_49 = arith.constant 0 : index
    %c0_50 = arith.constant 0 : index
    %c0_51 = arith.constant 0 : index
    %141 = vector.load %arg12[%c0_49, %c0_50, %c0_51] : memref<1x1x128xf32, #tpu.memory_space<vmem>>, vector<1x1x128xf32>
    %142 = vector.shape_cast %141 : vector<1x1x128xf32> to vector<1x128xf32>
    %cst_52 = arith.constant dense<0.000000e+00> : vector<5xf32>
    %143 = vector.multi_reduction <add>, %138, %cst_52 [1] : vector<5x128xf32> to vector<5xf32>
    %144 = vector.shape_cast %143 : vector<5xf32> to vector<5x1xf32>
    %cst_53 = arith.constant 1.280000e+02 : f32
    %145 = vector.broadcast %cst_53 : f32 to vector<5x1xf32>
    %146 = arith.divf %144, %145 : vector<5x1xf32>
    %147 = vector.broadcast %146 : vector<5x1xf32> to vector<5x128xf32>
    %148 = arith.subf %138, %147 : vector<5x128xf32>
    %149 = arith.mulf %148, %148 : vector<5x128xf32>
    %cst_54 = arith.constant dense<0.000000e+00> : vector<5xf32>
    %150 = vector.multi_reduction <add>, %149, %cst_54 [1] : vector<5x128xf32> to vector<5xf32>
    %151 = vector.shape_cast %150 : vector<5xf32> to vector<5x1xf32>
    %cst_55 = arith.constant 1.280000e+02 : f32
    %152 = vector.broadcast %cst_55 : f32 to vector<5x1xf32>
    %153 = arith.divf %151, %152 : vector<5x1xf32>
    %154 = vector.broadcast %146 : vector<5x1xf32> to vector<5x128xf32>
    %155 = arith.subf %138, %154 : vector<5x128xf32>
    %cst_56 = arith.constant 9.99999974E-6 : f32
    %156 = vector.broadcast %cst_56 : f32 to vector<5x1xf32>
    %157 = arith.addf %153, %156 : vector<5x1xf32>
    %158 = math.rsqrt %157 : vector<5x1xf32>
    %159 = vector.broadcast %158 : vector<5x1xf32> to vector<5x128xf32>
    %160 = arith.mulf %155, %159 : vector<5x128xf32>
    %161 = vector.broadcast %140 : vector<1x128xf32> to vector<5x128xf32>
    %162 = arith.mulf %160, %161 : vector<5x128xf32>
    %163 = vector.broadcast %142 : vector<1x128xf32> to vector<5x128xf32>
    %164 = arith.addf %162, %163 : vector<5x128xf32>
    %c0_57 = arith.constant 0 : index
    %c0_58 = arith.constant 0 : index
    %c0_59 = arith.constant 0 : index
    %165 = vector.load %arg13[%c0_57, %c0_58, %c0_59] : memref<1x256x128xbf16, #tpu.memory_space<vmem>>, vector<1x256x128xbf16>
    %166 = vector.shape_cast %165 : vector<1x256x128xbf16> to vector<256x128xbf16>
    %c0_60 = arith.constant 0 : index
    %c0_61 = arith.constant 0 : index
    %c0_62 = arith.constant 0 : index
    %167 = vector.load %arg14[%c0_60, %c0_61, %c0_62] : memref<1x1x256xf32, #tpu.memory_space<vmem>>, vector<1x1x256xf32>
    %168 = vector.shape_cast %167 : vector<1x1x256xf32> to vector<1x256xf32>
    %169 = arith.truncf %164 : vector<5x128xf32> to vector<5x128xbf16>
    %cst_63 = arith.constant dense<0.000000e+00> : vector<5x256xf32>
    %170 = tpu.matmul %169, %166, %cst_63 {dimension_numbers = #tpu.dot_dimension_numbers<[1], [1], [0], [0], [0, 0, 1, 0], [], []>} : vector<5x128xbf16>, vector<256x128xbf16>, vector<5x256xf32> -> vector<5x256xf32>
    %171 = vector.broadcast %168 : vector<1x256xf32> to vector<5x256xf32>
    %172 = arith.addf %170, %171 : vector<5x256xf32>
    %cst_64 = arith.constant 5.000000e-01 : f32
    %173 = vector.broadcast %cst_64 : f32 to vector<5x256xf32>
    %174 = arith.mulf %173, %172 : vector<5x256xf32>
    %cst_65 = arith.constant 0.707106769 : f32
    %175 = vector.broadcast %cst_65 : f32 to vector<5x256xf32>
    %176 = arith.mulf %172, %175 : vector<5x256xf32>
    %177 = math.erf %176 : vector<5x256xf32>
    %cst_66 = arith.constant 1.000000e+00 : f32
    %178 = vector.broadcast %cst_66 : f32 to vector<5x256xf32>
    %179 = arith.addf %178, %177 : vector<5x256xf32>
    %180 = arith.mulf %174, %179 : vector<5x256xf32>
    %c0_67 = arith.constant 0 : index
    %c0_68 = arith.constant 0 : index
    %c0_69 = arith.constant 0 : index
    %181 = vector.load %arg15[%c0_67, %c0_68, %c0_69] : memref<1x128x256xbf16, #tpu.memory_space<vmem>>, vector<1x128x256xbf16>
    %182 = vector.shape_cast %181 : vector<1x128x256xbf16> to vector<128x256xbf16>
    %c0_70 = arith.constant 0 : index
    %c0_71 = arith.constant 0 : index
    %c0_72 = arith.constant 0 : index
    %183 = vector.load %arg16[%c0_70, %c0_71, %c0_72] : memref<1x1x128xf32, #tpu.memory_space<vmem>>, vector<1x1x128xf32>
    %184 = vector.shape_cast %183 : vector<1x1x128xf32> to vector<1x128xf32>
    %185 = arith.truncf %180 : vector<5x256xf32> to vector<5x256xbf16>
    %cst_73 = arith.constant dense<0.000000e+00> : vector<5x128xf32>
    %186 = tpu.matmul %185, %182, %cst_73 {dimension_numbers = #tpu.dot_dimension_numbers<[1], [1], [0], [0], [0, 0, 1, 0], [], []>} : vector<5x256xbf16>, vector<128x256xbf16>, vector<5x128xf32> -> vector<5x128xf32>
    %187 = vector.broadcast %184 : vector<1x128xf32> to vector<5x128xf32>
    %188 = arith.addf %186, %187 : vector<5x128xf32>
    %189 = arith.addf %138, %188 : vector<5x128xf32>
    %c0_74 = arith.constant 0 : index
    %c0_75 = arith.constant 0 : index
    %190 = vector.load %arg22[%c0_74, %c0_75] : memref<5x128xf32, #tpu.memory_space<vmem>>, vector<5x128xf32>
    tpu.vector_store %arg22[%c0_74, %c0_75], %189 {strides = array<i32>} : memref<5x128xf32, #tpu.memory_space<vmem>>, vector<5x128xf32>,
    %c1_i32 = arith.constant 1 : i32
    %191 = arith.cmpi eq, %arg1, %c1_i32 : i32
    %192 = arith.extui %191 : i1 to i32
    %c0_i32_76 = arith.constant 0 : i32
    %193 = arith.cmpi ne, %192, %c0_i32_76 : i32
    scf.if %193 {
      %c0_77 = arith.constant 0 : index
      %c0_78 = arith.constant 0 : index
      %194 = vector.load %arg17[%c0_77, %c0_78] : memref<1x128xf32, #tpu.memory_space<vmem>>, vector<1x128xf32>
      %c0_79 = arith.constant 0 : index
      %c0_80 = arith.constant 0 : index
      %195 = vector.load %arg18[%c0_79, %c0_80] : memref<1x128xf32, #tpu.memory_space<vmem>>, vector<1x128xf32>
      %cst_81 = arith.constant dense<0.000000e+00> : vector<5xf32>
      %196 = vector.multi_reduction <add>, %189, %cst_81 [1] : vector<5x128xf32> to vector<5xf32>
      %197 = vector.shape_cast %196 : vector<5xf32> to vector<5x1xf32>
      %cst_82 = arith.constant 1.280000e+02 : f32
      %198 = vector.broadcast %cst_82 : f32 to vector<5x1xf32>
      %199 = arith.divf %197, %198 : vector<5x1xf32>
      %200 = vector.broadcast %199 : vector<5x1xf32> to vector<5x128xf32>
      %201 = arith.subf %189, %200 : vector<5x128xf32>
      %202 = arith.mulf %201, %201 : vector<5x128xf32>
      %cst_83 = arith.constant dense<0.000000e+00> : vector<5xf32>
      %203 = vector.multi_reduction <add>, %202, %cst_83 [1] : vector<5x128xf32> to vector<5xf32>
      %204 = vector.shape_cast %203 : vector<5xf32> to vector<5x1xf32>
      %cst_84 = arith.constant 1.280000e+02 : f32
      %205 = vector.broadcast %cst_84 : f32 to vector<5x1xf32>
      %206 = arith.divf %204, %205 : vector<5x1xf32>
      %207 = vector.broadcast %199 : vector<5x1xf32> to vector<5x128xf32>
      %208 = arith.subf %189, %207 : vector<5x128xf32>
      %cst_85 = arith.constant 9.99999974E-6 : f32
      %209 = vector.broadcast %cst_85 : f32 to vector<5x1xf32>
      %210 = arith.addf %206, %209 : vector<5x1xf32>
      %211 = math.rsqrt %210 : vector<5x1xf32>
      %212 = vector.broadcast %211 : vector<5x1xf32> to vector<5x128xf32>
      %213 = arith.mulf %208, %212 : vector<5x128xf32>
      %214 = vector.broadcast %194 : vector<1x128xf32> to vector<5x128xf32>
      %215 = arith.mulf %213, %214 : vector<5x128xf32>
      %216 = vector.broadcast %195 : vector<1x128xf32> to vector<5x128xf32>
      %217 = arith.addf %215, %216 : vector<5x128xf32>
      %c0_86 = arith.constant 0 : index
      %c0_87 = arith.constant 0 : index
      %c0_88 = arith.constant 0 : index
      %218 = vector.load %arg20[%c0_86, %c0_87, %c0_88] : memref<1x5x128xf32, #tpu.memory_space<vmem>>, vector<1x5x128xf32>
      %219 = vector.shape_cast %218 : vector<1x5x128xf32> to vector<5x128xf32>
      %220 = vector.shape_cast %217 : vector<5x128xf32> to vector<1x5x128xf32>
      tpu.vector_store %arg20[%c0_86, %c0_87, %c0_88], %220 {strides = array<i32>} : memref<1x5x128xf32, #tpu.memory_space<vmem>>, vector<1x5x128xf32>,
      %221 = vector.extract_strided_slice %217 {offsets = [0, 0], sizes = [1, 128], strides = [1, 1]} : vector<5x128xf32> to vector<1x128xf32>
      %222 = arith.truncf %221 : vector<1x128xf32> to vector<1x128xbf16>
      %c0_89 = arith.constant 0 : index
      %c0_90 = arith.constant 0 : index
      %223 = vector.load %arg19[%c0_89, %c0_90] : memref<128x128xbf16, #tpu.memory_space<vmem>>, vector<128x128xbf16>
      %cst_91 = arith.constant dense<0.000000e+00> : vector<1x128xf32>
      %224 = tpu.matmul %222, %223, %cst_91 {dimension_numbers = #tpu.dot_dimension_numbers<[1], [1], [0], [0], [0, 0, 1, 0], [], []>} : vector<1x128xbf16>, vector<128x128xbf16>, vector<1x128xf32> -> vector<1x128xf32>
      %225 = arith.mulf %224, %224 : vector<1x128xf32>
      %cst_92 = arith.constant dense<0.000000e+00> : vector<1xf32>
      %226 = vector.multi_reduction <add>, %225, %cst_92 [1] : vector<1x128xf32> to vector<1xf32>
      %227 = vector.shape_cast %226 : vector<1xf32> to vector<1x1xf32>
      %cst_93 = arith.constant 1.000000e-24 : f32
      %228 = vector.broadcast %cst_93 : f32 to vector<1x1xf32>
      %229 = arith.maximumf %227, %228 : vector<1x1xf32>
      %230 = math.rsqrt %229 : vector<1x1xf32>
      %231 = vector.broadcast %230 : vector<1x1xf32> to vector<1x128xf32>
      %232 = arith.mulf %224, %231 : vector<1x128xf32>
      %c0_94 = arith.constant 0 : index
      %c0_95 = arith.constant 0 : index
      %c0_96 = arith.constant 0 : index
      %233 = vector.load %arg21[%c0_94, %c0_95, %c0_96] : memref<1x1x128xf32, #tpu.memory_space<vmem>>, vector<1x1x128xf32>
      %234 = vector.shape_cast %233 : vector<1x1x128xf32> to vector<1x128xf32>
      %235 = vector.shape_cast %232 : vector<1x128xf32> to vector<1x1x128xf32>
      tpu.vector_store %arg21[%c0_94, %c0_95, %c0_96], %235 {strides = array<i32>} : memref<1x1x128xf32, #tpu.memory_space<vmem>>, vector<1x1x128xf32>,
    } else {
    }
    return
  }
  func.func @transform_0(%arg0: i32, %arg1: i32) -> (i32, i32, i32) {
    %c0_i32 = arith.constant 0 : i32
    %c0_i32_0 = arith.constant 0 : i32
    %c0_i32_1 = arith.constant 0 : i32
    return %arg0, %c0_i32, %c0_i32_0 : i32, i32, i32
  }
  func.func @transform_1(%arg0: i32, %arg1: i32) -> (i32, i32) {
    %c0_i32 = arith.constant 0 : i32
    %c0_i32_0 = arith.constant 0 : i32
    %c0_i32_1 = arith.constant 0 : i32
    return %c0_i32, %c0_i32_0 : i32, i32
  }
  func.func @transform_2(%arg0: i32, %arg1: i32) -> (i32, i32, i32) {
    %c0_i32 = arith.constant 0 : i32
    %c0_i32_0 = arith.constant 0 : i32
    %c0_i32_1 = arith.constant 0 : i32
    return %arg0, %c0_i32, %c0_i32_0 : i32, i32, i32
  }
  func.func @transform_3(%arg0: i32, %arg1: i32) -> (i32, i32, i32) {
    %c0_i32 = arith.constant 0 : i32
    %c0_i32_0 = arith.constant 0 : i32
    %c0_i32_1 = arith.constant 0 : i32
    return %arg1, %c0_i32, %c0_i32_0 : i32, i32, i32
  }
  func.func @transform_4(%arg0: i32, %arg1: i32) -> (i32, i32, i32) {
    %c0_i32 = arith.constant 0 : i32
    %c0_i32_0 = arith.constant 0 : i32
    %c0_i32_1 = arith.constant 0 : i32
    return %arg1, %c0_i32, %c0_i32_0 : i32, i32, i32
  }
  func.func @transform_5(%arg0: i32, %arg1: i32) -> (i32, i32, i32) {
    %c0_i32 = arith.constant 0 : i32
    %c0_i32_0 = arith.constant 0 : i32
    %c0_i32_1 = arith.constant 0 : i32
    return %arg1, %c0_i32, %c0_i32_0 : i32, i32, i32
  }
  func.func @transform_6(%arg0: i32, %arg1: i32) -> (i32, i32, i32) {
    %c0_i32 = arith.constant 0 : i32
    %c0_i32_0 = arith.constant 0 : i32
    %c0_i32_1 = arith.constant 0 : i32
    return %arg1, %c0_i32, %c0_i32_0 : i32, i32, i32
  }
  func.func @transform_7(%arg0: i32, %arg1: i32) -> (i32, i32, i32) {
    %c0_i32 = arith.constant 0 : i32
    %c0_i32_0 = arith.constant 0 : i32
    %c0_i32_1 = arith.constant 0 : i32
    return %arg1, %c0_i32, %c0_i32_0 : i32, i32, i32
  }
  func.func @transform_8(%arg0: i32, %arg1: i32) -> (i32, i32, i32) {
    %c0_i32 = arith.constant 0 : i32
    %c0_i32_0 = arith.constant 0 : i32
    %c0_i32_1 = arith.constant 0 : i32
    return %arg1, %c0_i32, %c0_i32_0 : i32, i32, i32
  }
  func.func @transform_9(%arg0: i32, %arg1: i32) -> (i32, i32, i32) {
    %c0_i32 = arith.constant 0 : i32
    %c0_i32_0 = arith.constant 0 : i32
    %c0_i32_1 = arith.constant 0 : i32
    return %arg1, %c0_i32, %c0_i32_0 : i32, i32, i32
  }
  func.func @transform_10(%arg0: i32, %arg1: i32) -> (i32, i32, i32) {
    %c0_i32 = arith.constant 0 : i32
    %c0_i32_0 = arith.constant 0 : i32
    %c0_i32_1 = arith.constant 0 : i32
    return %arg1, %c0_i32, %c0_i32_0 : i32, i32, i32
  }
  func.func @transform_11(%arg0: i32, %arg1: i32) -> (i32, i32, i32) {
    %c0_i32 = arith.constant 0 : i32
    %c0_i32_0 = arith.constant 0 : i32
    %c0_i32_1 = arith.constant 0 : i32
    return %arg1, %c0_i32, %c0_i32_0 : i32, i32, i32
  }
  func.func @transform_12(%arg0: i32, %arg1: i32) -> (i32, i32, i32) {
    %c0_i32 = arith.constant 0 : i32
    %c0_i32_0 = arith.constant 0 : i32
    %c0_i32_1 = arith.constant 0 : i32
    return %arg1, %c0_i32, %c0_i32_0 : i32, i32, i32
  }
  func.func @transform_13(%arg0: i32, %arg1: i32) -> (i32, i32, i32) {
    %c0_i32 = arith.constant 0 : i32
    %c0_i32_0 = arith.constant 0 : i32
    %c0_i32_1 = arith.constant 0 : i32
    return %arg1, %c0_i32, %c0_i32_0 : i32, i32, i32
  }
  func.func @transform_14(%arg0: i32, %arg1: i32) -> (i32, i32, i32) {
    %c0_i32 = arith.constant 0 : i32
    %c0_i32_0 = arith.constant 0 : i32
    %c0_i32_1 = arith.constant 0 : i32
    return %arg1, %c0_i32, %c0_i32_0 : i32, i32, i32
  }
  func.func @transform_15(%arg0: i32, %arg1: i32) -> (i32, i32) {
    %c0_i32 = arith.constant 0 : i32
    %c0_i32_0 = arith.constant 0 : i32
    %c0_i32_1 = arith.constant 0 : i32
    return %c0_i32, %c0_i32_0 : i32, i32
  }
  func.func @transform_16(%arg0: i32, %arg1: i32) -> (i32, i32) {
    %c0_i32 = arith.constant 0 : i32
    %c0_i32_0 = arith.constant 0 : i32
    %c0_i32_1 = arith.constant 0 : i32
    return %c0_i32, %c0_i32_0 : i32, i32
  }
  func.func @transform_17(%arg0: i32, %arg1: i32) -> (i32, i32) {
    %c0_i32 = arith.constant 0 : i32
    %c0_i32_0 = arith.constant 0 : i32
    %c0_i32_1 = arith.constant 0 : i32
    return %c0_i32, %c0_i32_0 : i32, i32
  }
  func.func @transform_18(%arg0: i32, %arg1: i32) -> (i32, i32, i32) {
    %c0_i32 = arith.constant 0 : i32
    %c0_i32_0 = arith.constant 0 : i32
    %c0_i32_1 = arith.constant 0 : i32
    return %arg0, %c0_i32, %c0_i32_0 : i32, i32, i32
  }
  func.func @transform_19(%arg0: i32, %arg1: i32) -> (i32, i32, i32) {
    %c0_i32 = arith.constant 0 : i32
    %c0_i32_0 = arith.constant 0 : i32
    %c0_i32_1 = arith.constant 0 : i32
    return %arg0, %c0_i32, %c0_i32_0 : i32, i32, i32
  }
}

</mosaic_0001>

<llo_original>
// kernel: _lambda_.3
$region0: #{_lambda_.3}
  #allocation0 [shape = 'u32[]', space=smem, size = 0x4, offset = 0x4, fixed_abs, tag = 'smem constant byte address 0x4 - core index']
  #allocation1 [shape = 'u32[72,128]{1,0:T(1,128)}', space=vmem, size = 0x9000, scoped, tag = 'internal scratch']
  %s0 = inlined_call_operand.vmem [shape: f32[8,192], index: 0, kind: input, shape index: {}]
  %s1 = inlined_call_operand.vmem [shape: bf16[128,192], index: 1, kind: input, shape index: {}]
  %s2 = inlined_call_operand.vmem [shape: f32[1,128], index: 2, kind: input, shape index: {}]
  %s3 = inlined_call_operand.vmem [shape: f32[8,128], index: 3, kind: output, shape index: {}]
  %s4 = sld [smem:[#allocation0]]
  $region22: #{_lambda_.3} parent=0
    _
  %s6 = ssub.s32 1, %s4
  %s7 = scalar_select 0, %s6, %s4
  // Predicated region
  $region2: #{_lambda_.3} parent=0 // pred_check
    _
  $region3: #{_lambda_.3} parent=0 // pred_check_branch
    %9 = sbr.rel (0) target = $region5
  $region4: #{_lambda_.3} parent=0 // pred_region
    _
  $region5: #{_lambda_.3} parent=0 // pred_fallthru
    _
  // Predicated region
  $region6: #{_lambda_.3} parent=0 // pred_check
    _
  $region7: #{_lambda_.3} parent=0 // pred_check_branch
    %11 = sbr.rel (0) target = $region9
  $region8: #{_lambda_.3} parent=0 // pred_region
    _
  $region9: #{_lambda_.3} parent=0 // pred_fallthru
    _
  // Predicated region
  $region10: #{_lambda_.3} parent=0 // pred_check
    _
  $region11: #{_lambda_.3} parent=0 // pred_check_branch
    %13 = sbr.rel (0) target = $region13
  $region12: #{_lambda_.3} parent=0 // pred_region
    _
  $region13: #{_lambda_.3} parent=0 // pred_fallthru
    _
  %v14 = vld [vmem:[%s0] sm:$0xff]
  %v15 = vld [vmem:[%s0 + $0x8] sm:$0xff]
  %v16 = vpack.c.bf16 %v14, %v14
  %v17 = vpack.c.bf16 %v15, %v15
  %v18 = vld [vmem:[%s1] sm:$0xff]
  %v19 = vld [vmem:[%s1 + $0x8] sm:$0xff]
  %v20 = vld [vmem:[%s1 + $0x10] sm:$0xff]
  %v21 = vld [vmem:[%s1 + $0x18] sm:$0xff]
  %v22 = vld [vmem:[%s1 + $0x20] sm:$0xff]
  %v23 = vld [vmem:[%s1 + $0x28] sm:$0xff]
  %v24 = vld [vmem:[%s1 + $0x30] sm:$0xff]
  %v25 = vld [vmem:[%s1 + $0x38] sm:$0xff]
  %v26 = vld [vmem:[%s1 + $0x40] sm:$0xff]
  %v27 = vld [vmem:[%s1 + $0x48] sm:$0xff]
  %v28 = vld [vmem:[%s1 + $0x50] sm:$0xff]
  %v29 = vld [vmem:[%s1 + $0x58] sm:$0xff]
  %v30 = vld [vmem:[%s1 + $0x60] sm:$0xff]
  %v31 = vld [vmem:[%s1 + $0x68] sm:$0xff]
  %v32 = vld [vmem:[%s1 + $0x70] sm:$0xff]
  %v33 = vld [vmem:[%s1 + $0x78] sm:$0xff]
  %v34 = vld [vmem:[%s2] sm:$0x1]
  %v36 = vperm.slane %v34, 0
  %v54 = vunpack.c.l.b16 %v18
  %v55 = vunpack.c.h.b16 %v18
  %v56 = vunpack.c.l.b16 %v19
  %v57 = vunpack.c.h.b16 %v19
  %v58 = vunpack.c.l.b16 %v20
  %v59 = vunpack.c.h.b16 %v20
  %v60 = vunpack.c.l.b16 %v21
  %v61 = vunpack.c.h.b16 %v21
  %v62 = vunpack.c.l.b16 %v22
  %v63 = vunpack.c.h.b16 %v22
  %v64 = vunpack.c.l.b16 %v23
  %v65 = vunpack.c.h.b16 %v23
  %v66 = vunpack.c.l.b16 %v24
  %v67 = vunpack.c.h.b16 %v24
  %v68 = vunpack.c.l.b16 %v25
  %v69 = vunpack.c.h.b16 %v25
  %v70 = vunpack.c.l.b16 %v26
  %v71 = vunpack.c.h.b16 %v26
  %v72 = vunpack.c.l.b16 %v27
  %v73 = vunpack.c.h.b16 %v27
  %v74 = vunpack.c.l.b16 %v28
  %v75 = vunpack.c.h.b16 %v28
  %v76 = vunpack.c.l.b16 %v29
  %v77 = vunpack.c.h.b16 %v29
  %v78 = vunpack.c.l.b16 %v30
  %v79 = vunpack.c.h.b16 %v30
  %v80 = vunpack.c.l.b16 %v31
  %v81 = vunpack.c.h.b16 %v31
  %v82 = vunpack.c.l.b16 %v32
  %v83 = vunpack.c.h.b16 %v32
  %v84 = vunpack.c.l.b16 %v33
  %v85 = vunpack.c.h.b16 %v33
  %v86 = vpack.c.b16 %v56, %v54
  %v87 = vpack.c.b16 %v57, %v55
  %v88 = vpack.c.b16 %v60, %v58
  %v89 = vpack.c.b16 %v61, %v59
  %v90 = vpack.c.b16 %v64, %v62
  %v91 = vpack.c.b16 %v65, %v63
  %v92 = vpack.c.b16 %v68, %v66
  %v93 = vpack.c.b16 %v69, %v67
  %v94 = vpack.c.b16 %v72, %v70
  %v95 = vpack.c.b16 %v73, %v71
  %v96 = vpack.c.b16 %v76, %v74
  %v97 = vpack.c.b16 %v77, %v75
  %v98 = vpack.c.b16 %v80, %v78
  %v99 = vpack.c.b16 %v81, %v79
  %v100 = vpack.c.b16 %v84, %v82
  %v101 = vpack.c.b16 %v85, %v83
  %vm110 = vcmask 523264
  %v112 = vsel %vm110, %v17, 0
  %v115 = vsel %vm110, %v87, 0
  %v118 = vsel %vm110, %v89, 0
  %v121 = vsel %vm110, %v91, 0
  %v124 = vsel %vm110, %v93, 0
  %v127 = vsel %vm110, %v95, 0
  %v130 = vsel %vm110, %v97, 0
  %v133 = vsel %vm110, %v99, 0
  %v136 = vsel %vm110, %v101, 0
  %138 = vmatpush.bf16.xpose.msra.mxu0 %v100
  %139 = vmatpush.bf16.xpose.msra.mxu0 %v98
  %140 = vmatpush.bf16.xpose.msra.mxu0 %v96
  %141 = vmatpush.bf16.xpose.msra.mxu0 %v94
  %142 = vmatpush.bf16.xpose.msra.mxu0 %v92
  %143 = vmatpush.bf16.xpose.msra.mxu0 %v90
  %144 = vmatpush.bf16.xpose.msra.mxu0 %v88
  %145 = vmatpush.bf16.xpose.msra.mxu0 %v86
  %146 = vmatmul.bf16.gmra.mxu0 %v16
  %v147 = vpop.f32.mrf.mxu0
  %v148 = vadd.f32 %v36, %v147
  %v149 = vpop.f32.mrf.mxu0
  %150 = vdwg.mxu0
  %151 = vmatpush.bf16.xpose.msra.mxu0 %v136
  %152 = vmatpush.bf16.xpose.msra.mxu0 %v133
  %153 = vmatpush.bf16.xpose.msra.mxu0 %v130
  %154 = vmatpush.bf16.xpose.msra.mxu0 %v127
  %155 = vmatpush.bf16.xpose.msra.mxu0 %v124
  %156 = vmatpush.bf16.xpose.msra.mxu0 %v121
  %157 = vmatpush.bf16.xpose.msra.mxu0 %v118
  %158 = vmatpush.bf16.xpose.msra.mxu0 %v115
  %159 = vmatmul.bf16.gmra.mxu0 %v112
  %v160 = vpop.f32.mrf.mxu0
  %v161 = vadd.f32 %v148, %v160
  %v162 = vpop.f32.mrf.mxu0
  %163 = vdwg.mxu0
  %164 = vst [vmem:[%s3] sm:$0xff] %v161
  // Predicated region
  $region14: #{_lambda_.3} parent=0 // pred_check
    _
  $region15: #{_lambda_.3} parent=0 // pred_check_branch
    %166 = sbr.rel (0) target = $region17
  $region16: #{_lambda_.3} parent=0 // pred_region
    _
  $region17: #{_lambda_.3} parent=0 // pred_fallthru
    _
  // Predicated region
  $region18: #{_lambda_.3} parent=0 // pred_check
    _
  $region19: #{_lambda_.3} parent=0 // pred_check_branch
    %168 = sbr.rel (0) target = $region21
  $region20: #{_lambda_.3} parent=0 // pred_region
    _
  $region21: #{_lambda_.3} parent=0 // pred_fallthru
    _

// kernel: _lambda_.5
$region0: #{_lambda_.5}
  #allocation0 [shape = 'u32[]', space=smem, size = 0x4, offset = 0x4, fixed_abs, tag = 'smem constant byte address 0x4 - core index']
  #allocation1 [shape = 'u32[72,128]{1,0:T(1,128)}', space=vmem, size = 0x9000, scoped, tag = 'internal scratch']
  #allocation2 [shape = 'f32[8,128]{1,0:T(8,128)}', space=vmem, size = 0x1000, scoped, tag = 'scratch operand']
  %s0 = inlined_call_operand.vmem [shape: f32[2,8,128], index: 0, kind: input, shape index: {}]
  %s1 = inlined_call_operand.vmem [shape: f32[8,128], index: 1, kind: input, shape index: {}]
  %s2 = inlined_call_operand.vmem [shape: f32[2,1,8], index: 2, kind: input, shape index: {}]
  %s3 = inlined_call_operand.vmem [shape: f32[2,1,128], index: 3, kind: input, shape index: {}]
  %s4 = inlined_call_operand.vmem [shape: f32[2,1,128], index: 4, kind: input, shape index: {}]
  %s5 = inlined_call_operand.vmem [shape: bf16[2,384,128], index: 5, kind: input, shape index: {}]
  %s6 = inlined_call_operand.vmem [shape: f32[2,1,384], index: 6, kind: input, shape index: {}]
  %s7 = inlined_call_operand.vmem [shape: bf16[2,128,128], index: 7, kind: input, shape index: {}]
  %s8 = inlined_call_operand.vmem [shape: f32[2,1,128], index: 8, kind: input, shape index: {}]
  %s9 = inlined_call_operand.vmem [shape: f32[2,1,128], index: 9, kind: input, shape index: {}]
  %s10 = inlined_call_operand.vmem [shape: f32[2,1,128], index: 10, kind: input, shape index: {}]
  %s11 = inlined_call_operand.hbm [shape: bf16[2,256,128], index: 11, kind: input, shape index: {}]
  %s12 = inlined_call_operand.vmem [shape: f32[2,1,256], index: 12, kind: input, shape index: {}]
  %s13 = inlined_call_operand.hbm [shape: bf16[2,128,256], index: 13, kind: input, shape index: {}]
  %s14 = inlined_call_operand.vmem [shape: f32[2,1,128], index: 14, kind: input, shape index: {}]
  %s15 = inlined_call_operand.vmem [shape: f32[1,128], index: 15, kind: input, shape index: {}]
  %s16 = inlined_call_operand.vmem [shape: f32[1,128], index: 16, kind: input, shape index: {}]
  %s17 = inlined_call_operand.vmem [shape: bf16[128,128], index: 17, kind: input, shape index: {}]
  %s18 = inlined_call_operand.hbm [shape: f32[2,8,128], index: 18, kind: output, shape index: {0}]
  %s19 = inlined_call_operand.hbm [shape: f32[2,1,128], index: 19, kind: output, shape index: {1}]
  %20 = xla_tuple %s18, %s19
  %s21 = sld [smem:[#allocation0]]
  $region129: #{_lambda_.5} parent=0
    _
  %s23 = ssub.s32 1, %s21
  %s24 = scalar_select 0, %s23, %s21
  $region1: #{_lambda_.5} parent=0
    #allocation3 [shape = 'u8[131072]{0}', space=vmem, size = 0x20000, scoped, tag = 'input window, operand 11']
    #allocation4 [shape = 's32[2]{0}', space=sflag, size = 0x8, scoped, tag = 'scoped memory for _lambda_.5']
    #allocation5 [shape = 's32[2]{0}', space=sflag, size = 0x8, scoped, tag = 'scoped memory for _lambda_.5']
    #allocation6 [shape = 'u8[131072]{0}', space=vmem, size = 0x20000, scoped, tag = 'input window, operand 13']
    #allocation7 [shape = 's32[2]{0}', space=sflag, size = 0x8, scoped, tag = 'scoped memory for _lambda_.5']
    #allocation8 [shape = 'u8[8192]{0}', space=vmem, size = 0x2000, scoped, tag = 'output window, operand 0']
    #allocation9 [shape = 'u8[1024]{0}', space=vmem, size = 0x400, scoped, tag = 'output window, operand 1']
    #allocation10 [shape = 's32[2]{0}', space=sflag, size = 0x8, scoped, tag = 'scoped memory for _lambda_.5']
    %25 = vsyncpa [#allocation4], 0
    %s26 = scalar_lea.sflag [#allocation4], 1
    %27 = vsyncpa %s26, 0
    %28 = vsyncpa [#allocation7], 0
    %s29 = scalar_lea.sflag [#allocation7], 1
    %30 = vsyncpa %s29, 0
    %31 = vsyncpa [#allocation5], 0
    %s32 = scalar_lea.sflag [#allocation5], 1
    %33 = vsyncpa %s32, 0
    %34 = vsyncpa [#allocation10], 0
    %s35 = scalar_lea.sflag [#allocation10], 1
    %36 = vsyncpa %s35, 0
    loop: start=0, step=1, limit=6
    $region2: #{_lambda_.5} parent=1 // loop_pre_header
      _
    $region3: #{_lambda_.5} parent=1 // loop_header
      %s38 = sphi 0, %s42
      %p39 = scmp.ge.s32.totalorder %s38, 6
      %s45 = sphi 0, %s57
      %s46 = sphi 0, %s53
      %s47 = sphi 0, %s45
      %s48 = sphi 0, %s46
      %s49 = sphi 0, %s47
      %s50 = sphi 0, %s48
      %s60 = sphi 0, %s62
      %s63 = sphi 0, %s60
      %s64 = sphi 0, %s63
      %s80 = sphi 0, %s64
      %s84 = sphi 0, %s84
      %s86 = sphi 0, %s84
      %s87 = sphi 0, %s86
      %s101 = sphi 0, %s87
      %s107 = sphi 0, %s109
      %s110 = sphi 0, %s107
      %s111 = sphi 0, %s110
      %s127 = sphi 0, %s111
      %s133 = sphi 0, %s135
      %s136 = sphi 0, %s133
      %s137 = sphi 0, %s136
      %s153 = sphi 0, %s137
      %s159 = sphi 0, %s161
      %s162 = sphi 0, %s159
      %s163 = sphi 0, %s162
      %s179 = sphi 0, %s163
      %s185 = sphi 0, %s187
      %s188 = sphi 0, %s185
      %s189 = sphi 0, %s188
      %s205 = sphi 0, %s189
      %s211 = sphi 0, %s213
      %s214 = sphi 0, %s211
      %s215 = sphi 0, %s214
      %s231 = sphi 0, %s215
      %s237 = sphi 0, %s239
      %s240 = sphi 0, %s237
      %s241 = sphi 0, %s240
      %s257 = sphi 0, %s241
      %s263 = sphi 0, %s265
      %s266 = sphi 0, %s263
      %s267 = sphi 0, %s266
      %s283 = sphi 0, %s267
      %s289 = sphi 0, %s291
      %s292 = sphi 0, %s289
      %s293 = sphi 0, %s292
      %s309 = sphi 0, %s293
      %s315 = sphi 0, %s317
      %s318 = sphi 0, %s315
      %s319 = sphi 0, %s318
      %s335 = sphi 0, %s319
      %s341 = sphi 0, %s343
      %s344 = sphi 0, %s341
      %s345 = sphi 0, %s344
      %s361 = sphi 0, %s345
      %s367 = sphi 0, %s369
      %s370 = sphi 0, %s367
      %s371 = sphi 0, %s370
      %s387 = sphi 0, %s371
      %s393 = sphi 0, %s395
      %s396 = sphi 0, %s393
      %s397 = sphi 0, %s396
      %s413 = sphi 0, %s397
      %s419 = sphi 0, %s421
      %s422 = sphi 0, %s419
      %s423 = sphi 0, %s422
      %s439 = sphi 0, %s423
      %s443 = sphi 0, %s443
      %s445 = sphi 0, %s443
      %s446 = sphi 0, %s445
      %s460 = sphi 0, %s446
      %s464 = sphi 0, %s464
      %s466 = sphi 0, %s464
      %s467 = sphi 0, %s466
      %s481 = sphi 0, %s467
      %s485 = sphi 0, %s485
      %s487 = sphi 0, %s485
      %s488 = sphi 0, %s487
      %s502 = sphi 0, %s488
      %s508 = sphi 0, %s510
      %s511 = sphi 0, %s508
      %s512 = sphi 0, %s511
      %s528 = sphi 0, %s512
      %s534 = sphi 0, %s536
      %s537 = sphi 0, %s534
      %s538 = sphi 0, %s537
      %s554 = sphi 0, %s538
    $region4: #{_lambda_.5} parent=1 // loop_header_branch
      %41 = sbr.rel (%p39) target = $region8
    $region5: #{_lambda_.5} parent=1 // loop_body
      %s43 = ssub.s32 %s38, 1
      %s44 = ssub.s32 %s38, 2
      %s51 = sadd.s32 1, %s46
      %p52 = scmp.ge.s32.totalorder %s51, 2
      %s53 = scalar_select %p52, 0, %s51
      %s54 = sadd.s32 1, %s45
      %s55 = scalar_select %p52, %s54, %s45
      %p56 = scmp.ge.s32.totalorder %s55, 2
      %s57 = scalar_select %p56, 0, %s55
      %s58 = ssub.s32 %s45, %s57
      %p59 = scmp.eq.s32.totalorder %s58, 0
      %s61 = sadd.s32 %s60, 1
      %s62 = scalar_select %p59, %s60, %s61
      %p65 = pneg %p59
      %p66 = scmp.eq.s32.totalorder %s38, 3
      %p67 = por %p65, %p66
      %p68 = scmp.ne.s32.totalorder %s60, %s63
      %p69 = scmp.eq.s32.totalorder %s38, 0
      %p70 = por %p68, %p69
      %p71 = scmp.ne.s32.totalorder %s60, %s63
      %p72 = scmp.eq.s32.totalorder %s43, 3
      %p73 = por %p71, %p72
      %p74 = scmp.ne.s32.totalorder %s63, %s64
      %p75 = scmp.eq.s32.totalorder %s43, 0
      %p76 = por %p74, %p75
      %p77 = scmp.ne.s32.totalorder %s63, %s64
      %p78 = scmp.eq.s32.totalorder %s44, 3
      %p79 = por %p77, %p78
      %p81 = scmp.ne.s32.totalorder %s64, %s80
      %p82 = scmp.eq.s32.totalorder %s44, 0
      %p83 = por %p81, %p82
      %s85 = sadd.s32 %s84, 1
      %p88 = scmp.eq.s32.totalorder %s38, 3
      %p89 = scmp.ne.s32.totalorder %s84, %s86
      %p90 = scmp.eq.s32.totalorder %s38, 0
      %p91 = por %p89, %p90
      %p92 = scmp.ne.s32.totalorder %s84, %s86
      %p93 = scmp.eq.s32.totalorder %s43, 3
      %p94 = por %p92, %p93
      %p95 = scmp.ne.s32.totalorder %s86, %s87
      %p96 = scmp.eq.s32.totalorder %s43, 0
      %p97 = por %p95, %p96
      %p98 = scmp.ne.s32.totalorder %s86, %s87
      %p99 = scmp.eq.s32.totalorder %s44, 3
      %p100 = por %p98, %p99
      %p102 = scmp.ne.s32.totalorder %s87, %s101
      %p103 = scmp.eq.s32.totalorder %s44, 0
      %p104 = por %p102, %p103
      %s105 = ssub.s32 %s45, %s57
      %p106 = scmp.eq.s32.totalorder %s105, 0
      %s108 = sadd.s32 %s107, 1
      %s109 = scalar_select %p106, %s107, %s108
      %p112 = pneg %p106
      %p113 = scmp.eq.s32.totalorder %s38, 3
      %p114 = por %p112, %p113
      %p115 = scmp.ne.s32.totalorder %s107, %s110
      %p116 = scmp.eq.s32.totalorder %s38, 0
      %p117 = por %p115, %p116
      %p118 = scmp.ne.s32.totalorder %s107, %s110
      %p119 = scmp.eq.s32.totalorder %s43, 3
      %p120 = por %p118, %p119
      %p121 = scmp.ne.s32.totalorder %s110, %s111
      %p122 = scmp.eq.s32.totalorder %s43, 0
      %p123 = por %p121, %p122
      %p124 = scmp.ne.s32.totalorder %s110, %s111
      %p125 = scmp.eq.s32.totalorder %s44, 3
      %p126 = por %p124, %p125
      %p128 = scmp.ne.s32.totalorder %s111, %s127
      %p129 = scmp.eq.s32.totalorder %s44, 0
      %p130 = por %p128, %p129
      %s131 = ssub.s32 %s46, %s53
      %p132 = scmp.eq.s32.totalorder %s131, 0
      %s134 = sadd.s32 %s133, 1
      %s135 = scalar_select %p132, %s133, %s134
      %p138 = pneg %p132
      %p139 = scmp.eq.s32.totalorder %s38, 3
      %p140 = por %p138, %p139
      %p141 = scmp.ne.s32.totalorder %s133, %s136
      %p142 = scmp.eq.s32.totalorder %s38, 0
      %p143 = por %p141, %p142
      %p144 = scmp.ne.s32.totalorder %s133, %s136
      %p145 = scmp.eq.s32.totalorder %s43, 3
      %p146 = por %p144, %p145
      %p147 = scmp.ne.s32.totalorder %s136, %s137
      %p148 = scmp.eq.s32.totalorder %s43, 0
      %p149 = por %p147, %p148
      %p150 = scmp.ne.s32.totalorder %s136, %s137
      %p151 = scmp.eq.s32.totalorder %s44, 3
      %p152 = por %p150, %p151
      %p154 = scmp.ne.s32.totalorder %s137, %s153
      %p155 = scmp.eq.s32.totalorder %s44, 0
      %p156 = por %p154, %p155
      %s157 = ssub.s32 %s46, %s53
      %p158 = scmp.eq.s32.totalorder %s157, 0
      %s160 = sadd.s32 %s159, 1
      %s161 = scalar_select %p158, %s159, %s160
      %p164 = pneg %p158
      %p165 = scmp.eq.s32.totalorder %s38, 3
      %p166 = por %p164, %p165
      %p167 = scmp.ne.s32.totalorder %s159, %s162
      %p168 = scmp.eq.s32.totalorder %s38, 0
      %p169 = por %p167, %p168
      %p170 = scmp.ne.s32.totalorder %s159, %s162
      %p171 = scmp.eq.s32.totalorder %s43, 3
      %p172 = por %p170, %p171
      %p173 = scmp.ne.s32.totalorder %s162, %s163
      %p174 = scmp.eq.s32.totalorder %s43, 0
      %p175 = por %p173, %p174
      %p176 = scmp.ne.s32.totalorder %s162, %s163
      %p177 = scmp.eq.s32.totalorder %s44, 3
      %p178 = por %p176, %p177
      %p180 = scmp.ne.s32.totalorder %s163, %s179
      %p181 = scmp.eq.s32.totalorder %s44, 0
      %p182 = por %p180, %p181
      %s183 = ssub.s32 %s46, %s53
      %p184 = scmp.eq.s32.totalorder %s183, 0
      %s186 = sadd.s32 %s185, 1
      %s187 = scalar_select %p184, %s185, %s186
      %p190 = pneg %p184
      %p191 = scmp.eq.s32.totalorder %s38, 3
      %p192 = por %p190, %p191
      %p193 = scmp.ne.s32.totalorder %s185, %s188
      %p194 = scmp.eq.s32.totalorder %s38, 0
      %p195 = por %p193, %p194
      %p196 = scmp.ne.s32.totalorder %s185, %s188
      %p197 = scmp.eq.s32.totalorder %s43, 3
      %p198 = por %p196, %p197
      %p199 = scmp.ne.s32.totalorder %s188, %s189
      %p200 = scmp.eq.s32.totalorder %s43, 0
      %p201 = por %p199, %p200
      %p202 = scmp.ne.s32.totalorder %s188, %s189
      %p203 = scmp.eq.s32.totalorder %s44, 3
      %p204 = por %p202, %p203
      %p206 = scmp.ne.s32.totalorder %s189, %s205
      %p207 = scmp.eq.s32.totalorder %s44, 0
      %p208 = por %p206, %p207
      %s209 = ssub.s32 %s46, %s53
      %p210 = scmp.eq.s32.totalorder %s209, 0
      %s212 = sadd.s32 %s211, 1
      %s213 = scalar_select %p210, %s211, %s212
      %p216 = pneg %p210
      %p217 = scmp.eq.s32.totalorder %s38, 3
      %p218 = por %p216, %p217
      %p219 = scmp.ne.s32.totalorder %s211, %s214
      %p220 = scmp.eq.s32.totalorder %s38, 0
      %p221 = por %p219, %p220
      %p222 = scmp.ne.s32.totalorder %s211, %s214
      %p223 = scmp.eq.s32.totalorder %s43, 3
      %p224 = por %p222, %p223
      %p225 = scmp.ne.s32.totalorder %s214, %s215
      %p226 = scmp.eq.s32.totalorder %s43, 0
      %p227 = por %p225, %p226
      %p228 = scmp.ne.s32.totalorder %s214, %s215
      %p229 = scmp.eq.s32.totalorder %s44, 3
      %p230 = por %p228, %p229
      %p232 = scmp.ne.s32.totalorder %s215, %s231
      %p233 = scmp.eq.s32.totalorder %s44, 0
      %p234 = por %p232, %p233
      %s235 = ssub.s32 %s46, %s53
      %p236 = scmp.eq.s32.totalorder %s235, 0
      %s238 = sadd.s32 %s237, 1
      %s239 = scalar_select %p236, %s237, %s238
      %p242 = pneg %p236
      %p243 = scmp.eq.s32.totalorder %s38, 3
      %p244 = por %p242, %p243
      %p245 = scmp.ne.s32.totalorder %s237, %s240
      %p246 = scmp.eq.s32.totalorder %s38, 0
      %p247 = por %p245, %p246
      %p248 = scmp.ne.s32.totalorder %s237, %s240
      %p249 = scmp.eq.s32.totalorder %s43, 3
      %p250 = por %p248, %p249
      %p251 = scmp.ne.s32.totalorder %s240, %s241
      %p252 = scmp.eq.s32.totalorder %s43, 0
      %p253 = por %p251, %p252
      %p254 = scmp.ne.s32.totalorder %s240, %s241
      %p255 = scmp.eq.s32.totalorder %s44, 3
      %p256 = por %p254, %p255
      %p258 = scmp.ne.s32.totalorder %s241, %s257
      %p259 = scmp.eq.s32.totalorder %s44, 0
      %p260 = por %p258, %p259
      %s261 = ssub.s32 %s46, %s53
      %p262 = scmp.eq.s32.totalorder %s261, 0
      %s264 = sadd.s32 %s263, 1
      %s265 = scalar_select %p262, %s263, %s264
      %p268 = pneg %p262
      %p269 = scmp.eq.s32.totalorder %s38, 3
      %p270 = por %p268, %p269
      %p271 = scmp.ne.s32.totalorder %s263, %s266
      %p272 = scmp.eq.s32.totalorder %s38, 0
      %p273 = por %p271, %p272
      %p274 = scmp.ne.s32.totalorder %s263, %s266
      %p275 = scmp.eq.s32.totalorder %s43, 3
      %p276 = por %p274, %p275
      %p277 = scmp.ne.s32.totalorder %s266, %s267
      %p278 = scmp.eq.s32.totalorder %s43, 0
      %p279 = por %p277, %p278
      %p280 = scmp.ne.s32.totalorder %s266, %s267
      %p281 = scmp.eq.s32.totalorder %s44, 3
      %p282 = por %p280, %p281
      %p284 = scmp.ne.s32.totalorder %s267, %s283
      %p285 = scmp.eq.s32.totalorder %s44, 0
      %p286 = por %p284, %p285
      %s287 = ssub.s32 %s46, %s53
      %p288 = scmp.eq.s32.totalorder %s287, 0
      %s290 = sadd.s32 %s289, 1
      %s291 = scalar_select %p288, %s289, %s290
      %p294 = pneg %p288
      %p295 = scmp.eq.s32.totalorder %s38, 3
      %p296 = por %p294, %p295
      %p297 = scmp.ne.s32.totalorder %s289, %s292
      %p298 = scmp.eq.s32.totalorder %s38, 0
      %p299 = por %p297, %p298
      %p300 = scmp.ne.s32.totalorder %s289, %s292
      %p301 = scmp.eq.s32.totalorder %s43, 3
      %p302 = por %p300, %p301
      %p303 = scmp.ne.s32.totalorder %s292, %s293
      %p304 = scmp.eq.s32.totalorder %s43, 0
      %p305 = por %p303, %p304
      %p306 = scmp.ne.s32.totalorder %s292, %s293
      %p307 = scmp.eq.s32.totalorder %s44, 3
      %p308 = por %p306, %p307
      %p310 = scmp.ne.s32.totalorder %s293, %s309
      %p311 = scmp.eq.s32.totalorder %s44, 0
      %p312 = por %p310, %p311
      %s313 = ssub.s32 %s46, %s53
      %p314 = scmp.eq.s32.totalorder %s313, 0
      %s316 = sadd.s32 %s315, 1
      %s317 = scalar_select %p314, %s315, %s316
      %p320 = pneg %p314
      %p321 = scmp.eq.s32.totalorder %s38, 3
      %p322 = por %p320, %p321
      %p323 = scmp.ne.s32.totalorder %s315, %s318
      %p324 = scmp.eq.s32.totalorder %s38, 0
      %p325 = por %p323, %p324
      %p326 = scmp.ne.s32.totalorder %s315, %s318
      %p327 = scmp.eq.s32.totalorder %s43, 3
      %p328 = por %p326, %p327
      %p329 = scmp.ne.s32.totalorder %s318, %s319
      %p330 = scmp.eq.s32.totalorder %s43, 0
      %p331 = por %p329, %p330
      %p332 = scmp.ne.s32.totalorder %s318, %s319
      %p333 = scmp.eq.s32.totalorder %s44, 3
      %p334 = por %p332, %p333
      %p336 = scmp.ne.s32.totalorder %s319, %s335
      %p337 = scmp.eq.s32.totalorder %s44, 0
      %p338 = por %p336, %p337
      %s339 = ssub.s32 %s46, %s53
      %p340 = scmp.eq.s32.totalorder %s339, 0
      %s342 = sadd.s32 %s341, 1
      %s343 = scalar_select %p340, %s341, %s342
      %p346 = pneg %p340
      %p347 = scmp.eq.s32.totalorder %s38, 3
      %p348 = por %p346, %p347
      %p349 = scmp.ne.s32.totalorder %s341, %s344
      %p350 = scmp.eq.s32.totalorder %s38, 0
      %p351 = por %p349, %p350
      %p352 = scmp.ne.s32.totalorder %s341, %s344
      %p353 = scmp.eq.s32.totalorder %s43, 3
      %p354 = por %p352, %p353
      %p355 = scmp.ne.s32.totalorder %s344, %s345
      %p356 = scmp.eq.s32.totalorder %s43, 0
      %p357 = por %p355, %p356
      %p358 = scmp.ne.s32.totalorder %s344, %s345
      %p359 = scmp.eq.s32.totalorder %s44, 3
      %p360 = por %p358, %p359
      %p362 = scmp.ne.s32.totalorder %s345, %s361
      %p363 = scmp.eq.s32.totalorder %s44, 0
      %p364 = por %p362, %p363
      %s365 = ssub.s32 %s46, %s53
      %p366 = scmp.eq.s32.totalorder %s365, 0
      %s368 = sadd.s32 %s367, 1
      %s369 = scalar_select %p366, %s367, %s368
      %p372 = pneg %p366
      %p373 = scmp.eq.s32.totalorder %s38, 3
      %p374 = por %p372, %p373
      %p375 = scmp.ne.s32.totalorder %s367, %s370
      %p376 = scmp.eq.s32.totalorder %s38, 0
      %p377 = por %p375, %p376
      %p378 = scmp.ne.s32.totalorder %s367, %s370
      %p379 = scmp.eq.s32.totalorder %s43, 3
      %p380 = por %p378, %p379
      %p381 = scmp.ne.s32.totalorder %s370, %s371
      %p382 = scmp.eq.s32.totalorder %s43, 0
      %p383 = por %p381, %p382
      %p384 = scmp.ne.s32.totalorder %s370, %s371
      %p385 = scmp.eq.s32.totalorder %s44, 3
      %p386 = por %p384, %p385
      %p388 = scmp.ne.s32.totalorder %s371, %s387
      %p389 = scmp.eq.s32.totalorder %s44, 0
      %p390 = por %p388, %p389
      %s391 = ssub.s32 %s46, %s53
      %p392 = scmp.eq.s32.totalorder %s391, 0
      %s394 = sadd.s32 %s393, 1
      %s395 = scalar_select %p392, %s393, %s394
      %p398 = pneg %p392
      %p399 = scmp.eq.s32.totalorder %s38, 3
      %p400 = por %p398, %p399
      %p401 = scmp.ne.s32.totalorder %s393, %s396
      %p402 = scmp.eq.s32.totalorder %s38, 0
      %p403 = por %p401, %p402
      %p404 = scmp.ne.s32.totalorder %s393, %s396
      %p405 = scmp.eq.s32.totalorder %s43, 3
      %p406 = por %p404, %p405
      %p407 = scmp.ne.s32.totalorder %s396, %s397
      %p408 = scmp.eq.s32.totalorder %s43, 0
      %p409 = por %p407, %p408
      %p410 = scmp.ne.s32.totalorder %s396, %s397
      %p411 = scmp.eq.s32.totalorder %s44, 3
      %p412 = por %p410, %p411
      %p414 = scmp.ne.s32.totalorder %s397, %s413
      %p415 = scmp.eq.s32.totalorder %s44, 0
      %p416 = por %p414, %p415
      %s417 = ssub.s32 %s46, %s53
      %p418 = scmp.eq.s32.totalorder %s417, 0
      %s420 = sadd.s32 %s419, 1
      %s421 = scalar_select %p418, %s419, %s420
      %p424 = pneg %p418
      %p425 = scmp.eq.s32.totalorder %s38, 3
      %p426 = por %p424, %p425
      %p427 = scmp.ne.s32.totalorder %s419, %s422
      %p428 = scmp.eq.s32.totalorder %s38, 0
      %p429 = por %p427, %p428
      %p430 = scmp.ne.s32.totalorder %s419, %s422
      %p431 = scmp.eq.s32.totalorder %s43, 3
      %p432 = por %p430, %p431
      %p433 = scmp.ne.s32.totalorder %s422, %s423
      %p434 = scmp.eq.s32.totalorder %s43, 0
      %p435 = por %p433, %p434
      %p436 = scmp.ne.s32.totalorder %s422, %s423
      %p437 = scmp.eq.s32.totalorder %s44, 3
      %p438 = por %p436, %p437
      %p440 = scmp.ne.s32.totalorder %s423, %s439
      %p441 = scmp.eq.s32.totalorder %s44, 0
      %p442 = por %p440, %p441
      %s444 = sadd.s32 %s443, 1
      %p447 = scmp.eq.s32.totalorder %s38, 3
      %p448 = scmp.ne.s32.totalorder %s443, %s445
      %p449 = scmp.eq.s32.totalorder %s38, 0
      %p450 = por %p448, %p449
      %p451 = scmp.ne.s32.totalorder %s443, %s445
      %p452 = scmp.eq.s32.totalorder %s43, 3
      %p453 = por %p451, %p452
      %p454 = scmp.ne.s32.totalorder %s445, %s446
      %p455 = scmp.eq.s32.totalorder %s43, 0
      %p456 = por %p454, %p455
      %p457 = scmp.ne.s32.totalorder %s445, %s446
      %p458 = scmp.eq.s32.totalorder %s44, 3
      %p459 = por %p457, %p458
      %p461 = scmp.ne.s32.totalorder %s446, %s460
      %p462 = scmp.eq.s32.totalorder %s44, 0
      %p463 = por %p461, %p462
      %s465 = sadd.s32 %s464, 1
      %p468 = scmp.eq.s32.totalorder %s38, 3
      %p469 = scmp.ne.s32.totalorder %s464, %s466
      %p470 = scmp.eq.s32.totalorder %s38, 0
      %p471 = por %p469, %p470
      %p472 = scmp.ne.s32.totalorder %s464, %s466
      %p473 = scmp.eq.s32.totalorder %s43, 3
      %p474 = por %p472, %p473
      %p475 = scmp.ne.s32.totalorder %s466, %s467
      %p476 = scmp.eq.s32.totalorder %s43, 0
      %p477 = por %p475, %p476
      %p478 = scmp.ne.s32.totalorder %s466, %s467
      %p479 = scmp.eq.s32.totalorder %s44, 3
      %p480 = por %p478, %p479
      %p482 = scmp.ne.s32.totalorder %s467, %s481
      %p483 = scmp.eq.s32.totalorder %s44, 0
      %p484 = por %p482, %p483
      %s486 = sadd.s32 %s485, 1
      %p489 = scmp.eq.s32.totalorder %s38, 3
      %p490 = scmp.ne.s32.totalorder %s485, %s487
      %p491 = scmp.eq.s32.totalorder %s38, 0
      %p492 = por %p490, %p491
      %p493 = scmp.ne.s32.totalorder %s485, %s487
      %p494 = scmp.eq.s32.totalorder %s43, 3
      %p495 = por %p493, %p494
      %p496 = scmp.ne.s32.totalorder %s487, %s488
      %p497 = scmp.eq.s32.totalorder %s43, 0
      %p498 = por %p496, %p497
      %p499 = scmp.ne.s32.totalorder %s487, %s488
      %p500 = scmp.eq.s32.totalorder %s44, 3
      %p501 = por %p499, %p500
      %p503 = scmp.ne.s32.totalorder %s488, %s502
      %p504 = scmp.eq.s32.totalorder %s44, 0
      %p505 = por %p503, %p504
      %s506 = ssub.s32 %s45, %s57
      %p507 = scmp.eq.s32.totalorder %s506, 0
      %s509 = sadd.s32 %s508, 1
      %s510 = scalar_select %p507, %s508, %s509
      %p513 = pneg %p507
      %p514 = scmp.eq.s32.totalorder %s38, 3
      %p515 = por %p513, %p514
      %p516 = scmp.ne.s32.totalorder %s508, %s511
      %p517 = scmp.eq.s32.totalorder %s38, 0
      %p518 = por %p516, %p517
      %p519 = scmp.ne.s32.totalorder %s508, %s511
      %p520 = scmp.eq.s32.totalorder %s43, 3
      %p521 = por %p519, %p520
      %p522 = scmp.ne.s32.totalorder %s511, %s512
      %p523 = scmp.eq.s32.totalorder %s43, 0
      %p524 = por %p522, %p523
      %p525 = scmp.ne.s32.totalorder %s511, %s512
      %p526 = scmp.eq.s32.totalorder %s44, 3
      %p527 = por %p525, %p526
      %p529 = scmp.ne.s32.totalorder %s512, %s528
      %p530 = scmp.eq.s32.totalorder %s44, 0
      %p531 = por %p529, %p530
      %s532 = ssub.s32 %s45, %s57
      %p533 = scmp.eq.s32.totalorder %s532, 0
      %s535 = sadd.s32 %s534, 1
      %s536 = scalar_select %p533, %s534, %s535
      %p539 = pneg %p533
      %p540 = scmp.eq.s32.totalorder %s38, 3
      %p541 = por %p539, %p540
      %p542 = scmp.ne.s32.totalorder %s534, %s537
      %p543 = scmp.eq.s32.totalorder %s38, 0
      %p544 = por %p542, %p543
      %p545 = scmp.ne.s32.totalorder %s534, %s537
      %p546 = scmp.eq.s32.totalorder %s43, 3
      %p547 = por %p545, %p546
      %p548 = scmp.ne.s32.totalorder %s537, %s538
      %p549 = scmp.eq.s32.totalorder %s43, 0
      %p550 = por %p548, %p549
      %p551 = scmp.ne.s32.totalorder %s537, %s538
      %p552 = scmp.eq.s32.totalorder %s44, 3
      %p553 = por %p551, %p552
      %p555 = scmp.ne.s32.totalorder %s538, %s554
      %p556 = scmp.eq.s32.totalorder %s44, 0
      %p557 = por %p555, %p556
      %p558 = scmp.le.s32.totalorder 1, %s38
      %p559 = scmp.lt.s32.totalorder %s38, 5
      %p560 = pnand %p558, %p559
      %p561 = pneg %p560
      // Predicated region
      $region9: #{_lambda_.5} parent=5 // pred_check
        _
      $region10: #{_lambda_.5} parent=5 // pred_check_branch
        %563 = sbr.rel (%p560) target = $region12
      $region11: #{_lambda_.5} parent=5 // pred_region
        %s564 = ssub.s32 %s38, 1
        // Predicated region
        $region13: #{_lambda_.5} parent=11 // pred_check
          %p565 = pneg %p97
        $region14: #{_lambda_.5} parent=11 // pred_check_branch
          %567 = sbr.rel (%p565) target = $region16
        $region15: #{_lambda_.5} parent=11 // pred_region
          _
        $region16: #{_lambda_.5} parent=11 // pred_fallthru
          _
        // Predicated region
        $region17: #{_lambda_.5} parent=11 // pred_check
          %p568 = pneg %p456
        $region18: #{_lambda_.5} parent=11 // pred_check_branch
          %570 = sbr.rel (%p568) target = $region20
        $region19: #{_lambda_.5} parent=11 // pred_region
          _
        $region20: #{_lambda_.5} parent=11 // pred_fallthru
          _
        // Predicated region
        $region21: #{_lambda_.5} parent=11 // pred_check
          %p571 = pneg %p477
        $region22: #{_lambda_.5} parent=11 // pred_check_branch
          %573 = sbr.rel (%p571) target = $region24
        $region23: #{_lambda_.5} parent=11 // pred_region
          _
        $region24: #{_lambda_.5} parent=11 // pred_fallthru
          _
        // Predicated region
        $region25: #{_lambda_.5} parent=11 // pred_check
          %p574 = pneg %p498
        $region26: #{_lambda_.5} parent=11 // pred_check_branch
          %576 = sbr.rel (%p574) target = $region28
        $region27: #{_lambda_.5} parent=11 // pred_region
          _
        $region28: #{_lambda_.5} parent=11 // pred_fallthru
          _
      $region12: #{_lambda_.5} parent=5 // pred_fallthru
        _
      %p577 = scmp.lt.s32.totalorder %s38, 4
      // Predicated region
      $region29: #{_lambda_.5} parent=5 // pred_check
        %p578 = pneg %p577
      $region30: #{_lambda_.5} parent=5 // pred_check_branch
        %580 = sbr.rel (%p578) target = $region32
      $region31: #{_lambda_.5} parent=5 // pred_region
        // Predicated region
        $region33: #{_lambda_.5} parent=31 // pred_check
          %p581 = pneg %p70
        $region34: #{_lambda_.5} parent=31 // pred_check_branch
          %583 = sbr.rel (%p581) target = $region36
        $region35: #{_lambda_.5} parent=31 // pred_region
          %p584 = scmp.lt.s32.totalorder %s45, 1
          %s585 = scalar_select %p584, %s45, 1
          %s586 = smul.addr %s585, 8
          %s587 = scalar_lea.vmem %s0, %s586
        $region36: #{_lambda_.5} parent=31 // pred_fallthru
          _
        // Predicated region
        $region37: #{_lambda_.5} parent=31 // pred_check
          %p588 = pneg %p117
        $region38: #{_lambda_.5} parent=31 // pred_check_branch
          %590 = sbr.rel (%p588) target = $region40
        $region39: #{_lambda_.5} parent=31 // pred_region
          %p591 = scmp.lt.s32.totalorder %s45, 1
          %s592 = scalar_select %p591, %s45, 1
          %s593 = scalar_lea.vmem %s2, %s592
        $region40: #{_lambda_.5} parent=31 // pred_fallthru
          _
        // Predicated region
        $region41: #{_lambda_.5} parent=31 // pred_check
          %p594 = pneg %p143
        $region42: #{_lambda_.5} parent=31 // pred_check_branch
          %596 = sbr.rel (%p594) target = $region44
        $region43: #{_lambda_.5} parent=31 // pred_region
          %p597 = scmp.lt.s32.totalorder %s46, 1
          %s598 = scalar_select %p597, %s46, 1
          %s599 = scalar_lea.vmem %s3, %s598
        $region44: #{_lambda_.5} parent=31 // pred_fallthru
          _
        // Predicated region
        $region45: #{_lambda_.5} parent=31 // pred_check
          %p600 = pneg %p169
        $region46: #{_lambda_.5} parent=31 // pred_check_branch
          %602 = sbr.rel (%p600) target = $region48
        $region47: #{_lambda_.5} parent=31 // pred_region
          %p603 = scmp.lt.s32.totalorder %s46, 1
          %s604 = scalar_select %p603, %s46, 1
          %s605 = scalar_lea.vmem %s4, %s604
        $region48: #{_lambda_.5} parent=31 // pred_fallthru
          _
        // Predicated region
        $region49: #{_lambda_.5} parent=31 // pred_check
          %p606 = pneg %p195
        $region50: #{_lambda_.5} parent=31 // pred_check_branch
          %608 = sbr.rel (%p606) target = $region52
        $region51: #{_lambda_.5} parent=31 // pred_region
          %p609 = scmp.lt.s32.totalorder %s46, 1
          %s610 = scalar_select %p609, %s46, 1
          %s611 = smul.addr %s610, 48
          %s612 = smul.addr %s611, 4
          %s613 = scalar_lea.vmem %s5, %s612
        $region52: #{_lambda_.5} parent=31 // pred_fallthru
          _
        // Predicated region
        $region53: #{_lambda_.5} parent=31 // pred_check
          %p614 = pneg %p221
        $region54: #{_lambda_.5} parent=31 // pred_check_branch
          %616 = sbr.rel (%p614) target = $region56
        $region55: #{_lambda_.5} parent=31 // pred_region
          %p617 = scmp.lt.s32.totalorder %s46, 1
          %s618 = scalar_select %p617, %s46, 1
          %s619 = smul.addr %s618, 3
          %s620 = scalar_lea.vmem %s6, %s619
        $region56: #{_lambda_.5} parent=31 // pred_fallthru
          _
        // Predicated region
        $region57: #{_lambda_.5} parent=31 // pred_check
          %p621 = pneg %p247
        $region58: #{_lambda_.5} parent=31 // pred_check_branch
          %623 = sbr.rel (%p621) target = $region60
        $region59: #{_lambda_.5} parent=31 // pred_region
          %p624 = scmp.lt.s32.totalorder %s46, 1
          %s625 = scalar_select %p624, %s46, 1
          %s626 = smul.addr %s625, 16
          %s627 = smul.addr %s626, 4
          %s628 = scalar_lea.vmem %s7, %s627
        $region60: #{_lambda_.5} parent=31 // pred_fallthru
          _
        // Predicated region
        $region61: #{_lambda_.5} parent=31 // pred_check
          %p629 = pneg %p273
        $region62: #{_lambda_.5} parent=31 // pred_check_branch
          %631 = sbr.rel (%p629) target = $region64
        $region63: #{_lambda_.5} parent=31 // pred_region
          %p632 = scmp.lt.s32.totalorder %s46, 1
          %s633 = scalar_select %p632, %s46, 1
          %s634 = scalar_lea.vmem %s8, %s633
        $region64: #{_lambda_.5} parent=31 // pred_fallthru
          _
        // Predicated region
        $region65: #{_lambda_.5} parent=31 // pred_check
          %p635 = pneg %p299
        $region66: #{_lambda_.5} parent=31 // pred_check_branch
          %637 = sbr.rel (%p635) target = $region68
        $region67: #{_lambda_.5} parent=31 // pred_region
          %p638 = scmp.lt.s32.totalorder %s46, 1
          %s639 = scalar_select %p638, %s46, 1
          %s640 = scalar_lea.vmem %s9, %s639
        $region68: #{_lambda_.5} parent=31 // pred_fallthru
          _
        // Predicated region
        $region69: #{_lambda_.5} parent=31 // pred_check
          %p641 = pneg %p325
        $region70: #{_lambda_.5} parent=31 // pred_check_branch
          %643 = sbr.rel (%p641) target = $region72
        $region71: #{_lambda_.5} parent=31 // pred_region
          %p644 = scmp.lt.s32.totalorder %s46, 1
          %s645 = scalar_select %p644, %s46, 1
          %s646 = scalar_lea.vmem %s10, %s645
        $region72: #{_lambda_.5} parent=31 // pred_fallthru
          _
        // Predicated region
        $region73: #{_lambda_.5} parent=31 // pred_check
          %p647 = pneg %p351
        $region74: #{_lambda_.5} parent=31 // pred_check_branch
          %649 = sbr.rel (%p647) target = $region76
        $region75: #{_lambda_.5} parent=31 // pred_region
          %s650 = sand.u32 %s341, 1
          %s651 = scalar_lea.sflag [#allocation4], %s650
          %s652 = sand.u32 %s341, 1
          %s653 = smul.addr %s652, 128
          %s654 = scalar_lea.vmem [#allocation3], %s653
          %656 = vsyncadd %s651, 0
          %s657 = smul.addr %s46, 32
          %s658 = smul.addr %s657, 4
          %s659 = scalar_lea.hbm %s11, %s658
          %s660 = sshll.u32 %s659, 4
          %s661 = int_to_ptr.hbm [resolvable:$true] %s660
          %s662 = sshll.u32 %s654, 4
          %s663 = int_to_ptr.vmem [resolvable:$true] %s662
          %668 = dma.hbm_to_vmem [thread:$0]  %s661, 2048, %s663, %s651, 64, 64, 4
        $region76: #{_lambda_.5} parent=31 // pred_fallthru
          _
        // Predicated region
        $region77: #{_lambda_.5} parent=31 // pred_check
          %p669 = pneg %p377
        $region78: #{_lambda_.5} parent=31 // pred_check_branch
          %671 = sbr.rel (%p669) target = $region80
        $region79: #{_lambda_.5} parent=31 // pred_region
          %p672 = scmp.lt.s32.totalorder %s46, 1
          %s673 = scalar_select %p672, %s46, 1
          %s674 = smul.addr %s673, 2
          %s675 = scalar_lea.vmem %s12, %s674
        $region80: #{_lambda_.5} parent=31 // pred_fallthru
          _
        // Predicated region
        $region81: #{_lambda_.5} parent=31 // pred_check
          %p676 = pneg %p403
        $region82: #{_lambda_.5} parent=31 // pred_check_branch
          %678 = sbr.rel (%p676) target = $region84
        $region83: #{_lambda_.5} parent=31 // pred_region
          %s679 = sand.u32 %s393, 1
          %s680 = scalar_lea.sflag [#allocation7], %s679
          %s681 = sand.u32 %s393, 1
          %s682 = smul.addr %s681, 128
          %s683 = scalar_lea.vmem [#allocation6], %s682
          %685 = vsyncadd %s680, 0
          %s686 = smul.addr %s46, 32
          %s687 = smul.addr %s686, 4
          %s688 = scalar_lea.hbm %s13, %s687
          %s689 = sshll.u32 %s688, 4
          %s690 = int_to_ptr.hbm [resolvable:$true] %s689
          %s691 = sshll.u32 %s683, 4
          %s692 = int_to_ptr.vmem [resolvable:$true] %s691
          %697 = dma.hbm_to_vmem [thread:$0]  %s690, 2048, %s692, %s680, 128, 128, 8
        $region84: #{_lambda_.5} parent=31 // pred_fallthru
          _
        // Predicated region
        $region85: #{_lambda_.5} parent=31 // pred_check
          %p698 = pneg %p429
        $region86: #{_lambda_.5} parent=31 // pred_check_branch
          %700 = sbr.rel (%p698) target = $region88
        $region87: #{_lambda_.5} parent=31 // pred_region
          %p701 = scmp.lt.s32.totalorder %s46, 1
          %s702 = scalar_select %p701, %s46, 1
          %s703 = scalar_lea.vmem %s14, %s702
        $region88: #{_lambda_.5} parent=31 // pred_fallthru
          _
      $region32: #{_lambda_.5} parent=5 // pred_fallthru
        _
      %p704 = scmp.le.s32.totalorder 1, %s38
      %p705 = scmp.lt.s32.totalorder %s38, 5
      %p706 = pnand %p704, %p705
      %p707 = pneg %p706
      // Predicated region
      $region89: #{_lambda_.5} parent=5 // pred_check
        _
      $region90: #{_lambda_.5} parent=5 // pred_check_branch
        %709 = sbr.rel (%p706) target = $region92
      $region91: #{_lambda_.5} parent=5 // pred_region
        %s710 = ssub.s32 %s38, 1
        %s711 = sand.u32 %s344, 1
        %s712 = scalar_lea.sflag [#allocation4], %s711
        %s713 = sand.u32 %s344, 1
        %s714 = smul.addr %s713, 128
        %s715 = scalar_lea.vmem [#allocation3], %s714
        // Predicated region
        $region93: #{_lambda_.5} parent=91 // pred_check
          %p716 = pneg %p357
        $region94: #{_lambda_.5} parent=91 // pred_check_branch
          %718 = sbr.rel (%p716) target = $region96
        $region95: #{_lambda_.5} parent=91 // pred_region
          %720 = dma.done %s712, 2048
        $region96: #{_lambda_.5} parent=91 // pred_fallthru
          _
        %s721 = sand.u32 %s396, 1
        %s722 = scalar_lea.sflag [#allocation7], %s721
        %s723 = sand.u32 %s396, 1
        %s724 = smul.addr %s723, 128
        %s725 = scalar_lea.vmem [#allocation6], %s724
        // Predicated region
        $region97: #{_lambda_.5} parent=91 // pred_check
          %p726 = pneg %p409
        $region98: #{_lambda_.5} parent=91 // pred_check_branch
          %728 = sbr.rel (%p726) target = $region100
        $region99: #{_lambda_.5} parent=91 // pred_region
          %730 = dma.done %s722, 2048
        $region100: #{_lambda_.5} parent=91 // pred_fallthru
          _
        %p731 = scmp.lt.s32.totalorder %s47, 1
        %s732 = scalar_select %p731, %s47, 1
        %s733 = smul.addr %s732, 8
        %s734 = scalar_lea.vmem %s0, %s733
        %p735 = pneg %p76
        %p736 = pneg %p73
        %p737 = pneg %p97
        %p738 = pneg %p94
        %p739 = scmp.lt.s32.totalorder %s47, 1
        %s740 = scalar_select %p739, %s47, 1
        %s741 = scalar_lea.vmem %s2, %s740
        %p742 = pneg %p123
        %p743 = pneg %p120
        %p744 = scmp.lt.s32.totalorder %s48, 1
        %s745 = scalar_select %p744, %s48, 1
        %s746 = scalar_lea.vmem %s3, %s745
        %p747 = pneg %p149
        %p748 = pneg %p146
        %p749 = scmp.lt.s32.totalorder %s48, 1
        %s750 = scalar_select %p749, %s48, 1
        %s751 = scalar_lea.vmem %s4, %s750
        %p752 = pneg %p175
        %p753 = pneg %p172
        %p754 = scmp.lt.s32.totalorder %s48, 1
        %s755 = scalar_select %p754, %s48, 1
        %s756 = smul.addr %s755, 48
        %s757 = smul.addr %s756, 4
        %s758 = scalar_lea.vmem %s5, %s757
        %p759 = pneg %p201
        %p760 = pneg %p198
        %p761 = scmp.lt.s32.totalorder %s48, 1
        %s762 = scalar_select %p761, %s48, 1
        %s763 = smul.addr %s762, 3
        %s764 = scalar_lea.vmem %s6, %s763
        %p765 = pneg %p227
        %p766 = pneg %p224
        %p767 = scmp.lt.s32.totalorder %s48, 1
        %s768 = scalar_select %p767, %s48, 1
        %s769 = smul.addr %s768, 16
        %s770 = smul.addr %s769, 4
        %s771 = scalar_lea.vmem %s7, %s770
        %p772 = pneg %p253
        %p773 = pneg %p250
        %p774 = scmp.lt.s32.totalorder %s48, 1
        %s775 = scalar_select %p774, %s48, 1
        %s776 = scalar_lea.vmem %s8, %s775
        %p777 = pneg %p279
        %p778 = pneg %p276
        %p779 = scmp.lt.s32.totalorder %s48, 1
        %s780 = scalar_select %p779, %s48, 1
        %s781 = scalar_lea.vmem %s9, %s780
        %p782 = pneg %p305
        %p783 = pneg %p302
        %p784 = scmp.lt.s32.totalorder %s48, 1
        %s785 = scalar_select %p784, %s48, 1
        %s786 = scalar_lea.vmem %s10, %s785
        %p787 = pneg %p331
        %p788 = pneg %p328
        %s789 = sand.u32 %s344, 1
        %s790 = scalar_lea.sflag [#allocation4], %s789
        %s791 = sand.u32 %s344, 1
        %s792 = smul.addr %s791, 128
        %s793 = scalar_lea.vmem [#allocation3], %s792
        %p794 = pneg %p357
        %p795 = pneg %p354
        %p796 = scmp.lt.s32.totalorder %s48, 1
        %s797 = scalar_select %p796, %s48, 1
        %s798 = smul.addr %s797, 2
        %s799 = scalar_lea.vmem %s12, %s798
        %p800 = pneg %p383
        %p801 = pneg %p380
        %s802 = sand.u32 %s396, 1
        %s803 = scalar_lea.sflag [#allocation7], %s802
        %s804 = sand.u32 %s396, 1
        %s805 = smul.addr %s804, 128
        %s806 = scalar_lea.vmem [#allocation6], %s805
        %p807 = pneg %p409
        %p808 = pneg %p406
        %p809 = scmp.lt.s32.totalorder %s48, 1
        %s810 = scalar_select %p809, %s48, 1
        %s811 = scalar_lea.vmem %s14, %s810
        %p812 = pneg %p435
        %p813 = pneg %p432
        %p814 = pneg %p456
        %p815 = pneg %p453
        %p816 = pneg %p477
        %p817 = pneg %p474
        %p818 = pneg %p498
        %p819 = pneg %p495
        %p820 = pneg %p524
        %p821 = pneg %p521
        %s822 = sand.u32 %s511, 1
        %s823 = scalar_lea.sflag [#allocation5], %s822
        %s824 = sand.u32 %s511, 1
        %s825 = smul.addr %s824, 8
        %s826 = scalar_lea.vmem [#allocation8], %s825
        %p827 = pneg %p550
        %p828 = pneg %p547
        %s829 = sand.u32 %s537, 1
        %s830 = scalar_lea.sflag [#allocation10], %s829
        %s831 = sand.u32 %s537, 1
        %s832 = scalar_lea.vmem [#allocation9], %s831
        %p833 = scmp.lt.s32.totalorder %s47, 1
        %s834 = scalar_select %p833, %s47, 1
        %s835 = smul.addr %s834, 8
        %s836 = scalar_lea.vmem %s0, %s835
        %p837 = scmp.lt.s32.totalorder %s47, 1
        %s838 = scalar_select %p837, %s47, 1
        %s839 = scalar_lea.vmem %s2, %s838
        %p840 = scmp.lt.s32.totalorder %s48, 1
        %s841 = scalar_select %p840, %s48, 1
        %s842 = scalar_lea.vmem %s3, %s841
        %p843 = scmp.lt.s32.totalorder %s48, 1
        %s844 = scalar_select %p843, %s48, 1
        %s845 = scalar_lea.vmem %s4, %s844
        %p846 = scmp.lt.s32.totalorder %s48, 1
        %s847 = scalar_select %p846, %s48, 1
        %s848 = smul.addr %s847, 48
        %s849 = smul.addr %s848, 4
        %s850 = scalar_lea.vmem %s5, %s849
        %p851 = scmp.lt.s32.totalorder %s48, 1
        %s852 = scalar_select %p851, %s48, 1
        %s853 = smul.addr %s852, 3
        %s854 = scalar_lea.vmem %s6, %s853
        %p855 = scmp.lt.s32.totalorder %s48, 1
        %s856 = scalar_select %p855, %s48, 1
        %s857 = smul.addr %s856, 16
        %s858 = smul.addr %s857, 4
        %s859 = scalar_lea.vmem %s7, %s858
        %p860 = scmp.lt.s32.totalorder %s48, 1
        %s861 = scalar_select %p860, %s48, 1
        %s862 = scalar_lea.vmem %s8, %s861
        %p863 = scmp.lt.s32.totalorder %s48, 1
        %s864 = scalar_select %p863, %s48, 1
        %s865 = scalar_lea.vmem %s9, %s864
        %p866 = scmp.lt.s32.totalorder %s48, 1
        %s867 = scalar_select %p866, %s48, 1
        %s868 = scalar_lea.vmem %s10, %s867
        %p869 = scmp.lt.s32.totalorder %s48, 1
        %s870 = scalar_select %p869, %s48, 1
        %s871 = smul.addr %s870, 2
        %s872 = scalar_lea.vmem %s12, %s871
        %p873 = scmp.lt.s32.totalorder %s48, 1
        %s874 = scalar_select %p873, %s48, 1
        %s875 = scalar_lea.vmem %s14, %s874
        %p877 = scmp.eq.s32.totalorder %s48, 0
        // Predicated region
        $region101: #{_lambda_.5} parent=91 // pred_check
          %p878 = pneg %p877
        $region102: #{_lambda_.5} parent=91 // pred_check_branch
          %880 = sbr.rel (%p878) target = $region104
        $region103: #{_lambda_.5} parent=91 // pred_region
          %v881 = vld [vmem:[%s836] sm:$0xff]
          %v882 = vld [vmem:[%s1] sm:$0xff]
          %v883 = vadd.f32 %v881, %v882
          %884 = vst [vmem:[#allocation2] sm:$0xff] %v883
        $region104: #{_lambda_.5} parent=91 // pred_fallthru
          _
        %v885 = vld [vmem:[#allocation2] sm:$0xff]
        %v886 = vld [vmem:[%s839] sm:$0x1]
        %v887 = vld [vmem:[%s842] sm:$0x1]
        %v888 = vld [vmem:[%s845] sm:$0x1]
        %889 = vadd.xlane.f32.xlu0 %v885
        %v890 = vpop.xlane.xlu0 %889
        %v891 = vrcp.pop 128.0
        %v892 = vmul.f32 128.0, %v891
        %v893 = vsub.f32 1.0, %v892
        %v894 = vmul.f32 %v891, %v893
        %v895 = vadd.f32 %v891, %v894
        %vm896 = vweird.f32 %v891
        %v897 = vsel %vm896, %v891, %v895
        %v898 = vmul.f32 %v890, %v897
        %v899 = vsub.f32 %v885, %v898
        %v900 = vmul.f32 %v899, %v899
        %901 = vadd.xlane.f32.xlu0 %v900
        %v902 = vpop.xlane.xlu0 %901
        %v903 = vmul.f32 %v902, %v897
        %v904 = vadd.f32 %v903, 1e-05
        %v905 = vrsqrt.pop %v904
        %v906 = vmul.f32 %v905, %v904
        %v907 = vmul.f32 %v906, %v905
        %v908 = vmul.f32 0.5, %v907
        %v909 = vsub.f32 1.5, %v908
        %v910 = vmul.f32 %v905, %v909
        %vm911 = vweird.f32 %v904
        %vm912 = vweird.f32 %v905
        %vm913 = vmor %vm911, %vm912
        %v914 = vsel %vm913, %v905, %v910
        %v915 = vmul.f32 %v899, %v914
        %v917 = vperm.slane %v887, 0
        %v919 = vmul.f32 %v915, %v917
        %v921 = vperm.slane %v888, 0
        %v923 = vadd.f32 %v919, %v921
        %v924 = vld [vmem:[%s850] sm:$0xf]
        %v925 = vld [vmem:[%s850 + $0x4] sm:$0xf]
        %v926 = vld [vmem:[%s850 + $0x8] sm:$0xf]
        %v927 = vld [vmem:[%s850 + $0xc] sm:$0xf]
        %v928 = vld [vmem:[%s850 + $0x10] sm:$0xf]
        %v929 = vld [vmem:[%s850 + $0x14] sm:$0xf]
        %v930 = vld [vmem:[%s850 + $0x18] sm:$0xf]
        %v931 = vld [vmem:[%s850 + $0x1c] sm:$0xf]
        %v932 = vld [vmem:[%s850 + $0x20] sm:$0xf]
        %v933 = vld [vmem:[%s850 + $0x24] sm:$0xf]
        %v934 = vld [vmem:[%s850 + $0x28] sm:$0xf]
        %v935 = vld [vmem:[%s850 + $0x2c] sm:$0xf]
        %v936 = vld [vmem:[%s850 + $0x30] sm:$0xf]
        %v937 = vld [vmem:[%s850 + $0x34] sm:$0xf]
        %v938 = vld [vmem:[%s850 + $0x38] sm:$0xf]
        %v939 = vld [vmem:[%s850 + $0x3c] sm:$0xf]
        %v940 = vld [vmem:[%s850 + $0x40] sm:$0xf]
        %v941 = vld [vmem:[%s850 + $0x44] sm:$0xf]
        %v942 = vld [vmem:[%s850 + $0x48] sm:$0xf]
        %v943 = vld [vmem:[%s850 + $0x4c] sm:$0xf]
        %v944 = vld [vmem:[%s850 + $0x50] sm:$0xf]
        %v945 = vld [vmem:[%s850 + $0x54] sm:$0xf]
        %v946 = vld [vmem:[%s850 + $0x58] sm:$0xf]
        %v947 = vld [vmem:[%s850 + $0x5c] sm:$0xf]
        %v948 = vld [vmem:[%s850 + $0x60] sm:$0xf]
        %v949 = vld [vmem:[%s850 + $0x64] sm:$0xf]
        %v950 = vld [vmem:[%s850 + $0x68] sm:$0xf]
        %v951 = vld [vmem:[%s850 + $0x6c] sm:$0xf]
        %v952 = vld [vmem:[%s850 + $0x70] sm:$0xf]
        %v953 = vld [vmem:[%s850 + $0x74] sm:$0xf]
        %v954 = vld [vmem:[%s850 + $0x78] sm:$0xf]
        %v955 = vld [vmem:[%s850 + $0x7c] sm:$0xf]
        %v956 = vld [vmem:[%s850 + $0x80] sm:$0xf]
        %v957 = vld [vmem:[%s850 + $0x84] sm:$0xf]
        %v958 = vld [vmem:[%s850 + $0x88] sm:$0xf]
        %v959 = vld [vmem:[%s850 + $0x8c] sm:$0xf]
        %v960 = vld [vmem:[%s850 + $0x90] sm:$0xf]
        %v961 = vld [vmem:[%s850 + $0x94] sm:$0xf]
        %v962 = vld [vmem:[%s850 + $0x98] sm:$0xf]
        %v963 = vld [vmem:[%s850 + $0x9c] sm:$0xf]
        %v964 = vld [vmem:[%s850 + $0xa0] sm:$0xf]
        %v965 = vld [vmem:[%s850 + $0xa4] sm:$0xf]
        %v966 = vld [vmem:[%s850 + $0xa8] sm:$0xf]
        %v967 = vld [vmem:[%s850 + $0xac] sm:$0xf]
        %v968 = vld [vmem:[%s850 + $0xb0] sm:$0xf]
        %v969 = vld [vmem:[%s850 + $0xb4] sm:$0xf]
        %v970 = vld [vmem:[%s850 + $0xb8] sm:$0xf]
        %v971 = vld [vmem:[%s850 + $0xbc] sm:$0xf]
        %v972 = vld [vmem:[%s854] sm:$0x7]
        %v973 = vpack.c.bf16 %v923, %v923
        %v975 = vperm.slane %v972, 0
        %v976 = vperm.slane %v972, 1
        %v977 = vperm.slane %v972, 2
        %v1029 = vunpack.c.l.b16 %v924
        %v1030 = vunpack.c.l.b16 %v925
        %v1031 = vunpack.c.l.b16 %v926
        %v1032 = vunpack.c.l.b16 %v927
        %v1033 = vunpack.c.l.b16 %v928
        %v1034 = vunpack.c.l.b16 %v929
        %v1035 = vunpack.c.l.b16 %v930
        %v1036 = vunpack.c.l.b16 %v931
        %v1037 = vunpack.c.l.b16 %v932
        %v1038 = vunpack.c.l.b16 %v933
        %v1039 = vunpack.c.l.b16 %v934
        %v1040 = vunpack.c.l.b16 %v935
        %v1041 = vunpack.c.l.b16 %v936
        %v1042 = vunpack.c.l.b16 %v937
        %v1043 = vunpack.c.l.b16 %v938
        %v1044 = vunpack.c.l.b16 %v939
        %v1045 = vunpack.c.l.b16 %v940
        %v1046 = vunpack.c.l.b16 %v941
        %v1047 = vunpack.c.l.b16 %v942
        %v1048 = vunpack.c.l.b16 %v943
        %v1049 = vunpack.c.l.b16 %v944
        %v1050 = vunpack.c.l.b16 %v945
        %v1051 = vunpack.c.l.b16 %v946
        %v1052 = vunpack.c.l.b16 %v947
        %v1053 = vunpack.c.l.b16 %v948
        %v1054 = vunpack.c.l.b16 %v949
        %v1055 = vunpack.c.l.b16 %v950
        %v1056 = vunpack.c.l.b16 %v951
        %v1057 = vunpack.c.l.b16 %v952
        %v1058 = vunpack.c.l.b16 %v953
        %v1059 = vunpack.c.l.b16 %v954
        %v1060 = vunpack.c.l.b16 %v955
        %v1061 = vunpack.c.l.b16 %v956
        %v1062 = vunpack.c.l.b16 %v957
        %v1063 = vunpack.c.l.b16 %v958
        %v1064 = vunpack.c.l.b16 %v959
        %v1065 = vunpack.c.l.b16 %v960
        %v1066 = vunpack.c.l.b16 %v961
        %v1067 = vunpack.c.l.b16 %v962
        %v1068 = vunpack.c.l.b16 %v963
        %v1069 = vunpack.c.l.b16 %v964
        %v1070 = vunpack.c.l.b16 %v965
        %v1071 = vunpack.c.l.b16 %v966
        %v1072 = vunpack.c.l.b16 %v967
        %v1073 = vunpack.c.l.b16 %v968
        %v1074 = vunpack.c.l.b16 %v969
        %v1075 = vunpack.c.l.b16 %v970
        %v1076 = vunpack.c.l.b16 %v971
        %v1077 = vpack.c.b16 %v1030, %v1029
        %v1078 = vpack.c.b16 %v1032, %v1031
        %v1079 = vpack.c.b16 %v1034, %v1033
        %v1080 = vpack.c.b16 %v1036, %v1035
        %v1081 = vpack.c.b16 %v1038, %v1037
        %v1082 = vpack.c.b16 %v1040, %v1039
        %v1083 = vpack.c.b16 %v1042, %v1041
        %v1084 = vpack.c.b16 %v1044, %v1043
        %v1085 = vpack.c.b16 %v1046, %v1045
        %v1086 = vpack.c.b16 %v1048, %v1047
        %v1087 = vpack.c.b16 %v1050, %v1049
        %v1088 = vpack.c.b16 %v1052, %v1051
        %v1089 = vpack.c.b16 %v1054, %v1053
        %v1090 = vpack.c.b16 %v1056, %v1055
        %v1091 = vpack.c.b16 %v1058, %v1057
        %v1092 = vpack.c.b16 %v1060, %v1059
        %v1093 = vpack.c.b16 %v1062, %v1061
        %v1094 = vpack.c.b16 %v1064, %v1063
        %v1095 = vpack.c.b16 %v1066, %v1065
        %v1096 = vpack.c.b16 %v1068, %v1067
        %v1097 = vpack.c.b16 %v1070, %v1069
        %v1098 = vpack.c.b16 %v1072, %v1071
        %v1099 = vpack.c.b16 %v1074, %v1073
        %v1100 = vpack.c.b16 %v1076, %v1075
        %1125 = vmatpush.bf16.xpose.msra.mxu0 %v1084
        %1126 = vmatpush.bf16.xpose.msra.mxu0 %v1083
        %1127 = vmatpush.bf16.xpose.msra.mxu0 %v1082
        %1128 = vmatpush.bf16.xpose.msra.mxu0 %v1081
        %1129 = vmatpush.bf16.xpose.msra.mxu0 %v1080
        %1130 = vmatpush.bf16.xpose.msra.mxu0 %v1079
        %1131 = vmatpush.bf16.xpose.msra.mxu0 %v1078
        %1132 = vmatpush.bf16.xpose.msra.mxu0 %v1077
        %1133 = vmatmul.bf16.gmra.mxu0 %v973
        %v1134 = vpop.f32.mrf.mxu0
        %v1135 = vadd.f32 %v975, %v1134
        %v1136 = vpop.f32.mrf.mxu0
        %1137 = vdwg.mxu0
        %1138 = vmatpush.bf16.xpose.msra.mxu0 %v1092
        %1139 = vmatpush.bf16.xpose.msra.mxu0 %v1091
        %1140 = vmatpush.bf16.xpose.msra.mxu0 %v1090
        %1141 = vmatpush.bf16.xpose.msra.mxu0 %v1089
        %1142 = vmatpush.bf16.xpose.msra.mxu0 %v1088
        %1143 = vmatpush.bf16.xpose.msra.mxu0 %v1087
        %1144 = vmatpush.bf16.xpose.msra.mxu0 %v1086
        %1145 = vmatpush.bf16.xpose.msra.mxu0 %v1085
        %1146 = vmatmul.bf16.gmra.mxu0 %v973
        %v1147 = vpop.f32.mrf.mxu0
        %v1148 = vadd.f32 %v976, %v1147
        %v1149 = vpop.f32.mrf.mxu0
        %1150 = vdwg.mxu0
        %1151 = vmatpush.bf16.xpose.msra.mxu0 %v1100
        %1152 = vmatpush.bf16.xpose.msra.mxu0 %v1099
        %1153 = vmatpush.bf16.xpose.msra.mxu0 %v1098
        %1154 = vmatpush.bf16.xpose.msra.mxu0 %v1097
        %1155 = vmatpush.bf16.xpose.msra.mxu0 %v1096
        %1156 = vmatpush.bf16.xpose.msra.mxu0 %v1095
        %1157 = vmatpush.bf16.xpose.msra.mxu0 %v1094
        %1158 = vmatpush.bf16.xpose.msra.mxu0 %v1093
        %1159 = vmatmul.bf16.gmra.mxu0 %v973
        %v1160 = vpop.f32.mrf.mxu0
        %v1161 = vadd.f32 %v977, %v1160
        %v1162 = vpop.f32.mrf.mxu0
        %1163 = vdwg.mxu0
        %v1164 = vmul.f32 %v1135, 0.17677669
        %v1165 = vpack.c.bf16 %v1164, %v1164
        %v1166 = vpack.c.bf16 %v1148, %v1148
        %v1167 = vpack.c.bf16 %v1161, %v1161
        %v1169 = vperm.slane %v886, 0
        %vm1171 = vcmask 261120
        %v1173 = vsel %vm1171, %v1165, 0
        %v1176 = vsel %vm1171, %v1166, 0
        %1178 = vmatpush.bf16.xpose.msra.mxu0 0
        %1179 = vmatpush.bf16.xpose.msra.mxu0 0
        %1180 = vmatpush.bf16.xpose.msra.mxu0 0
        %1181 = vmatpush.bf16.xpose.msra.mxu0 0
        %1182 = vmatpush.bf16.xpose.msra.mxu0 0
        %1183 = vmatpush.bf16.xpose.msra.mxu0 0
        %1184 = vmatpush.bf16.xpose.msra.mxu0 0
        %1185 = vmatpush.bf16.xpose.msra.mxu0 %v1176
        %1186 = vmatmul.bf16.gmra.mxu0 %v1173
        %v1187 = vpop.f32.mrf.mxu0
        %v1188 = vadd.f32 %v1169, %v1187
        %v1189 = vpop.f32.mrf.mxu0
        %1190 = vdwg.mxu0
        %vm1191 = vcmask 64512
        %v1192 = vsel %vm1191, %v1188, -inf
        %1193 = vmax.xlane.f32.xlu0 %v1192
        %v1194 = vpop.xlane.xlu0 %1193
        %v1195 = vsub.f32 %v1188, %v1194
        %v1196 = vmul.f32 %v1195, 1.442695
        %v1197 = vpow.pop %v1196
        %v1198 = vsel %vm1191, %v1197, 0.0
        %1199 = vadd.xlane.f32.xlu0 %v1198
        %v1200 = vpop.xlane.xlu0 %1199
        %v1201 = vrcp.pop %v1200
        %v1202 = vmul.f32 %v1197, %v1201
        %v1203 = vpack.c.bf16 %v1202, %v1202
        %v1205 = vsel %vm1191, %v1203, 0
        %vm1207 = vcmask 1043456
        %v1209 = vsel %vm1207, %v1167, 0
        %1211 = vmatpush.bf16.msra.mxu0 0
        %1212 = vmatpush.bf16.msra.mxu0 0
        %1213 = vmatpush.bf16.msra.mxu0 0
        %1214 = vmatpush.bf16.msra.mxu0 0
        %1215 = vmatpush.bf16.msra.mxu0 0
        %1216 = vmatpush.bf16.msra.mxu0 0
        %1217 = vmatpush.bf16.msra.mxu0 0
        %1218 = vmatpush.bf16.msra.mxu0 %v1209
        %1219 = vmatmul.bf16.gmra.mxu0 %v1205
        %v1220 = vpop.f32.mrf.mxu0
        %v1221 = vadd.f32 0.0, %v1220
        %v1222 = vpop.f32.mrf.mxu0
        %1223 = vdwg.mxu0
        %1225 = vrot.lane.b32.xlu0 %v1165, 96
        %v1226 = vpop.permute.xlu0 %1225
        %1228 = vrot.lane.b32.xlu0 %v1166, 96
        %v1229 = vpop.permute.xlu0 %1228
        %v1231 = vsel %vm1171, %v1226, 0
        %v1234 = vsel %vm1171, %v1229, 0
        %1236 = vmatpush.bf16.xpose.msra.mxu0 0
        %1237 = vmatpush.bf16.xpose.msra.mxu0 0
        %1238 = vmatpush.bf16.xpose.msra.mxu0 0
        %1239 = vmatpush.bf16.xpose.msra.mxu0 0
        %1240 = vmatpush.bf16.xpose.msra.mxu0 0
        %1241 = vmatpush.bf16.xpose.msra.mxu0 0
        %1242 = vmatpush.bf16.xpose.msra.mxu0 0
        %1243 = vmatpush.bf16.xpose.msra.mxu0 %v1234
        %1244 = vmatmul.bf16.gmra.mxu0 %v1231
        %v1245 = vpop.f32.mrf.mxu0
        %v1246 = vadd.f32 %v1169, %v1245
        %v1247 = vpop.f32.mrf.mxu0
        %1248 = vdwg.mxu0
        %v1249 = vsel %vm1191, %v1246, -inf
        %1250 = vmax.xlane.f32.xlu0 %v1249
        %v1251 = vpop.xlane.xlu0 %1250
        %v1252 = vsub.f32 %v1246, %v1251
        %v1253 = vmul.f32 %v1252, 1.442695
        %v1254 = vpow.pop %v1253
        %v1255 = vsel %vm1191, %v1254, 0.0
        %1256 = vadd.xlane.f32.xlu0 %v1255
        %v1257 = vpop.xlane.xlu0 %1256
        %v1258 = vrcp.pop %v1257
        %v1259 = vmul.f32 %v1254, %v1258
        %v1260 = vpack.c.bf16 %v1259, %v1259
        %1262 = vrot.lane.b32.xlu0 %v1167, 96
        %v1263 = vpop.permute.xlu0 %1262
        %v1265 = vsel %vm1191, %v1260, 0
        %v1268 = vsel %vm1207, %v1263, 0
        %1270 = vmatpush.bf16.msra.mxu0 0
        %1271 = vmatpush.bf16.msra.mxu0 0
        %1272 = vmatpush.bf16.msra.mxu0 0
        %1273 = vmatpush.bf16.msra.mxu0 0
        %1274 = vmatpush.bf16.msra.mxu0 0
        %1275 = vmatpush.bf16.msra.mxu0 0
        %1276 = vmatpush.bf16.msra.mxu0 0
        %1277 = vmatpush.bf16.msra.mxu0 %v1268
        %1278 = vmatmul.bf16.gmra.mxu0 %v1265
        %v1279 = vpop.f32.mrf.mxu0
        %v1280 = vadd.f32 0.0, %v1279
        %v1281 = vpop.f32.mrf.mxu0
        %1282 = vdwg.mxu0
        %1283 = vrot.lane.b32.xlu0 %v1165, 64
        %v1284 = vpop.permute.xlu0 %1283
        %1285 = vrot.lane.b32.xlu0 %v1166, 64
        %v1286 = vpop.permute.xlu0 %1285
        %v1288 = vsel %vm1171, %v1284, 0
        %v1291 = vsel %vm1171, %v1286, 0
        %1293 = vmatpush.bf16.xpose.msra.mxu0 0
        %1294 = vmatpush.bf16.xpose.msra.mxu0 0
        %1295 = vmatpush.bf16.xpose.msra.mxu0 0
        %1296 = vmatpush.bf16.xpose.msra.mxu0 0
        %1297 = vmatpush.bf16.xpose.msra.mxu0 0
        %1298 = vmatpush.bf16.xpose.msra.mxu0 0
        %1299 = vmatpush.bf16.xpose.msra.mxu0 0
        %1300 = vmatpush.bf16.xpose.msra.mxu0 %v1291
        %1301 = vmatmul.bf16.gmra.mxu0 %v1288
        %v1302 = vpop.f32.mrf.mxu0
        %v1303 = vadd.f32 %v1169, %v1302
        %v1304 = vpop.f32.mrf.mxu0
        %1305 = vdwg.mxu0
        %v1306 = vsel %vm1191, %v1303, -inf
        %1307 = vmax.xlane.f32.xlu0 %v1306
        %v1308 = vpop.xlane.xlu0 %1307
        %v1309 = vsub.f32 %v1303, %v1308
        %v1310 = vmul.f32 %v1309, 1.442695
        %v1311 = vpow.pop %v1310
        %v1312 = vsel %vm1191, %v1311, 0.0
        %1313 = vadd.xlane.f32.xlu0 %v1312
        %v1314 = vpop.xlane.xlu0 %1313
        %v1315 = vrcp.pop %v1314
        %v1316 = vmul.f32 %v1311, %v1315
        %v1317 = vpack.c.bf16 %v1316, %v1316
        %1318 = vrot.lane.b32.xlu0 %v1167, 64
        %v1319 = vpop.permute.xlu0 %1318
        %v1321 = vsel %vm1191, %v1317, 0
        %v1324 = vsel %vm1207, %v1319, 0
        %1326 = vmatpush.bf16.msra.mxu0 0
        %1327 = vmatpush.bf16.msra.mxu0 0
        %1328 = vmatpush.bf16.msra.mxu0 0
        %1329 = vmatpush.bf16.msra.mxu0 0
        %1330 = vmatpush.bf16.msra.mxu0 0
        %1331 = vmatpush.bf16.msra.mxu0 0
        %1332 = vmatpush.bf16.msra.mxu0 0
        %1333 = vmatpush.bf16.msra.mxu0 %v1324
        %1334 = vmatmul.bf16.gmra.mxu0 %v1321
        %v1335 = vpop.f32.mrf.mxu0
        %v1336 = vadd.f32 0.0, %v1335
        %v1337 = vpop.f32.mrf.mxu0
        %1338 = vdwg.mxu0
        %1339 = vrot.lane.b32.xlu0 %v1165, 32
        %v1340 = vpop.permute.xlu0 %1339
        %1341 = vrot.lane.b32.xlu0 %v1166, 32
        %v1342 = vpop.permute.xlu0 %1341
        %v1344 = vsel %vm1171, %v1340, 0
        %v1347 = vsel %vm1171, %v1342, 0
        %1349 = vmatpush.bf16.xpose.msra.mxu0 0
        %1350 = vmatpush.bf16.xpose.msra.mxu0 0
        %1351 = vmatpush.bf16.xpose.msra.mxu0 0
        %1352 = vmatpush.bf16.xpose.msra.mxu0 0
        %1353 = vmatpush.bf16.xpose.msra.mxu0 0
        %1354 = vmatpush.bf16.xpose.msra.mxu0 0
        %1355 = vmatpush.bf16.xpose.msra.mxu0 0
        %1356 = vmatpush.bf16.xpose.msra.mxu0 %v1347
        %1357 = vmatmul.bf16.gmra.mxu0 %v1344
        %v1358 = vpop.f32.mrf.mxu0
        %v1359 = vadd.f32 %v1169, %v1358
        %v1360 = vpop.f32.mrf.mxu0
        %1361 = vdwg.mxu0
        %v1362 = vsel %vm1191, %v1359, -inf
        %1363 = vmax.xlane.f32.xlu0 %v1362
        %v1364 = vpop.xlane.xlu0 %1363
        %v1365 = vsub.f32 %v1359, %v1364
        %v1366 = vmul.f32 %v1365, 1.442695
        %v1367 = vpow.pop %v1366
        %v1368 = vsel %vm1191, %v1367, 0.0
        %1369 = vadd.xlane.f32.xlu0 %v1368
        %v1370 = vpop.xlane.xlu0 %1369
        %v1371 = vrcp.pop %v1370
        %v1372 = vmul.f32 %v1367, %v1371
        %v1373 = vpack.c.bf16 %v1372, %v1372
        %1374 = vrot.lane.b32.xlu0 %v1167, 32
        %v1375 = vpop.permute.xlu0 %1374
        %v1377 = vsel %vm1191, %v1373, 0
        %v1380 = vsel %vm1207, %v1375, 0
        %1382 = vmatpush.bf16.msra.mxu0 0
        %1383 = vmatpush.bf16.msra.mxu0 0
        %1384 = vmatpush.bf16.msra.mxu0 0
        %1385 = vmatpush.bf16.msra.mxu0 0
        %1386 = vmatpush.bf16.msra.mxu0 0
        %1387 = vmatpush.bf16.msra.mxu0 0
        %1388 = vmatpush.bf16.msra.mxu0 0
        %1389 = vmatpush.bf16.msra.mxu0 %v1380
        %1390 = vmatmul.bf16.gmra.mxu0 %v1377
        %v1391 = vpop.f32.mrf.mxu0
        %v1392 = vadd.f32 0.0, %v1391
        %v1393 = vpop.f32.mrf.mxu0
        %1394 = vdwg.mxu0
        %1396 = vrot.lane.b32.xlu0 %v1280, 32
        %v1397 = vpop.permute.xlu0 %1396
        %1400 = vrot.lane.b32.xlu0 %v1336, 64
        %v1401 = vpop.permute.xlu0 %1400
        %1404 = vrot.lane.b32.xlu0 %v1392, 96
        %v1405 = vpop.permute.xlu0 %1404
        %v1407 = vsel %vm1171, %v1221, %v1397
        %vm1408 = vcmask 523264
        %v1409 = vsel %vm1408, %v1407, %v1401
        %vm1410 = vcmask 785408
        %v1411 = vsel %vm1410, %v1409, %v1405
        %v1412 = vld [vmem:[%s859] sm:$0xf]
        %v1413 = vld [vmem:[%s859 + $0x4] sm:$0xf]
        %v1414 = vld [vmem:[%s859 + $0x8] sm:$0xf]
        %v1415 = vld [vmem:[%s859 + $0xc] sm:$0xf]
        %v1416 = vld [vmem:[%s859 + $0x10] sm:$0xf]
        %v1417 = vld [vmem:[%s859 + $0x14] sm:$0xf]
        %v1418 = vld [vmem:[%s859 + $0x18] sm:$0xf]
        %v1419 = vld [vmem:[%s859 + $0x1c] sm:$0xf]
        %v1420 = vld [vmem:[%s859 + $0x20] sm:$0xf]
        %v1421 = vld [vmem:[%s859 + $0x24] sm:$0xf]
        %v1422 = vld [vmem:[%s859 + $0x28] sm:$0xf]
        %v1423 = vld [vmem:[%s859 + $0x2c] sm:$0xf]
        %v1424 = vld [vmem:[%s859 + $0x30] sm:$0xf]
        %v1425 = vld [vmem:[%s859 + $0x34] sm:$0xf]
        %v1426 = vld [vmem:[%s859 + $0x38] sm:$0xf]
        %v1427 = vld [vmem:[%s859 + $0x3c] sm:$0xf]
        %v1428 = vld [vmem:[%s862] sm:$0x1]
        %v1429 = vpack.c.bf16 %v1411, %v1411
        %v1431 = vperm.slane %v1428, 0
        %v1449 = vunpack.c.l.b16 %v1412
        %v1450 = vunpack.c.l.b16 %v1413
        %v1451 = vunpack.c.l.b16 %v1414
        %v1452 = vunpack.c.l.b16 %v1415
        %v1453 = vunpack.c.l.b16 %v1416
        %v1454 = vunpack.c.l.b16 %v1417
        %v1455 = vunpack.c.l.b16 %v1418
        %v1456 = vunpack.c.l.b16 %v1419
        %v1457 = vunpack.c.l.b16 %v1420
        %v1458 = vunpack.c.l.b16 %v1421
        %v1459 = vunpack.c.l.b16 %v1422
        %v1460 = vunpack.c.l.b16 %v1423
        %v1461 = vunpack.c.l.b16 %v1424
        %v1462 = vunpack.c.l.b16 %v1425
        %v1463 = vunpack.c.l.b16 %v1426
        %v1464 = vunpack.c.l.b16 %v1427
        %v1465 = vpack.c.b16 %v1450, %v1449
        %v1466 = vpack.c.b16 %v1452, %v1451
        %v1467 = vpack.c.b16 %v1454, %v1453
        %v1468 = vpack.c.b16 %v1456, %v1455
        %v1469 = vpack.c.b16 %v1458, %v1457
        %v1470 = vpack.c.b16 %v1460, %v1459
        %v1471 = vpack.c.b16 %v1462, %v1461
        %v1472 = vpack.c.b16 %v1464, %v1463
        %1481 = vmatpush.bf16.xpose.msra.mxu0 %v1472
        %1482 = vmatpush.bf16.xpose.msra.mxu0 %v1471
        %1483 = vmatpush.bf16.xpose.msra.mxu0 %v1470
        %1484 = vmatpush.bf16.xpose.msra.mxu0 %v1469
        %1485 = vmatpush.bf16.xpose.msra.mxu0 %v1468
        %1486 = vmatpush.bf16.xpose.msra.mxu0 %v1467
        %1487 = vmatpush.bf16.xpose.msra.mxu0 %v1466
        %1488 = vmatpush.bf16.xpose.msra.mxu0 %v1465
        %1489 = vmatmul.bf16.gmra.mxu0 %v1429
        %v1490 = vpop.f32.mrf.mxu0
        %v1491 = vadd.f32 %v1431, %v1490
        %v1492 = vpop.f32.mrf.mxu0
        %1493 = vdwg.mxu0
        %v1494 = vadd.f32 %v885, %v1491
        %v1495 = vld [vmem:[%s865] sm:$0x1]
        %v1496 = vld [vmem:[%s868] sm:$0x1]
        %1497 = vadd.xlane.f32.xlu0 %v1494
        %v1498 = vpop.xlane.xlu0 %1497
        %v1499 = vmul.f32 %v1498, %v897
        %v1500 = vsub.f32 %v1494, %v1499
        %v1501 = vmul.f32 %v1500, %v1500
        %1502 = vadd.xlane.f32.xlu0 %v1501
        %v1503 = vpop.xlane.xlu0 %1502
        %v1504 = vmul.f32 %v1503, %v897
        %v1505 = vadd.f32 %v1504, 1e-05
        %v1506 = vrsqrt.pop %v1505
        %v1507 = vmul.f32 %v1506, %v1505
        %v1508 = vmul.f32 %v1507, %v1506
        %v1509 = vmul.f32 0.5, %v1508
        %v1510 = vsub.f32 1.5, %v1509
        %v1511 = vmul.f32 %v1506, %v1510
        %vm1512 = vweird.f32 %v1505
        %vm1513 = vweird.f32 %v1506
        %vm1514 = vmor %vm1512, %vm1513
        %v1515 = vsel %vm1514, %v1506, %v1511
        %v1516 = vmul.f32 %v1500, %v1515
        %v1518 = vperm.slane %v1495, 0
        %v1520 = vmul.f32 %v1516, %v1518
        %v1522 = vperm.slane %v1496, 0
        %v1524 = vadd.f32 %v1520, %v1522
        %v1525 = vld [vmem:[%s715] sm:$0xf]
        %v1526 = vld [vmem:[%s715 + $0x4] sm:$0xf]
        %v1527 = vld [vmem:[%s715 + $0x8] sm:$0xf]
        %v1528 = vld [vmem:[%s715 + $0xc] sm:$0xf]
        %v1529 = vld [vmem:[%s715 + $0x10] sm:$0xf]
        %v1530 = vld [vmem:[%s715 + $0x14] sm:$0xf]
        %v1531 = vld [vmem:[%s715 + $0x18] sm:$0xf]
        %v1532 = vld [vmem:[%s715 + $0x1c] sm:$0xf]
        %v1533 = vld [vmem:[%s715 + $0x20] sm:$0xf]
        %v1534 = vld [vmem:[%s715 + $0x24] sm:$0xf]
        %v1535 = vld [vmem:[%s715 + $0x28] sm:$0xf]
        %v1536 = vld [vmem:[%s715 + $0x2c] sm:$0xf]
        %v1537 = vld [vmem:[%s715 + $0x30] sm:$0xf]
        %v1538 = vld [vmem:[%s715 + $0x34] sm:$0xf]
        %v1539 = vld [vmem:[%s715 + $0x38] sm:$0xf]
        %v1540 = vld [vmem:[%s715 + $0x3c] sm:$0xf]
        %v1541 = vld [vmem:[%s715 + $0x40] sm:$0xf]
        %v1542 = vld [vmem:[%s715 + $0x44] sm:$0xf]
        %v1543 = vld [vmem:[%s715 + $0x48] sm:$0xf]
        %v1544 = vld [vmem:[%s715 + $0x4c] sm:$0xf]
        %v1545 = vld [vmem:[%s715 + $0x50] sm:$0xf]
        %v1546 = vld [vmem:[%s715 + $0x54] sm:$0xf]
        %v1547 = vld [vmem:[%s715 + $0x58] sm:$0xf]
        %v1548 = vld [vmem:[%s715 + $0x5c] sm:$0xf]
        %v1549 = vld [vmem:[%s715 + $0x60] sm:$0xf]
        %v1550 = vld [vmem:[%s715 + $0x64] sm:$0xf]
        %v1551 = vld [vmem:[%s715 + $0x68] sm:$0xf]
        %v1552 = vld [vmem:[%s715 + $0x6c] sm:$0xf]
        %v1553 = vld [vmem:[%s715 + $0x70] sm:$0xf]
        %v1554 = vld [vmem:[%s715 + $0x74] sm:$0xf]
        %v1555 = vld [vmem:[%s715 + $0x78] sm:$0xf]
        %v1556 = vld [vmem:[%s715 + $0x7c] sm:$0xf]
        %v1557 = vld [vmem:[%s872] sm:$0x3]
        %v1558 = vpack.c.bf16 %v1524, %v1524
        %v1560 = vperm.slane %v1557, 0
        %v1561 = vperm.slane %v1557, 1
        %v1596 = vunpack.c.l.b16 %v1525
        %v1597 = vunpack.c.l.b16 %v1526
        %v1598 = vunpack.c.l.b16 %v1527
        %v1599 = vunpack.c.l.b16 %v1528
        %v1600 = vunpack.c.l.b16 %v1529
        %v1601 = vunpack.c.l.b16 %v1530
        %v1602 = vunpack.c.l.b16 %v1531
        %v1603 = vunpack.c.l.b16 %v1532
        %v1604 = vunpack.c.l.b16 %v1533
        %v1605 = vunpack.c.l.b16 %v1534
        %v1606 = vunpack.c.l.b16 %v1535
        %v1607 = vunpack.c.l.b16 %v1536
        %v1608 = vunpack.c.l.b16 %v1537
        %v1609 = vunpack.c.l.b16 %v1538
        %v1610 = vunpack.c.l.b16 %v1539
        %v1611 = vunpack.c.l.b16 %v1540
        %v1612 = vunpack.c.l.b16 %v1541
        %v1613 = vunpack.c.l.b16 %v1542
        %v1614 = vunpack.c.l.b16 %v1543
        %v1615 = vunpack.c.l.b16 %v1544
        %v1616 = vunpack.c.l.b16 %v1545
        %v1617 = vunpack.c.l.b16 %v1546
        %v1618 = vunpack.c.l.b16 %v1547
        %v1619 = vunpack.c.l.b16 %v1548
        %v1620 = vunpack.c.l.b16 %v1549
        %v1621 = vunpack.c.l.b16 %v1550
        %v1622 = vunpack.c.l.b16 %v1551
        %v1623 = vunpack.c.l.b16 %v1552
        %v1624 = vunpack.c.l.b16 %v1553
        %v1625 = vunpack.c.l.b16 %v1554
        %v1626 = vunpack.c.l.b16 %v1555
        %v1627 = vunpack.c.l.b16 %v1556
        %v1628 = vpack.c.b16 %v1597, %v1596
        %v1629 = vpack.c.b16 %v1599, %v1598
        %v1630 = vpack.c.b16 %v1601, %v1600
        %v1631 = vpack.c.b16 %v1603, %v1602
        %v1632 = vpack.c.b16 %v1605, %v1604
        %v1633 = vpack.c.b16 %v1607, %v1606
        %v1634 = vpack.c.b16 %v1609, %v1608
        %v1635 = vpack.c.b16 %v1611, %v1610
        %v1636 = vpack.c.b16 %v1613, %v1612
        %v1637 = vpack.c.b16 %v1615, %v1614
        %v1638 = vpack.c.b16 %v1617, %v1616
        %v1639 = vpack.c.b16 %v1619, %v1618
        %v1640 = vpack.c.b16 %v1621, %v1620
        %v1641 = vpack.c.b16 %v1623, %v1622
        %v1642 = vpack.c.b16 %v1625, %v1624
        %v1643 = vpack.c.b16 %v1627, %v1626
        %1660 = vmatpush.bf16.xpose.msra.mxu0 %v1635
        %1661 = vmatpush.bf16.xpose.msra.mxu0 %v1634
        %1662 = vmatpush.bf16.xpose.msra.mxu0 %v1633
        %1663 = vmatpush.bf16.xpose.msra.mxu0 %v1632
        %1664 = vmatpush.bf16.xpose.msra.mxu0 %v1631
        %1665 = vmatpush.bf16.xpose.msra.mxu0 %v1630
        %1666 = vmatpush.bf16.xpose.msra.mxu0 %v1629
        %1667 = vmatpush.bf16.xpose.msra.mxu0 %v1628
        %1668 = vmatmul.bf16.gmra.mxu0 %v1558
        %v1669 = vpop.f32.mrf.mxu0
        %v1670 = vadd.f32 %v1560, %v1669
        %v1671 = vpop.f32.mrf.mxu0
        %1672 = vdwg.mxu0
        %1673 = vmatpush.bf16.xpose.msra.mxu0 %v1643
        %1674 = vmatpush.bf16.xpose.msra.mxu0 %v1642
        %1675 = vmatpush.bf16.xpose.msra.mxu0 %v1641
        %1676 = vmatpush.bf16.xpose.msra.mxu0 %v1640
        %1677 = vmatpush.bf16.xpose.msra.mxu0 %v1639
        %1678 = vmatpush.bf16.xpose.msra.mxu0 %v1638
        %1679 = vmatpush.bf16.xpose.msra.mxu0 %v1637
        %1680 = vmatpush.bf16.xpose.msra.mxu0 %v1636
        %1681 = vmatmul.bf16.gmra.mxu0 %v1558
        %v1682 = vpop.f32.mrf.mxu0
        %v1683 = vadd.f32 %v1561, %v1682
        %v1684 = vpop.f32.mrf.mxu0
        %1685 = vdwg.mxu0
        %v1686 = vmul.f32 %v1670, 0.5
        %v1687 = vmul.f32 %v1683, 0.5
        %v1688 = vmul.f32 %v1670, 0.70710677
        %v1689 = vmul.f32 %v1683, 0.70710677
        %v1690 = vmul.f32 %v1688, %v1688
        %v1691 = vmin.f32 16.0, %v1690
        %v1692 = vmul.f32 %v1691, 2.1237322e-06
        %v1693 = vadd.f32 %v1692, 0.00028619796
        %v1694 = vmul.f32 %v1691, %v1693
        %v1695 = vadd.f32 %v1694, 0.0036580483
        %v1696 = vmul.f32 %v1691, %v1695
        %v1697 = vadd.f32 %v1696, 0.05243302
        %v1698 = vmul.f32 %v1691, %v1697
        %v1699 = vadd.f32 %v1698, 0.18741608
        %v1700 = vmul.f32 %v1691, %v1699
        %v1701 = vadd.f32 %v1700, 1.1283791
        %v1702 = vmul.f32 %v1688, %v1701
        %v1703 = vmul.f32 %v1691, 3.8918573e-05
        %v1704 = vadd.f32 %v1703, 0.001143296
        %v1705 = vmul.f32 %v1691, %v1704
        %v1706 = vadd.f32 %v1705, 0.014752088
        %v1707 = vmul.f32 %v1691, %v1706
        %v1708 = vadd.f32 %v1707, 0.112945676
        %v1709 = vmul.f32 %v1691, %v1708
        %v1710 = vadd.f32 %v1709, 0.4994258
        %v1711 = vmul.f32 %v1691, %v1710
        %v1712 = vadd.f32 %v1711, 1.0
        %v1713 = vrcp.pop %v1712
        %v1714 = vmul.f32 %v1712, %v1713
        %v1715 = vsub.f32 1.0, %v1714
        %v1716 = vmul.f32 %v1713, %v1715
        %v1717 = vadd.f32 %v1713, %v1716
        %vm1718 = vweird.f32 %v1712
        %vm1719 = vweird.f32 %v1713
        %vm1720 = vmor %vm1718, %vm1719
        %v1721 = vsel %vm1720, %v1713, %v1717
        %v1722 = vand.u32 2147483647, %v1712
        %vm1723 = vcmp.eq.f32.partialorder %v1722, 8.507059e+37
        %v1724 = vand.u32 %v1712, 2147483648
        %v1725 = vor.u32 1.1754944e-38, %v1724
        %v1726 = vsel %vm1723, %v1725, %v1721
        %v1727 = vmul.f32 %v1702, %v1726
        %v1728 = vmin.f32 %v1727, 1.0
        %v1729 = vmax.f32 %v1728, -1.0
        %v1730 = vmul.f32 %v1689, %v1689
        %v1731 = vmin.f32 16.0, %v1730
        %v1732 = vmul.f32 %v1731, 2.1237322e-06
        %v1733 = vadd.f32 %v1732, 0.00028619796
        %v1734 = vmul.f32 %v1731, %v1733
        %v1735 = vadd.f32 %v1734, 0.0036580483
        %v1736 = vmul.f32 %v1731, %v1735
        %v1737 = vadd.f32 %v1736, 0.05243302
        %v1738 = vmul.f32 %v1731, %v1737
        %v1739 = vadd.f32 %v1738, 0.18741608
        %v1740 = vmul.f32 %v1731, %v1739
        %v1741 = vadd.f32 %v1740, 1.1283791
        %v1742 = vmul.f32 %v1689, %v1741
        %v1743 = vmul.f32 %v1731, 3.8918573e-05
        %v1744 = vadd.f32 %v1743, 0.001143296
        %v1745 = vmul.f32 %v1731, %v1744
        %v1746 = vadd.f32 %v1745, 0.014752088
        %v1747 = vmul.f32 %v1731, %v1746
        %v1748 = vadd.f32 %v1747, 0.112945676
        %v1749 = vmul.f32 %v1731, %v1748
        %v1750 = vadd.f32 %v1749, 0.4994258
        %v1751 = vmul.f32 %v1731, %v1750
        %v1752 = vadd.f32 %v1751, 1.0
        %v1753 = vrcp.pop %v1752
        %v1754 = vmul.f32 %v1752, %v1753
        %v1755 = vsub.f32 1.0, %v1754
        %v1756 = vmul.f32 %v1753, %v1755
        %v1757 = vadd.f32 %v1753, %v1756
        %vm1758 = vweird.f32 %v1752
        %vm1759 = vweird.f32 %v1753
        %vm1760 = vmor %vm1758, %vm1759
        %v1761 = vsel %vm1760, %v1753, %v1757
        %v1762 = vand.u32 2147483647, %v1752
        %vm1763 = vcmp.eq.f32.partialorder %v1762, 8.507059e+37
        %v1764 = vand.u32 %v1752, 2147483648
        %v1765 = vor.u32 1.1754944e-38, %v1764
        %v1766 = vsel %vm1763, %v1765, %v1761
        %v1767 = vmul.f32 %v1742, %v1766
        %v1768 = vmin.f32 %v1767, 1.0
        %v1769 = vmax.f32 %v1768, -1.0
        %v1770 = vadd.f32 %v1729, 1.0
        %v1771 = vadd.f32 %v1769, 1.0
        %v1772 = vmul.f32 %v1686, %v1770
        %v1773 = vmul.f32 %v1687, %v1771
        %v1774 = vld [vmem:[%s725] sm:$0xff]
        %v1775 = vld [vmem:[%s725 + $0x8] sm:$0xff]
        %v1776 = vld [vmem:[%s725 + $0x10] sm:$0xff]
        %v1777 = vld [vmem:[%s725 + $0x18] sm:$0xff]
        %v1778 = vld [vmem:[%s725 + $0x20] sm:$0xff]
        %v1779 = vld [vmem:[%s725 + $0x28] sm:$0xff]
        %v1780 = vld [vmem:[%s725 + $0x30] sm:$0xff]
        %v1781 = vld [vmem:[%s725 + $0x38] sm:$0xff]
        %v1782 = vld [vmem:[%s725 + $0x40] sm:$0xff]
        %v1783 = vld [vmem:[%s725 + $0x48] sm:$0xff]
        %v1784 = vld [vmem:[%s725 + $0x50] sm:$0xff]
        %v1785 = vld [vmem:[%s725 + $0x58] sm:$0xff]
        %v1786 = vld [vmem:[%s725 + $0x60] sm:$0xff]
        %v1787 = vld [vmem:[%s725 + $0x68] sm:$0xff]
        %v1788 = vld [vmem:[%s725 + $0x70] sm:$0xff]
        %v1789 = vld [vmem:[%s725 + $0x78] sm:$0xff]
        %v1790 = vld [vmem:[%s875] sm:$0x1]
        %v1791 = vpack.c.bf16 %v1772, %v1772
        %v1792 = vpack.c.bf16 %v1773, %v1773
        %v1794 = vperm.slane %v1790, 0
        %v1812 = vunpack.c.l.b16 %v1774
        %v1813 = vunpack.c.h.b16 %v1774
        %v1814 = vunpack.c.l.b16 %v1775
        %v1815 = vunpack.c.h.b16 %v1775
        %v1816 = vunpack.c.l.b16 %v1776
        %v1817 = vunpack.c.h.b16 %v1776
        %v1818 = vunpack.c.l.b16 %v1777
        %v1819 = vunpack.c.h.b16 %v1777
        %v1820 = vunpack.c.l.b16 %v1778
        %v1821 = vunpack.c.h.b16 %v1778
        %v1822 = vunpack.c.l.b16 %v1779
        %v1823 = vunpack.c.h.b16 %v1779
        %v1824 = vunpack.c.l.b16 %v1780
        %v1825 = vunpack.c.h.b16 %v1780
        %v1826 = vunpack.c.l.b16 %v1781
        %v1827 = vunpack.c.h.b16 %v1781
        %v1828 = vunpack.c.l.b16 %v1782
        %v1829 = vunpack.c.h.b16 %v1782
        %v1830 = vunpack.c.l.b16 %v1783
        %v1831 = vunpack.c.h.b16 %v1783
        %v1832 = vunpack.c.l.b16 %v1784
        %v1833 = vunpack.c.h.b16 %v1784
        %v1834 = vunpack.c.l.b16 %v1785
        %v1835 = vunpack.c.h.b16 %v1785
        %v1836 = vunpack.c.l.b16 %v1786
        %v1837 = vunpack.c.h.b16 %v1786
        %v1838 = vunpack.c.l.b16 %v1787
        %v1839 = vunpack.c.h.b16 %v1787
        %v1840 = vunpack.c.l.b16 %v1788
        %v1841 = vunpack.c.h.b16 %v1788
        %v1842 = vunpack.c.l.b16 %v1789
        %v1843 = vunpack.c.h.b16 %v1789
        %v1844 = vpack.c.b16 %v1814, %v1812
        %v1845 = vpack.c.b16 %v1815, %v1813
        %v1846 = vpack.c.b16 %v1818, %v1816
        %v1847 = vpack.c.b16 %v1819, %v1817
        %v1848 = vpack.c.b16 %v1822, %v1820
        %v1849 = vpack.c.b16 %v1823, %v1821
        %v1850 = vpack.c.b16 %v1826, %v1824
        %v1851 = vpack.c.b16 %v1827, %v1825
        %v1852 = vpack.c.b16 %v1830, %v1828
        %v1853 = vpack.c.b16 %v1831, %v1829
        %v1854 = vpack.c.b16 %v1834, %v1832
        %v1855 = vpack.c.b16 %v1835, %v1833
        %v1856 = vpack.c.b16 %v1838, %v1836
        %v1857 = vpack.c.b16 %v1839, %v1837
        %v1858 = vpack.c.b16 %v1842, %v1840
        %v1859 = vpack.c.b16 %v1843, %v1841
        %1876 = vmatpush.bf16.xpose.msra.mxu0 %v1858
        %1877 = vmatpush.bf16.xpose.msra.mxu0 %v1856
        %1878 = vmatpush.bf16.xpose.msra.mxu0 %v1854
        %1879 = vmatpush.bf16.xpose.msra.mxu0 %v1852
        %1880 = vmatpush.bf16.xpose.msra.mxu0 %v1850
        %1881 = vmatpush.bf16.xpose.msra.mxu0 %v1848
        %1882 = vmatpush.bf16.xpose.msra.mxu0 %v1846
        %1883 = vmatpush.bf16.xpose.msra.mxu0 %v1844
        %1884 = vmatmul.bf16.gmra.mxu0 %v1791
        %v1885 = vpop.f32.mrf.mxu0
        %v1886 = vadd.f32 %v1794, %v1885
        %v1887 = vpop.f32.mrf.mxu0
        %1888 = vdwg.mxu0
        %1889 = vmatpush.bf16.xpose.msra.mxu0 %v1859
        %1890 = vmatpush.bf16.xpose.msra.mxu0 %v1857
        %1891 = vmatpush.bf16.xpose.msra.mxu0 %v1855
        %1892 = vmatpush.bf16.xpose.msra.mxu0 %v1853
        %1893 = vmatpush.bf16.xpose.msra.mxu0 %v1851
        %1894 = vmatpush.bf16.xpose.msra.mxu0 %v1849
        %1895 = vmatpush.bf16.xpose.msra.mxu0 %v1847
        %1896 = vmatpush.bf16.xpose.msra.mxu0 %v1845
        %1897 = vmatmul.bf16.gmra.mxu0 %v1792
        %v1898 = vpop.f32.mrf.mxu0
        %v1899 = vadd.f32 %v1886, %v1898
        %v1900 = vpop.f32.mrf.mxu0
        %1901 = vdwg.mxu0
        %v1902 = vadd.f32 %v1494, %v1899
        %1903 = vst [vmem:[#allocation2] sm:$0xff] %v1902
        %p1904 = scmp.eq.s32.totalorder %s48, 1
        // Predicated region
        $region105: #{_lambda_.5} parent=91 // pred_check
          %p1905 = pneg %p1904
        $region106: #{_lambda_.5} parent=91 // pred_check_branch
          %1907 = sbr.rel (%p1905) target = $region108
        $region107: #{_lambda_.5} parent=91 // pred_region
          %v1908 = vld [vmem:[%s15] sm:$0x1]
          %v1909 = vld [vmem:[%s16] sm:$0x1]
          %1910 = vadd.xlane.f32.xlu0 %v1902
          %v1911 = vpop.xlane.xlu0 %1910
          %v1912 = vmul.f32 %v1911, %v897
          %v1913 = vsub.f32 %v1902, %v1912
          %v1914 = vmul.f32 %v1913, %v1913
          %1915 = vadd.xlane.f32.xlu0 %v1914
          %v1916 = vpop.xlane.xlu0 %1915
          %v1917 = vmul.f32 %v1916, %v897
          %v1918 = vadd.f32 %v1917, 1e-05
          %v1919 = vrsqrt.pop %v1918
          %v1920 = vmul.f32 %v1919, %v1918
          %v1921 = vmul.f32 %v1920, %v1919
          %v1922 = vmul.f32 0.5, %v1921
          %v1923 = vsub.f32 1.5, %v1922
          %v1924 = vmul.f32 %v1919, %v1923
          %vm1925 = vweird.f32 %v1918
          %vm1926 = vweird.f32 %v1919
          %vm1927 = vmor %vm1925, %vm1926
          %v1928 = vsel %vm1927, %v1919, %v1924
          %v1929 = vmul.f32 %v1913, %v1928
          %v1931 = vperm.slane %v1908, 0
          %v1933 = vmul.f32 %v1929, %v1931
          %v1935 = vperm.slane %v1909, 0
          %v1937 = vadd.f32 %v1933, %v1935
          %1938 = vst [vmem:[%s826] sm:$0xff] %v1937
          %v1939 = vpack.c.bf16 %v1937, %v1937
          %v1940 = vld [vmem:[%s17] sm:$0xf]
          %v1941 = vld [vmem:[%s17 + $0x4] sm:$0xf]
          %v1942 = vld [vmem:[%s17 + $0x8] sm:$0xf]
          %v1943 = vld [vmem:[%s17 + $0xc] sm:$0xf]
          %v1944 = vld [vmem:[%s17 + $0x10] sm:$0xf]
          %v1945 = vld [vmem:[%s17 + $0x14] sm:$0xf]
          %v1946 = vld [vmem:[%s17 + $0x18] sm:$0xf]
          %v1947 = vld [vmem:[%s17 + $0x1c] sm:$0xf]
          %v1948 = vld [vmem:[%s17 + $0x20] sm:$0xf]
          %v1949 = vld [vmem:[%s17 + $0x24] sm:$0xf]
          %v1950 = vld [vmem:[%s17 + $0x28] sm:$0xf]
          %v1951 = vld [vmem:[%s17 + $0x2c] sm:$0xf]
          %v1952 = vld [vmem:[%s17 + $0x30] sm:$0xf]
          %v1953 = vld [vmem:[%s17 + $0x34] sm:$0xf]
          %v1954 = vld [vmem:[%s17 + $0x38] sm:$0xf]
          %v1955 = vld [vmem:[%s17 + $0x3c] sm:$0xf]
          %v1972 = vunpack.c.l.b16 %v1940
          %v1973 = vunpack.c.l.b16 %v1941
          %v1974 = vunpack.c.l.b16 %v1942
          %v1975 = vunpack.c.l.b16 %v1943
          %v1976 = vunpack.c.l.b16 %v1944
          %v1977 = vunpack.c.l.b16 %v1945
          %v1978 = vunpack.c.l.b16 %v1946
          %v1979 = vunpack.c.l.b16 %v1947
          %v1980 = vunpack.c.l.b16 %v1948
          %v1981 = vunpack.c.l.b16 %v1949
          %v1982 = vunpack.c.l.b16 %v1950
          %v1983 = vunpack.c.l.b16 %v1951
          %v1984 = vunpack.c.l.b16 %v1952
          %v1985 = vunpack.c.l.b16 %v1953
          %v1986 = vunpack.c.l.b16 %v1954
          %v1987 = vunpack.c.l.b16 %v1955
          %v1988 = vpack.c.b16 %v1973, %v1972
          %v1989 = vpack.c.b16 %v1975, %v1974
          %v1990 = vpack.c.b16 %v1977, %v1976
          %v1991 = vpack.c.b16 %v1979, %v1978
          %v1992 = vpack.c.b16 %v1981, %v1980
          %v1993 = vpack.c.b16 %v1983, %v1982
          %v1994 = vpack.c.b16 %v1985, %v1984
          %v1995 = vpack.c.b16 %v1987, %v1986
          %2004 = vmatpush.bf16.xpose.msra.mxu0 %v1995
          %2005 = vmatpush.bf16.xpose.msra.mxu0 %v1994
          %2006 = vmatpush.bf16.xpose.msra.mxu0 %v1993
          %2007 = vmatpush.bf16.xpose.msra.mxu0 %v1992
          %2008 = vmatpush.bf16.xpose.msra.mxu0 %v1991
          %2009 = vmatpush.bf16.xpose.msra.mxu0 %v1990
          %2010 = vmatpush.bf16.xpose.msra.mxu0 %v1989
          %2011 = vmatpush.bf16.xpose.msra.mxu0 %v1988
          %2012 = vmatmul.bf16.gmra.mxu0 %v1939
          %v2013 = vpop.f32.mrf.mxu0
          %v2014 = vadd.f32 0.0, %v2013
          %v2015 = vpop.f32.mrf.mxu0
          %2016 = vdwg.mxu0
          %v2017 = vmul.f32 %v2014, %v2014
          %vm2018 = vcmask 1040384
          %v2019 = vsel %vm2018, %v2017, 0.0
          %2020 = vadd.xlane.f32.xlu0 %v2019
          %v2021 = vpop.xlane.xlu0 %2020
          %v2022 = vmax.f32 %v2021, 1e-24
          %v2023 = vrsqrt.pop %v2022
          %v2024 = vmul.f32 %v2023, %v2022
          %v2025 = vmul.f32 %v2024, %v2023
          %v2026 = vmul.f32 0.5, %v2025
          %v2027 = vsub.f32 1.5, %v2026
          %v2028 = vmul.f32 %v2023, %v2027
          %vm2029 = vweird.f32 %v2022
          %vm2030 = vweird.f32 %v2023
          %vm2031 = vmor %vm2029, %vm2030
          %v2032 = vsel %vm2031, %v2023, %v2028
          %v2033 = vmul.f32 %v2014, %v2032
          %2034 = vst [vmem:[%s832] sm:$0x1] %v2033
        $region108: #{_lambda_.5} parent=91 // pred_fallthru
          _
        %s2035 = sand.u32 %s511, 1
        %s2036 = scalar_lea.sflag [#allocation5], %s2035
        %s2037 = sand.u32 %s511, 1
        %s2038 = smul.addr %s2037, 8
        %s2039 = scalar_lea.vmem [#allocation8], %s2038
        %s2040 = sand.u32 %s537, 1
        %s2041 = scalar_lea.sflag [#allocation10], %s2040
        %s2042 = sand.u32 %s537, 1
        %s2043 = scalar_lea.vmem [#allocation9], %s2042
        // Predicated region
        $region109: #{_lambda_.5} parent=91 // pred_check
          %p2044 = pneg %p521
        $region110: #{_lambda_.5} parent=91 // pred_check_branch
          %2046 = sbr.rel (%p2044) target = $region112
        $region111: #{_lambda_.5} parent=91 // pred_region
          %2048 = vsyncadd %s2036, 0
          %s2049 = smul.addr %s47, 8
          %s2050 = scalar_lea.hbm %s18, %s2049
          %s2052 = sshll.u32 %s2039, 4
          %s2053 = int_to_ptr.vmem [resolvable:$true] %s2052
          %s2054 = sshll.u32 %s2050, 4
          %s2055 = int_to_ptr.hbm [resolvable:$true] %s2054
          %2057 = dma.vmem_to_hbm [thread:$0]  %s2053, 128, %s2055, %s2036
        $region112: #{_lambda_.5} parent=91 // pred_fallthru
          _
        // Predicated region
        $region113: #{_lambda_.5} parent=91 // pred_check
          %p2058 = pneg %p547
        $region114: #{_lambda_.5} parent=91 // pred_check_branch
          %2060 = sbr.rel (%p2058) target = $region116
        $region115: #{_lambda_.5} parent=91 // pred_region
          %2062 = vsyncadd %s2041, 0
          %s2063 = scalar_lea.hbm %s19, %s47
          %s2065 = sshll.u32 %s2043, 4
          %s2066 = int_to_ptr.vmem [resolvable:$true] %s2065
          %s2067 = sshll.u32 %s2063, 4
          %s2068 = int_to_ptr.hbm [resolvable:$true] %s2067
          %2070 = dma.vmem_to_hbm [thread:$0]  %s2066, 16, %s2068, %s2041
        $region116: #{_lambda_.5} parent=91 // pred_fallthru
          _
      $region92: #{_lambda_.5} parent=5 // pred_fallthru
        _
      %p2071 = scmp.le.s32.totalorder 2, %s38
      // Predicated region
      $region117: #{_lambda_.5} parent=5 // pred_check
        %p2072 = pneg %p2071
      $region118: #{_lambda_.5} parent=5 // pred_check_branch
        %2074 = sbr.rel (%p2072) target = $region120
      $region119: #{_lambda_.5} parent=5 // pred_region
        %s2075 = ssub.s32 %s38, 2
        // Predicated region
        $region121: #{_lambda_.5} parent=119 // pred_check
          %p2076 = pneg %p527
        $region122: #{_lambda_.5} parent=119 // pred_check_branch
          %2078 = sbr.rel (%p2076) target = $region124
        $region123: #{_lambda_.5} parent=119 // pred_region
          %s2079 = sand.u32 %s512, 1
          %s2080 = scalar_lea.sflag [#allocation5], %s2079
          %s2081 = sand.u32 %s512, 1
          %s2082 = smul.addr %s2081, 8
          %s2083 = scalar_lea.vmem [#allocation8], %s2082
          %2085 = dma.done %s2080, 128
        $region124: #{_lambda_.5} parent=119 // pred_fallthru
          _
        // Predicated region
        $region125: #{_lambda_.5} parent=119 // pred_check
          %p2086 = pneg %p553
        $region126: #{_lambda_.5} parent=119 // pred_check_branch
          %2088 = sbr.rel (%p2086) target = $region128
        $region127: #{_lambda_.5} parent=119 // pred_region
          %s2089 = sand.u32 %s538, 1
          %s2090 = scalar_lea.sflag [#allocation10], %s2089
          %s2091 = sand.u32 %s538, 1
          %s2092 = scalar_lea.vmem [#allocation9], %s2091
          %2094 = dma.done %s2090, 16
        $region128: #{_lambda_.5} parent=119 // pred_fallthru
          _
      $region120: #{_lambda_.5} parent=5 // pred_fallthru
        _
    $region6: #{_lambda_.5} parent=1 // loop_footer
      %s42 = sadd.s32 1, %s38
    $region7: #{_lambda_.5} parent=1 // loop_footer_branch
      %37 = sbr.rel target = $region3
    $region8: #{_lambda_.5} parent=1 // loop_exit
      _
    %2095 = vsyncpa [#allocation4], 1
    %s2096 = scalar_lea.sflag [#allocation4], 1
    %2097 = vsyncpa %s2096, 1
    %2098 = vsyncpa [#allocation7], 1
    %s2099 = scalar_lea.sflag [#allocation7], 1
    %2100 = vsyncpa %s2099, 1
    %2101 = vsyncpa [#allocation5], 1
    %s2102 = scalar_lea.sflag [#allocation5], 1
    %2103 = vsyncpa %s2102, 1
    %2104 = vsyncpa [#allocation10], 1
    %s2105 = scalar_lea.sflag [#allocation10], 1
    %2106 = vsyncpa %s2105, 1

// kernel: _lambda_.4
$region0: #{_lambda_.4}
  #allocation0 [shape = 'u32[]', space=smem, size = 0x4, offset = 0x4, fixed_abs, tag = 'smem constant byte address 0x4 - core index']
  #allocation1 [shape = 'u32[72,128]{1,0:T(1,128)}', space=vmem, size = 0x9000, scoped, tag = 'internal scratch']
  #allocation2 [shape = 'f32[5,128]{1,0:T(8,128)}', space=vmem, size = 0x1000, scoped, tag = 'scratch operand']
  %s0 = inlined_call_operand.vmem [shape: f32[2,5,128], index: 0, kind: input, shape index: {}]
  %s1 = inlined_call_operand.vmem [shape: f32[5,128], index: 1, kind: input, shape index: {}]
  %s2 = inlined_call_operand.vmem [shape: f32[2,1,5], index: 2, kind: input, shape index: {}]
  %s3 = inlined_call_operand.vmem [shape: f32[2,1,128], index: 3, kind: input, shape index: {}]
  %s4 = inlined_call_operand.vmem [shape: f32[2,1,128], index: 4, kind: input, shape index: {}]
  %s5 = inlined_call_operand.vmem [shape: bf16[2,384,128], index: 5, kind: input, shape index: {}]
  %s6 = inlined_call_operand.vmem [shape: f32[2,1,384], index: 6, kind: input, shape index: {}]
  %s7 = inlined_call_operand.vmem [shape: bf16[2,128,128], index: 7, kind: input, shape index: {}]
  %s8 = inlined_call_operand.vmem [shape: f32[2,1,128], index: 8, kind: input, shape index: {}]
  %s9 = inlined_call_operand.vmem [shape: f32[2,1,128], index: 9, kind: input, shape index: {}]
  %s10 = inlined_call_operand.vmem [shape: f32[2,1,128], index: 10, kind: input, shape index: {}]
  %s11 = inlined_call_operand.hbm [shape: bf16[2,256,128], index: 11, kind: input, shape index: {}]
  %s12 = inlined_call_operand.vmem [shape: f32[2,1,256], index: 12, kind: input, shape index: {}]
  %s13 = inlined_call_operand.hbm [shape: bf16[2,128,256], index: 13, kind: input, shape index: {}]
  %s14 = inlined_call_operand.vmem [shape: f32[2,1,128], index: 14, kind: input, shape index: {}]
  %s15 = inlined_call_operand.vmem [shape: f32[1,128], index: 15, kind: input, shape index: {}]
  %s16 = inlined_call_operand.vmem [shape: f32[1,128], index: 16, kind: input, shape index: {}]
  %s17 = inlined_call_operand.vmem [shape: bf16[128,128], index: 17, kind: input, shape index: {}]
  %s18 = inlined_call_operand.hbm [shape: f32[2,5,128], index: 18, kind: output, shape index: {0}]
  %s19 = inlined_call_operand.hbm [shape: f32[2,1,128], index: 19, kind: output, shape index: {1}]
  %20 = xla_tuple %s18, %s19
  %s21 = sld [smem:[#allocation0]]
  $region129: #{_lambda_.4} parent=0
    _
  %s23 = ssub.s32 1, %s21
  %s24 = scalar_select 0, %s23, %s21
  $region1: #{_lambda_.4} parent=0
    #allocation3 [shape = 'u8[131072]{0}', space=vmem, size = 0x20000, scoped, tag = 'input window, operand 11']
    #allocation4 [shape = 's32[2]{0}', space=sflag, size = 0x8, scoped, tag = 'scoped memory for _lambda_.4']
    #allocation5 [shape = 's32[2]{0}', space=sflag, size = 0x8, scoped, tag = 'scoped memory for _lambda_.4']
    #allocation6 [shape = 'u8[131072]{0}', space=vmem, size = 0x20000, scoped, tag = 'input window, operand 13']
    #allocation7 [shape = 's32[2]{0}', space=sflag, size = 0x8, scoped, tag = 'scoped memory for _lambda_.4']
    #allocation8 [shape = 'u8[8192]{0}', space=vmem, size = 0x2000, scoped, tag = 'output window, operand 0']
    #allocation9 [shape = 'u8[1024]{0}', space=vmem, size = 0x400, scoped, tag = 'output window, operand 1']
    #allocation10 [shape = 's32[2]{0}', space=sflag, size = 0x8, scoped, tag = 'scoped memory for _lambda_.4']
    %25 = vsyncpa [#allocation4], 0
    %s26 = scalar_lea.sflag [#allocation4], 1
    %27 = vsyncpa %s26, 0
    %28 = vsyncpa [#allocation7], 0
    %s29 = scalar_lea.sflag [#allocation7], 1
    %30 = vsyncpa %s29, 0
    %31 = vsyncpa [#allocation5], 0
    %s32 = scalar_lea.sflag [#allocation5], 1
    %33 = vsyncpa %s32, 0
    %34 = vsyncpa [#allocation10], 0
    %s35 = scalar_lea.sflag [#allocation10], 1
    %36 = vsyncpa %s35, 0
    loop: start=0, step=1, limit=6
    $region2: #{_lambda_.4} parent=1 // loop_pre_header
      _
    $region3: #{_lambda_.4} parent=1 // loop_header
      %s38 = sphi 0, %s42
      %p39 = scmp.ge.s32.totalorder %s38, 6
      %s45 = sphi 0, %s57
      %s46 = sphi 0, %s53
      %s47 = sphi 0, %s45
      %s48 = sphi 0, %s46
      %s49 = sphi 0, %s47
      %s50 = sphi 0, %s48
      %s60 = sphi 0, %s62
      %s63 = sphi 0, %s60
      %s64 = sphi 0, %s63
      %s80 = sphi 0, %s64
      %s84 = sphi 0, %s84
      %s86 = sphi 0, %s84
      %s87 = sphi 0, %s86
      %s101 = sphi 0, %s87
      %s107 = sphi 0, %s109
      %s110 = sphi 0, %s107
      %s111 = sphi 0, %s110
      %s127 = sphi 0, %s111
      %s133 = sphi 0, %s135
      %s136 = sphi 0, %s133
      %s137 = sphi 0, %s136
      %s153 = sphi 0, %s137
      %s159 = sphi 0, %s161
      %s162 = sphi 0, %s159
      %s163 = sphi 0, %s162
      %s179 = sphi 0, %s163
      %s185 = sphi 0, %s187
      %s188 = sphi 0, %s185
      %s189 = sphi 0, %s188
      %s205 = sphi 0, %s189
      %s211 = sphi 0, %s213
      %s214 = sphi 0, %s211
      %s215 = sphi 0, %s214
      %s231 = sphi 0, %s215
      %s237 = sphi 0, %s239
      %s240 = sphi 0, %s237
      %s241 = sphi 0, %s240
      %s257 = sphi 0, %s241
      %s263 = sphi 0, %s265
      %s266 = sphi 0, %s263
      %s267 = sphi 0, %s266
      %s283 = sphi 0, %s267
      %s289 = sphi 0, %s291
      %s292 = sphi 0, %s289
      %s293 = sphi 0, %s292
      %s309 = sphi 0, %s293
      %s315 = sphi 0, %s317
      %s318 = sphi 0, %s315
      %s319 = sphi 0, %s318
      %s335 = sphi 0, %s319
      %s341 = sphi 0, %s343
      %s344 = sphi 0, %s341
      %s345 = sphi 0, %s344
      %s361 = sphi 0, %s345
      %s367 = sphi 0, %s369
      %s370 = sphi 0, %s367
      %s371 = sphi 0, %s370
      %s387 = sphi 0, %s371
      %s393 = sphi 0, %s395
      %s396 = sphi 0, %s393
      %s397 = sphi 0, %s396
      %s413 = sphi 0, %s397
      %s419 = sphi 0, %s421
      %s422 = sphi 0, %s419
      %s423 = sphi 0, %s422
      %s439 = sphi 0, %s423
      %s443 = sphi 0, %s443
      %s445 = sphi 0, %s443
      %s446 = sphi 0, %s445
      %s460 = sphi 0, %s446
      %s464 = sphi 0, %s464
      %s466 = sphi 0, %s464
      %s467 = sphi 0, %s466
      %s481 = sphi 0, %s467
      %s485 = sphi 0, %s485
      %s487 = sphi 0, %s485
      %s488 = sphi 0, %s487
      %s502 = sphi 0, %s488
      %s508 = sphi 0, %s510
      %s511 = sphi 0, %s508
      %s512 = sphi 0, %s511
      %s528 = sphi 0, %s512
      %s534 = sphi 0, %s536
      %s537 = sphi 0, %s534
      %s538 = sphi 0, %s537
      %s554 = sphi 0, %s538
    $region4: #{_lambda_.4} parent=1 // loop_header_branch
      %41 = sbr.rel (%p39) target = $region8
    $region5: #{_lambda_.4} parent=1 // loop_body
      %s43 = ssub.s32 %s38, 1
      %s44 = ssub.s32 %s38, 2
      %s51 = sadd.s32 1, %s46
      %p52 = scmp.ge.s32.totalorder %s51, 2
      %s53 = scalar_select %p52, 0, %s51
      %s54 = sadd.s32 1, %s45
      %s55 = scalar_select %p52, %s54, %s45
      %p56 = scmp.ge.s32.totalorder %s55, 2
      %s57 = scalar_select %p56, 0, %s55
      %s58 = ssub.s32 %s45, %s57
      %p59 = scmp.eq.s32.totalorder %s58, 0
      %s61 = sadd.s32 %s60, 1
      %s62 = scalar_select %p59, %s60, %s61
      %p65 = pneg %p59
      %p66 = scmp.eq.s32.totalorder %s38, 3
      %p67 = por %p65, %p66
      %p68 = scmp.ne.s32.totalorder %s60, %s63
      %p69 = scmp.eq.s32.totalorder %s38, 0
      %p70 = por %p68, %p69
      %p71 = scmp.ne.s32.totalorder %s60, %s63
      %p72 = scmp.eq.s32.totalorder %s43, 3
      %p73 = por %p71, %p72
      %p74 = scmp.ne.s32.totalorder %s63, %s64
      %p75 = scmp.eq.s32.totalorder %s43, 0
      %p76 = por %p74, %p75
      %p77 = scmp.ne.s32.totalorder %s63, %s64
      %p78 = scmp.eq.s32.totalorder %s44, 3
      %p79 = por %p77, %p78
      %p81 = scmp.ne.s32.totalorder %s64, %s80
      %p82 = scmp.eq.s32.totalorder %s44, 0
      %p83 = por %p81, %p82
      %s85 = sadd.s32 %s84, 1
      %p88 = scmp.eq.s32.totalorder %s38, 3
      %p89 = scmp.ne.s32.totalorder %s84, %s86
      %p90 = scmp.eq.s32.totalorder %s38, 0
      %p91 = por %p89, %p90
      %p92 = scmp.ne.s32.totalorder %s84, %s86
      %p93 = scmp.eq.s32.totalorder %s43, 3
      %p94 = por %p92, %p93
      %p95 = scmp.ne.s32.totalorder %s86, %s87
      %p96 = scmp.eq.s32.totalorder %s43, 0
      %p97 = por %p95, %p96
      %p98 = scmp.ne.s32.totalorder %s86, %s87
      %p99 = scmp.eq.s32.totalorder %s44, 3
      %p100 = por %p98, %p99
      %p102 = scmp.ne.s32.totalorder %s87, %s101
      %p103 = scmp.eq.s32.totalorder %s44, 0
      %p104 = por %p102, %p103
      %s105 = ssub.s32 %s45, %s57
      %p106 = scmp.eq.s32.totalorder %s105, 0
      %s108 = sadd.s32 %s107, 1
      %s109 = scalar_select %p106, %s107, %s108
      %p112 = pneg %p106
      %p113 = scmp.eq.s32.totalorder %s38, 3
      %p114 = por %p112, %p113
      %p115 = scmp.ne.s32.totalorder %s107, %s110
      %p116 = scmp.eq.s32.totalorder %s38, 0
      %p117 = por %p115, %p116
      %p118 = scmp.ne.s32.totalorder %s107, %s110
      %p119 = scmp.eq.s32.totalorder %s43, 3
      %p120 = por %p118, %p119
      %p121 = scmp.ne.s32.totalorder %s110, %s111
      %p122 = scmp.eq.s32.totalorder %s43, 0
      %p123 = por %p121, %p122
      %p124 = scmp.ne.s32.totalorder %s110, %s111
      %p125 = scmp.eq.s32.totalorder %s44, 3
      %p126 = por %p124, %p125
      %p128 = scmp.ne.s32.totalorder %s111, %s127
      %p129 = scmp.eq.s32.totalorder %s44, 0
      %p130 = por %p128, %p129
      %s131 = ssub.s32 %s46, %s53
      %p132 = scmp.eq.s32.totalorder %s131, 0
      %s134 = sadd.s32 %s133, 1
      %s135 = scalar_select %p132, %s133, %s134
      %p138 = pneg %p132
      %p139 = scmp.eq.s32.totalorder %s38, 3
      %p140 = por %p138, %p139
      %p141 = scmp.ne.s32.totalorder %s133, %s136
      %p142 = scmp.eq.s32.totalorder %s38, 0
      %p143 = por %p141, %p142
      %p144 = scmp.ne.s32.totalorder %s133, %s136
      %p145 = scmp.eq.s32.totalorder %s43, 3
      %p146 = por %p144, %p145
      %p147 = scmp.ne.s32.totalorder %s136, %s137
      %p148 = scmp.eq.s32.totalorder %s43, 0
      %p149 = por %p147, %p148
      %p150 = scmp.ne.s32.totalorder %s136, %s137
      %p151 = scmp.eq.s32.totalorder %s44, 3
      %p152 = por %p150, %p151
      %p154 = scmp.ne.s32.totalorder %s137, %s153
      %p155 = scmp.eq.s32.totalorder %s44, 0
      %p156 = por %p154, %p155
      %s157 = ssub.s32 %s46, %s53
      %p158 = scmp.eq.s32.totalorder %s157, 0
      %s160 = sadd.s32 %s159, 1
      %s161 = scalar_select %p158, %s159, %s160
      %p164 = pneg %p158
      %p165 = scmp.eq.s32.totalorder %s38, 3
      %p166 = por %p164, %p165
      %p167 = scmp.ne.s32.totalorder %s159, %s162
      %p168 = scmp.eq.s32.totalorder %s38, 0
      %p169 = por %p167, %p168
      %p170 = scmp.ne.s32.totalorder %s159, %s162
      %p171 = scmp.eq.s32.totalorder %s43, 3
      %p172 = por %p170, %p171
      %p173 = scmp.ne.s32.totalorder %s162, %s163
      %p174 = scmp.eq.s32.totalorder %s43, 0
      %p175 = por %p173, %p174
      %p176 = scmp.ne.s32.totalorder %s162, %s163
      %p177 = scmp.eq.s32.totalorder %s44, 3
      %p178 = por %p176, %p177
      %p180 = scmp.ne.s32.totalorder %s163, %s179
      %p181 = scmp.eq.s32.totalorder %s44, 0
      %p182 = por %p180, %p181
      %s183 = ssub.s32 %s46, %s53
      %p184 = scmp.eq.s32.totalorder %s183, 0
      %s186 = sadd.s32 %s185, 1
      %s187 = scalar_select %p184, %s185, %s186
      %p190 = pneg %p184
      %p191 = scmp.eq.s32.totalorder %s38, 3
      %p192 = por %p190, %p191
      %p193 = scmp.ne.s32.totalorder %s185, %s188
      %p194 = scmp.eq.s32.totalorder %s38, 0
      %p195 = por %p193, %p194
      %p196 = scmp.ne.s32.totalorder %s185, %s188
      %p197 = scmp.eq.s32.totalorder %s43, 3
      %p198 = por %p196, %p197
      %p199 = scmp.ne.s32.totalorder %s188, %s189
      %p200 = scmp.eq.s32.totalorder %s43, 0
      %p201 = por %p199, %p200
      %p202 = scmp.ne.s32.totalorder %s188, %s189
      %p203 = scmp.eq.s32.totalorder %s44, 3
      %p204 = por %p202, %p203
      %p206 = scmp.ne.s32.totalorder %s189, %s205
      %p207 = scmp.eq.s32.totalorder %s44, 0
      %p208 = por %p206, %p207
      %s209 = ssub.s32 %s46, %s53
      %p210 = scmp.eq.s32.totalorder %s209, 0
      %s212 = sadd.s32 %s211, 1
      %s213 = scalar_select %p210, %s211, %s212
      %p216 = pneg %p210
      %p217 = scmp.eq.s32.totalorder %s38, 3
      %p218 = por %p216, %p217
      %p219 = scmp.ne.s32.totalorder %s211, %s214
      %p220 = scmp.eq.s32.totalorder %s38, 0
      %p221 = por %p219, %p220
      %p222 = scmp.ne.s32.totalorder %s211, %s214
      %p223 = scmp.eq.s32.totalorder %s43, 3
      %p224 = por %p222, %p223
      %p225 = scmp.ne.s32.totalorder %s214, %s215
      %p226 = scmp.eq.s32.totalorder %s43, 0
      %p227 = por %p225, %p226
      %p228 = scmp.ne.s32.totalorder %s214, %s215
      %p229 = scmp.eq.s32.totalorder %s44, 3
      %p230 = por %p228, %p229
      %p232 = scmp.ne.s32.totalorder %s215, %s231
      %p233 = scmp.eq.s32.totalorder %s44, 0
      %p234 = por %p232, %p233
      %s235 = ssub.s32 %s46, %s53
      %p236 = scmp.eq.s32.totalorder %s235, 0
      %s238 = sadd.s32 %s237, 1
      %s239 = scalar_select %p236, %s237, %s238
      %p242 = pneg %p236
      %p243 = scmp.eq.s32.totalorder %s38, 3
      %p244 = por %p242, %p243
      %p245 = scmp.ne.s32.totalorder %s237, %s240
      %p246 = scmp.eq.s32.totalorder %s38, 0
      %p247 = por %p245, %p246
      %p248 = scmp.ne.s32.totalorder %s237, %s240
      %p249 = scmp.eq.s32.totalorder %s43, 3
      %p250 = por %p248, %p249
      %p251 = scmp.ne.s32.totalorder %s240, %s241
      %p252 = scmp.eq.s32.totalorder %s43, 0
      %p253 = por %p251, %p252
      %p254 = scmp.ne.s32.totalorder %s240, %s241
      %p255 = scmp.eq.s32.totalorder %s44, 3
      %p256 = por %p254, %p255
      %p258 = scmp.ne.s32.totalorder %s241, %s257
      %p259 = scmp.eq.s32.totalorder %s44, 0
      %p260 = por %p258, %p259
      %s261 = ssub.s32 %s46, %s53
      %p262 = scmp.eq.s32.totalorder %s261, 0
      %s264 = sadd.s32 %s263, 1
      %s265 = scalar_select %p262, %s263, %s264
      %p268 = pneg %p262
      %p269 = scmp.eq.s32.totalorder %s38, 3
      %p270 = por %p268, %p269
      %p271 = scmp.ne.s32.totalorder %s263, %s266
      %p272 = scmp.eq.s32.totalorder %s38, 0
      %p273 = por %p271, %p272
      %p274 = scmp.ne.s32.totalorder %s263, %s266
      %p275 = scmp.eq.s32.totalorder %s43, 3
      %p276 = por %p274, %p275
      %p277 = scmp.ne.s32.totalorder %s266, %s267
      %p278 = scmp.eq.s32.totalorder %s43, 0
      %p279 = por %p277, %p278
      %p280 = scmp.ne.s32.totalorder %s266, %s267
      %p281 = scmp.eq.s32.totalorder %s44, 3
      %p282 = por %p280, %p281
      %p284 = scmp.ne.s32.totalorder %s267, %s283
      %p285 = scmp.eq.s32.totalorder %s44, 0
      %p286 = por %p284, %p285
      %s287 = ssub.s32 %s46, %s53
      %p288 = scmp.eq.s32.totalorder %s287, 0
      %s290 = sadd.s32 %s289, 1
      %s291 = scalar_select %p288, %s289, %s290
      %p294 = pneg %p288
      %p295 = scmp.eq.s32.totalorder %s38, 3
      %p296 = por %p294, %p295
      %p297 = scmp.ne.s32.totalorder %s289, %s292
      %p298 = scmp.eq.s32.totalorder %s38, 0
      %p299 = por %p297, %p298
      %p300 = scmp.ne.s32.totalorder %s289, %s292
      %p301 = scmp.eq.s32.totalorder %s43, 3
      %p302 = por %p300, %p301
      %p303 = scmp.ne.s32.totalorder %s292, %s293
      %p304 = scmp.eq.s32.totalorder %s43, 0
      %p305 = por %p303, %p304
      %p306 = scmp.ne.s32.totalorder %s292, %s293
      %p307 = scmp.eq.s32.totalorder %s44, 3
      %p308 = por %p306, %p307
      %p310 = scmp.ne.s32.totalorder %s293, %s309
      %p311 = scmp.eq.s32.totalorder %s44, 0
      %p312 = por %p310, %p311
      %s313 = ssub.s32 %s46, %s53
      %p314 = scmp.eq.s32.totalorder %s313, 0
      %s316 = sadd.s32 %s315, 1
      %s317 = scalar_select %p314, %s315, %s316
      %p320 = pneg %p314
      %p321 = scmp.eq.s32.totalorder %s38, 3
      %p322 = por %p320, %p321
      %p323 = scmp.ne.s32.totalorder %s315, %s318
      %p324 = scmp.eq.s32.totalorder %s38, 0
      %p325 = por %p323, %p324
      %p326 = scmp.ne.s32.totalorder %s315, %s318
      %p327 = scmp.eq.s32.totalorder %s43, 3
      %p328 = por %p326, %p327
      %p329 = scmp.ne.s32.totalorder %s318, %s319
      %p330 = scmp.eq.s32.totalorder %s43, 0
      %p331 = por %p329, %p330
      %p332 = scmp.ne.s32.totalorder %s318, %s319
      %p333 = scmp.eq.s32.totalorder %s44, 3
      %p334 = por %p332, %p333
      %p336 = scmp.ne.s32.totalorder %s319, %s335
      %p337 = scmp.eq.s32.totalorder %s44, 0
      %p338 = por %p336, %p337
      %s339 = ssub.s32 %s46, %s53
      %p340 = scmp.eq.s32.totalorder %s339, 0
      %s342 = sadd.s32 %s341, 1
      %s343 = scalar_select %p340, %s341, %s342
      %p346 = pneg %p340
      %p347 = scmp.eq.s32.totalorder %s38, 3
      %p348 = por %p346, %p347
      %p349 = scmp.ne.s32.totalorder %s341, %s344
      %p350 = scmp.eq.s32.totalorder %s38, 0
      %p351 = por %p349, %p350
      %p352 = scmp.ne.s32.totalorder %s341, %s344
      %p353 = scmp.eq.s32.totalorder %s43, 3
      %p354 = por %p352, %p353
      %p355 = scmp.ne.s32.totalorder %s344, %s345
      %p356 = scmp.eq.s32.totalorder %s43, 0
      %p357 = por %p355, %p356
      %p358 = scmp.ne.s32.totalorder %s344, %s345
      %p359 = scmp.eq.s32.totalorder %s44, 3
      %p360 = por %p358, %p359
      %p362 = scmp.ne.s32.totalorder %s345, %s361
      %p363 = scmp.eq.s32.totalorder %s44, 0
      %p364 = por %p362, %p363
      %s365 = ssub.s32 %s46, %s53
      %p366 = scmp.eq.s32.totalorder %s365, 0
      %s368 = sadd.s32 %s367, 1
      %s369 = scalar_select %p366, %s367, %s368
      %p372 = pneg %p366
      %p373 = scmp.eq.s32.totalorder %s38, 3
      %p374 = por %p372, %p373
      %p375 = scmp.ne.s32.totalorder %s367, %s370
      %p376 = scmp.eq.s32.totalorder %s38, 0
      %p377 = por %p375, %p376
      %p378 = scmp.ne.s32.totalorder %s367, %s370
      %p379 = scmp.eq.s32.totalorder %s43, 3
      %p380 = por %p378, %p379
      %p381 = scmp.ne.s32.totalorder %s370, %s371
      %p382 = scmp.eq.s32.totalorder %s43, 0
      %p383 = por %p381, %p382
      %p384 = scmp.ne.s32.totalorder %s370, %s371
      %p385 = scmp.eq.s32.totalorder %s44, 3
      %p386 = por %p384, %p385
      %p388 = scmp.ne.s32.totalorder %s371, %s387
      %p389 = scmp.eq.s32.totalorder %s44, 0
      %p390 = por %p388, %p389
      %s391 = ssub.s32 %s46, %s53
      %p392 = scmp.eq.s32.totalorder %s391, 0
      %s394 = sadd.s32 %s393, 1
      %s395 = scalar_select %p392, %s393, %s394
      %p398 = pneg %p392
      %p399 = scmp.eq.s32.totalorder %s38, 3
      %p400 = por %p398, %p399
      %p401 = scmp.ne.s32.totalorder %s393, %s396
      %p402 = scmp.eq.s32.totalorder %s38, 0
      %p403 = por %p401, %p402
      %p404 = scmp.ne.s32.totalorder %s393, %s396
      %p405 = scmp.eq.s32.totalorder %s43, 3
      %p406 = por %p404, %p405
      %p407 = scmp.ne.s32.totalorder %s396, %s397
      %p408 = scmp.eq.s32.totalorder %s43, 0
      %p409 = por %p407, %p408
      %p410 = scmp.ne.s32.totalorder %s396, %s397
      %p411 = scmp.eq.s32.totalorder %s44, 3
      %p412 = por %p410, %p411
      %p414 = scmp.ne.s32.totalorder %s397, %s413
      %p415 = scmp.eq.s32.totalorder %s44, 0
      %p416 = por %p414, %p415
      %s417 = ssub.s32 %s46, %s53
      %p418 = scmp.eq.s32.totalorder %s417, 0
      %s420 = sadd.s32 %s419, 1
      %s421 = scalar_select %p418, %s419, %s420
      %p424 = pneg %p418
      %p425 = scmp.eq.s32.totalorder %s38, 3
      %p426 = por %p424, %p425
      %p427 = scmp.ne.s32.totalorder %s419, %s422
      %p428 = scmp.eq.s32.totalorder %s38, 0
      %p429 = por %p427, %p428
      %p430 = scmp.ne.s32.totalorder %s419, %s422
      %p431 = scmp.eq.s32.totalorder %s43, 3
      %p432 = por %p430, %p431
      %p433 = scmp.ne.s32.totalorder %s422, %s423
      %p434 = scmp.eq.s32.totalorder %s43, 0
      %p435 = por %p433, %p434
      %p436 = scmp.ne.s32.totalorder %s422, %s423
      %p437 = scmp.eq.s32.totalorder %s44, 3
      %p438 = por %p436, %p437
      %p440 = scmp.ne.s32.totalorder %s423, %s439
      %p441 = scmp.eq.s32.totalorder %s44, 0
      %p442 = por %p440, %p441
      %s444 = sadd.s32 %s443, 1
      %p447 = scmp.eq.s32.totalorder %s38, 3
      %p448 = scmp.ne.s32.totalorder %s443, %s445
      %p449 = scmp.eq.s32.totalorder %s38, 0
      %p450 = por %p448, %p449
      %p451 = scmp.ne.s32.totalorder %s443, %s445
      %p452 = scmp.eq.s32.totalorder %s43, 3
      %p453 = por %p451, %p452
      %p454 = scmp.ne.s32.totalorder %s445, %s446
      %p455 = scmp.eq.s32.totalorder %s43, 0
      %p456 = por %p454, %p455
      %p457 = scmp.ne.s32.totalorder %s445, %s446
      %p458 = scmp.eq.s32.totalorder %s44, 3
      %p459 = por %p457, %p458
      %p461 = scmp.ne.s32.totalorder %s446, %s460
      %p462 = scmp.eq.s32.totalorder %s44, 0
      %p463 = por %p461, %p462
      %s465 = sadd.s32 %s464, 1
      %p468 = scmp.eq.s32.totalorder %s38, 3
      %p469 = scmp.ne.s32.totalorder %s464, %s466
      %p470 = scmp.eq.s32.totalorder %s38, 0
      %p471 = por %p469, %p470
      %p472 = scmp.ne.s32.totalorder %s464, %s466
      %p473 = scmp.eq.s32.totalorder %s43, 3
      %p474 = por %p472, %p473
      %p475 = scmp.ne.s32.totalorder %s466, %s467
      %p476 = scmp.eq.s32.totalorder %s43, 0
      %p477 = por %p475, %p476
      %p478 = scmp.ne.s32.totalorder %s466, %s467
      %p479 = scmp.eq.s32.totalorder %s44, 3
      %p480 = por %p478, %p479
      %p482 = scmp.ne.s32.totalorder %s467, %s481
      %p483 = scmp.eq.s32.totalorder %s44, 0
      %p484 = por %p482, %p483
      %s486 = sadd.s32 %s485, 1
      %p489 = scmp.eq.s32.totalorder %s38, 3
      %p490 = scmp.ne.s32.totalorder %s485, %s487
      %p491 = scmp.eq.s32.totalorder %s38, 0
      %p492 = por %p490, %p491
      %p493 = scmp.ne.s32.totalorder %s485, %s487
      %p494 = scmp.eq.s32.totalorder %s43, 3
      %p495 = por %p493, %p494
      %p496 = scmp.ne.s32.totalorder %s487, %s488
      %p497 = scmp.eq.s32.totalorder %s43, 0
      %p498 = por %p496, %p497
      %p499 = scmp.ne.s32.totalorder %s487, %s488
      %p500 = scmp.eq.s32.totalorder %s44, 3
      %p501 = por %p499, %p500
      %p503 = scmp.ne.s32.totalorder %s488, %s502
      %p504 = scmp.eq.s32.totalorder %s44, 0
      %p505 = por %p503, %p504
      %s506 = ssub.s32 %s45, %s57
      %p507 = scmp.eq.s32.totalorder %s506, 0
      %s509 = sadd.s32 %s508, 1
      %s510 = scalar_select %p507, %s508, %s509
      %p513 = pneg %p507
      %p514 = scmp.eq.s32.totalorder %s38, 3
      %p515 = por %p513, %p514
      %p516 = scmp.ne.s32.totalorder %s508, %s511
      %p517 = scmp.eq.s32.totalorder %s38, 0
      %p518 = por %p516, %p517
      %p519 = scmp.ne.s32.totalorder %s508, %s511
      %p520 = scmp.eq.s32.totalorder %s43, 3
      %p521 = por %p519, %p520
      %p522 = scmp.ne.s32.totalorder %s511, %s512
      %p523 = scmp.eq.s32.totalorder %s43, 0
      %p524 = por %p522, %p523
      %p525 = scmp.ne.s32.totalorder %s511, %s512
      %p526 = scmp.eq.s32.totalorder %s44, 3
      %p527 = por %p525, %p526
      %p529 = scmp.ne.s32.totalorder %s512, %s528
      %p530 = scmp.eq.s32.totalorder %s44, 0
      %p531 = por %p529, %p530
      %s532 = ssub.s32 %s45, %s57
      %p533 = scmp.eq.s32.totalorder %s532, 0
      %s535 = sadd.s32 %s534, 1
      %s536 = scalar_select %p533, %s534, %s535
      %p539 = pneg %p533
      %p540 = scmp.eq.s32.totalorder %s38, 3
      %p541 = por %p539, %p540
      %p542 = scmp.ne.s32.totalorder %s534, %s537
      %p543 = scmp.eq.s32.totalorder %s38, 0
      %p544 = por %p542, %p543
      %p545 = scmp.ne.s32.totalorder %s534, %s537
      %p546 = scmp.eq.s32.totalorder %s43, 3
      %p547 = por %p545, %p546
      %p548 = scmp.ne.s32.totalorder %s537, %s538
      %p549 = scmp.eq.s32.totalorder %s43, 0
      %p550 = por %p548, %p549
      %p551 = scmp.ne.s32.totalorder %s537, %s538
      %p552 = scmp.eq.s32.totalorder %s44, 3
      %p553 = por %p551, %p552
      %p555 = scmp.ne.s32.totalorder %s538, %s554
      %p556 = scmp.eq.s32.totalorder %s44, 0
      %p557 = por %p555, %p556
      %p558 = scmp.le.s32.totalorder 1, %s38
      %p559 = scmp.lt.s32.totalorder %s38, 5
      %p560 = pnand %p558, %p559
      %p561 = pneg %p560
      // Predicated region
      $region9: #{_lambda_.4} parent=5 // pred_check
        _
      $region10: #{_lambda_.4} parent=5 // pred_check_branch
        %563 = sbr.rel (%p560) target = $region12
      $region11: #{_lambda_.4} parent=5 // pred_region
        %s564 = ssub.s32 %s38, 1
        // Predicated region
        $region13: #{_lambda_.4} parent=11 // pred_check
          %p565 = pneg %p97
        $region14: #{_lambda_.4} parent=11 // pred_check_branch
          %567 = sbr.rel (%p565) target = $region16
        $region15: #{_lambda_.4} parent=11 // pred_region
          _
        $region16: #{_lambda_.4} parent=11 // pred_fallthru
          _
        // Predicated region
        $region17: #{_lambda_.4} parent=11 // pred_check
          %p568 = pneg %p456
        $region18: #{_lambda_.4} parent=11 // pred_check_branch
          %570 = sbr.rel (%p568) target = $region20
        $region19: #{_lambda_.4} parent=11 // pred_region
          _
        $region20: #{_lambda_.4} parent=11 // pred_fallthru
          _
        // Predicated region
        $region21: #{_lambda_.4} parent=11 // pred_check
          %p571 = pneg %p477
        $region22: #{_lambda_.4} parent=11 // pred_check_branch
          %573 = sbr.rel (%p571) target = $region24
        $region23: #{_lambda_.4} parent=11 // pred_region
          _
        $region24: #{_lambda_.4} parent=11 // pred_fallthru
          _
        // Predicated region
        $region25: #{_lambda_.4} parent=11 // pred_check
          %p574 = pneg %p498
        $region26: #{_lambda_.4} parent=11 // pred_check_branch
          %576 = sbr.rel (%p574) target = $region28
        $region27: #{_lambda_.4} parent=11 // pred_region
          _
        $region28: #{_lambda_.4} parent=11 // pred_fallthru
          _
      $region12: #{_lambda_.4} parent=5 // pred_fallthru
        _
      %p577 = scmp.lt.s32.totalorder %s38, 4
      // Predicated region
      $region29: #{_lambda_.4} parent=5 // pred_check
        %p578 = pneg %p577
      $region30: #{_lambda_.4} parent=5 // pred_check_branch
        %580 = sbr.rel (%p578) target = $region32
      $region31: #{_lambda_.4} parent=5 // pred_region
        // Predicated region
        $region33: #{_lambda_.4} parent=31 // pred_check
          %p581 = pneg %p70
        $region34: #{_lambda_.4} parent=31 // pred_check_branch
          %583 = sbr.rel (%p581) target = $region36
        $region35: #{_lambda_.4} parent=31 // pred_region
          %p584 = scmp.lt.s32.totalorder %s45, 1
          %s585 = scalar_select %p584, %s45, 1
          %s586 = smul.addr %s585, 8
          %s587 = scalar_lea.vmem %s0, %s586
        $region36: #{_lambda_.4} parent=31 // pred_fallthru
          _
        // Predicated region
        $region37: #{_lambda_.4} parent=31 // pred_check
          %p588 = pneg %p117
        $region38: #{_lambda_.4} parent=31 // pred_check_branch
          %590 = sbr.rel (%p588) target = $region40
        $region39: #{_lambda_.4} parent=31 // pred_region
          %p591 = scmp.lt.s32.totalorder %s45, 1
          %s592 = scalar_select %p591, %s45, 1
          %s593 = scalar_lea.vmem %s2, %s592
        $region40: #{_lambda_.4} parent=31 // pred_fallthru
          _
        // Predicated region
        $region41: #{_lambda_.4} parent=31 // pred_check
          %p594 = pneg %p143
        $region42: #{_lambda_.4} parent=31 // pred_check_branch
          %596 = sbr.rel (%p594) target = $region44
        $region43: #{_lambda_.4} parent=31 // pred_region
          %p597 = scmp.lt.s32.totalorder %s46, 1
          %s598 = scalar_select %p597, %s46, 1
          %s599 = scalar_lea.vmem %s3, %s598
        $region44: #{_lambda_.4} parent=31 // pred_fallthru
          _
        // Predicated region
        $region45: #{_lambda_.4} parent=31 // pred_check
          %p600 = pneg %p169
        $region46: #{_lambda_.4} parent=31 // pred_check_branch
          %602 = sbr.rel (%p600) target = $region48
        $region47: #{_lambda_.4} parent=31 // pred_region
          %p603 = scmp.lt.s32.totalorder %s46, 1
          %s604 = scalar_select %p603, %s46, 1
          %s605 = scalar_lea.vmem %s4, %s604
        $region48: #{_lambda_.4} parent=31 // pred_fallthru
          _
        // Predicated region
        $region49: #{_lambda_.4} parent=31 // pred_check
          %p606 = pneg %p195
        $region50: #{_lambda_.4} parent=31 // pred_check_branch
          %608 = sbr.rel (%p606) target = $region52
        $region51: #{_lambda_.4} parent=31 // pred_region
          %p609 = scmp.lt.s32.totalorder %s46, 1
          %s610 = scalar_select %p609, %s46, 1
          %s611 = smul.addr %s610, 48
          %s612 = smul.addr %s611, 4
          %s613 = scalar_lea.vmem %s5, %s612
        $region52: #{_lambda_.4} parent=31 // pred_fallthru
          _
        // Predicated region
        $region53: #{_lambda_.4} parent=31 // pred_check
          %p614 = pneg %p221
        $region54: #{_lambda_.4} parent=31 // pred_check_branch
          %616 = sbr.rel (%p614) target = $region56
        $region55: #{_lambda_.4} parent=31 // pred_region
          %p617 = scmp.lt.s32.totalorder %s46, 1
          %s618 = scalar_select %p617, %s46, 1
          %s619 = smul.addr %s618, 3
          %s620 = scalar_lea.vmem %s6, %s619
        $region56: #{_lambda_.4} parent=31 // pred_fallthru
          _
        // Predicated region
        $region57: #{_lambda_.4} parent=31 // pred_check
          %p621 = pneg %p247
        $region58: #{_lambda_.4} parent=31 // pred_check_branch
          %623 = sbr.rel (%p621) target = $region60
        $region59: #{_lambda_.4} parent=31 // pred_region
          %p624 = scmp.lt.s32.totalorder %s46, 1
          %s625 = scalar_select %p624, %s46, 1
          %s626 = smul.addr %s625, 16
          %s627 = smul.addr %s626, 4
          %s628 = scalar_lea.vmem %s7, %s627
        $region60: #{_lambda_.4} parent=31 // pred_fallthru
          _
        // Predicated region
        $region61: #{_lambda_.4} parent=31 // pred_check
          %p629 = pneg %p273
        $region62: #{_lambda_.4} parent=31 // pred_check_branch
          %631 = sbr.rel (%p629) target = $region64
        $region63: #{_lambda_.4} parent=31 // pred_region
          %p632 = scmp.lt.s32.totalorder %s46, 1
          %s633 = scalar_select %p632, %s46, 1
          %s634 = scalar_lea.vmem %s8, %s633
        $region64: #{_lambda_.4} parent=31 // pred_fallthru
          _
        // Predicated region
        $region65: #{_lambda_.4} parent=31 // pred_check
          %p635 = pneg %p299
        $region66: #{_lambda_.4} parent=31 // pred_check_branch
          %637 = sbr.rel (%p635) target = $region68
        $region67: #{_lambda_.4} parent=31 // pred_region
          %p638 = scmp.lt.s32.totalorder %s46, 1
          %s639 = scalar_select %p638, %s46, 1
          %s640 = scalar_lea.vmem %s9, %s639
        $region68: #{_lambda_.4} parent=31 // pred_fallthru
          _
        // Predicated region
        $region69: #{_lambda_.4} parent=31 // pred_check
          %p641 = pneg %p325
        $region70: #{_lambda_.4} parent=31 // pred_check_branch
          %643 = sbr.rel (%p641) target = $region72
        $region71: #{_lambda_.4} parent=31 // pred_region
          %p644 = scmp.lt.s32.totalorder %s46, 1
          %s645 = scalar_select %p644, %s46, 1
          %s646 = scalar_lea.vmem %s10, %s645
        $region72: #{_lambda_.4} parent=31 // pred_fallthru
          _
        // Predicated region
        $region73: #{_lambda_.4} parent=31 // pred_check
          %p647 = pneg %p351
        $region74: #{_lambda_.4} parent=31 // pred_check_branch
          %649 = sbr.rel (%p647) target = $region76
        $region75: #{_lambda_.4} parent=31 // pred_region
          %s650 = sand.u32 %s341, 1
          %s651 = scalar_lea.sflag [#allocation4], %s650
          %s652 = sand.u32 %s341, 1
          %s653 = smul.addr %s652, 128
          %s654 = scalar_lea.vmem [#allocation3], %s653
          %656 = vsyncadd %s651, 0
          %s657 = smul.addr %s46, 32
          %s658 = smul.addr %s657, 4
          %s659 = scalar_lea.hbm %s11, %s658
          %s660 = sshll.u32 %s659, 4
          %s661 = int_to_ptr.hbm [resolvable:$true] %s660
          %s662 = sshll.u32 %s654, 4
          %s663 = int_to_ptr.vmem [resolvable:$true] %s662
          %668 = dma.hbm_to_vmem [thread:$0]  %s661, 2048, %s663, %s651, 64, 64, 4
        $region76: #{_lambda_.4} parent=31 // pred_fallthru
          _
        // Predicated region
        $region77: #{_lambda_.4} parent=31 // pred_check
          %p669 = pneg %p377
        $region78: #{_lambda_.4} parent=31 // pred_check_branch
          %671 = sbr.rel (%p669) target = $region80
        $region79: #{_lambda_.4} parent=31 // pred_region
          %p672 = scmp.lt.s32.totalorder %s46, 1
          %s673 = scalar_select %p672, %s46, 1
          %s674 = smul.addr %s673, 2
          %s675 = scalar_lea.vmem %s12, %s674
        $region80: #{_lambda_.4} parent=31 // pred_fallthru
          _
        // Predicated region
        $region81: #{_lambda_.4} parent=31 // pred_check
          %p676 = pneg %p403
        $region82: #{_lambda_.4} parent=31 // pred_check_branch
          %678 = sbr.rel (%p676) target = $region84
        $region83: #{_lambda_.4} parent=31 // pred_region
          %s679 = sand.u32 %s393, 1
          %s680 = scalar_lea.sflag [#allocation7], %s679
          %s681 = sand.u32 %s393, 1
          %s682 = smul.addr %s681, 128
          %s683 = scalar_lea.vmem [#allocation6], %s682
          %685 = vsyncadd %s680, 0
          %s686 = smul.addr %s46, 32
          %s687 = smul.addr %s686, 4
          %s688 = scalar_lea.hbm %s13, %s687
          %s689 = sshll.u32 %s688, 4
          %s690 = int_to_ptr.hbm [resolvable:$true] %s689
          %s691 = sshll.u32 %s683, 4
          %s692 = int_to_ptr.vmem [resolvable:$true] %s691
          %697 = dma.hbm_to_vmem [thread:$0]  %s690, 2048, %s692, %s680, 128, 128, 8
        $region84: #{_lambda_.4} parent=31 // pred_fallthru
          _
        // Predicated region
        $region85: #{_lambda_.4} parent=31 // pred_check
          %p698 = pneg %p429
        $region86: #{_lambda_.4} parent=31 // pred_check_branch
          %700 = sbr.rel (%p698) target = $region88
        $region87: #{_lambda_.4} parent=31 // pred_region
          %p701 = scmp.lt.s32.totalorder %s46, 1
          %s702 = scalar_select %p701, %s46, 1
          %s703 = scalar_lea.vmem %s14, %s702
        $region88: #{_lambda_.4} parent=31 // pred_fallthru
          _
      $region32: #{_lambda_.4} parent=5 // pred_fallthru
        _
      %p704 = scmp.le.s32.totalorder 1, %s38
      %p705 = scmp.lt.s32.totalorder %s38, 5
      %p706 = pnand %p704, %p705
      %p707 = pneg %p706
      // Predicated region
      $region89: #{_lambda_.4} parent=5 // pred_check
        _
      $region90: #{_lambda_.4} parent=5 // pred_check_branch
        %709 = sbr.rel (%p706) target = $region92
      $region91: #{_lambda_.4} parent=5 // pred_region
        %s710 = ssub.s32 %s38, 1
        %s711 = sand.u32 %s344, 1
        %s712 = scalar_lea.sflag [#allocation4], %s711
        %s713 = sand.u32 %s344, 1
        %s714 = smul.addr %s713, 128
        %s715 = scalar_lea.vmem [#allocation3], %s714
        // Predicated region
        $region93: #{_lambda_.4} parent=91 // pred_check
          %p716 = pneg %p357
        $region94: #{_lambda_.4} parent=91 // pred_check_branch
          %718 = sbr.rel (%p716) target = $region96
        $region95: #{_lambda_.4} parent=91 // pred_region
          %720 = dma.done %s712, 2048
        $region96: #{_lambda_.4} parent=91 // pred_fallthru
          _
        %s721 = sand.u32 %s396, 1
        %s722 = scalar_lea.sflag [#allocation7], %s721
        %s723 = sand.u32 %s396, 1
        %s724 = smul.addr %s723, 128
        %s725 = scalar_lea.vmem [#allocation6], %s724
        // Predicated region
        $region97: #{_lambda_.4} parent=91 // pred_check
          %p726 = pneg %p409
        $region98: #{_lambda_.4} parent=91 // pred_check_branch
          %728 = sbr.rel (%p726) target = $region100
        $region99: #{_lambda_.4} parent=91 // pred_region
          %730 = dma.done %s722, 2048
        $region100: #{_lambda_.4} parent=91 // pred_fallthru
          _
        %p731 = scmp.lt.s32.totalorder %s47, 1
        %s732 = scalar_select %p731, %s47, 1
        %s733 = smul.addr %s732, 8
        %s734 = scalar_lea.vmem %s0, %s733
        %p735 = pneg %p76
        %p736 = pneg %p73
        %p737 = pneg %p97
        %p738 = pneg %p94
        %p739 = scmp.lt.s32.totalorder %s47, 1
        %s740 = scalar_select %p739, %s47, 1
        %s741 = scalar_lea.vmem %s2, %s740
        %p742 = pneg %p123
        %p743 = pneg %p120
        %p744 = scmp.lt.s32.totalorder %s48, 1
        %s745 = scalar_select %p744, %s48, 1
        %s746 = scalar_lea.vmem %s3, %s745
        %p747 = pneg %p149
        %p748 = pneg %p146
        %p749 = scmp.lt.s32.totalorder %s48, 1
        %s750 = scalar_select %p749, %s48, 1
        %s751 = scalar_lea.vmem %s4, %s750
        %p752 = pneg %p175
        %p753 = pneg %p172
        %p754 = scmp.lt.s32.totalorder %s48, 1
        %s755 = scalar_select %p754, %s48, 1
        %s756 = smul.addr %s755, 48
        %s757 = smul.addr %s756, 4
        %s758 = scalar_lea.vmem %s5, %s757
        %p759 = pneg %p201
        %p760 = pneg %p198
        %p761 = scmp.lt.s32.totalorder %s48, 1
        %s762 = scalar_select %p761, %s48, 1
        %s763 = smul.addr %s762, 3
        %s764 = scalar_lea.vmem %s6, %s763
        %p765 = pneg %p227
        %p766 = pneg %p224
        %p767 = scmp.lt.s32.totalorder %s48, 1
        %s768 = scalar_select %p767, %s48, 1
        %s769 = smul.addr %s768, 16
        %s770 = smul.addr %s769, 4
        %s771 = scalar_lea.vmem %s7, %s770
        %p772 = pneg %p253
        %p773 = pneg %p250
        %p774 = scmp.lt.s32.totalorder %s48, 1
        %s775 = scalar_select %p774, %s48, 1
        %s776 = scalar_lea.vmem %s8, %s775
        %p777 = pneg %p279
        %p778 = pneg %p276
        %p779 = scmp.lt.s32.totalorder %s48, 1
        %s780 = scalar_select %p779, %s48, 1
        %s781 = scalar_lea.vmem %s9, %s780
        %p782 = pneg %p305
        %p783 = pneg %p302
        %p784 = scmp.lt.s32.totalorder %s48, 1
        %s785 = scalar_select %p784, %s48, 1
        %s786 = scalar_lea.vmem %s10, %s785
        %p787 = pneg %p331
        %p788 = pneg %p328
        %s789 = sand.u32 %s344, 1
        %s790 = scalar_lea.sflag [#allocation4], %s789
        %s791 = sand.u32 %s344, 1
        %s792 = smul.addr %s791, 128
        %s793 = scalar_lea.vmem [#allocation3], %s792
        %p794 = pneg %p357
        %p795 = pneg %p354
        %p796 = scmp.lt.s32.totalorder %s48, 1
        %s797 = scalar_select %p796, %s48, 1
        %s798 = smul.addr %s797, 2
        %s799 = scalar_lea.vmem %s12, %s798
        %p800 = pneg %p383
        %p801 = pneg %p380
        %s802 = sand.u32 %s396, 1
        %s803 = scalar_lea.sflag [#allocation7], %s802
        %s804 = sand.u32 %s396, 1
        %s805 = smul.addr %s804, 128
        %s806 = scalar_lea.vmem [#allocation6], %s805
        %p807 = pneg %p409
        %p808 = pneg %p406
        %p809 = scmp.lt.s32.totalorder %s48, 1
        %s810 = scalar_select %p809, %s48, 1
        %s811 = scalar_lea.vmem %s14, %s810
        %p812 = pneg %p435
        %p813 = pneg %p432
        %p814 = pneg %p456
        %p815 = pneg %p453
        %p816 = pneg %p477
        %p817 = pneg %p474
        %p818 = pneg %p498
        %p819 = pneg %p495
        %p820 = pneg %p524
        %p821 = pneg %p521
        %s822 = sand.u32 %s511, 1
        %s823 = scalar_lea.sflag [#allocation5], %s822
        %s824 = sand.u32 %s511, 1
        %s825 = smul.addr %s824, 8
        %s826 = scalar_lea.vmem [#allocation8], %s825
        %p827 = pneg %p550
        %p828 = pneg %p547
        %s829 = sand.u32 %s537, 1
        %s830 = scalar_lea.sflag [#allocation10], %s829
        %s831 = sand.u32 %s537, 1
        %s832 = scalar_lea.vmem [#allocation9], %s831
        %p833 = scmp.lt.s32.totalorder %s47, 1
        %s834 = scalar_select %p833, %s47, 1
        %s835 = smul.addr %s834, 8
        %s836 = scalar_lea.vmem %s0, %s835
        %p837 = scmp.lt.s32.totalorder %s47, 1
        %s838 = scalar_select %p837, %s47, 1
        %s839 = scalar_lea.vmem %s2, %s838
        %p840 = scmp.lt.s32.totalorder %s48, 1
        %s841 = scalar_select %p840, %s48, 1
        %s842 = scalar_lea.vmem %s3, %s841
        %p843 = scmp.lt.s32.totalorder %s48, 1
        %s844 = scalar_select %p843, %s48, 1
        %s845 = scalar_lea.vmem %s4, %s844
        %p846 = scmp.lt.s32.totalorder %s48, 1
        %s847 = scalar_select %p846, %s48, 1
        %s848 = smul.addr %s847, 48
        %s849 = smul.addr %s848, 4
        %s850 = scalar_lea.vmem %s5, %s849
        %p851 = scmp.lt.s32.totalorder %s48, 1
        %s852 = scalar_select %p851, %s48, 1
        %s853 = smul.addr %s852, 3
        %s854 = scalar_lea.vmem %s6, %s853
        %p855 = scmp.lt.s32.totalorder %s48, 1
        %s856 = scalar_select %p855, %s48, 1
        %s857 = smul.addr %s856, 16
        %s858 = smul.addr %s857, 4
        %s859 = scalar_lea.vmem %s7, %s858
        %p860 = scmp.lt.s32.totalorder %s48, 1
        %s861 = scalar_select %p860, %s48, 1
        %s862 = scalar_lea.vmem %s8, %s861
        %p863 = scmp.lt.s32.totalorder %s48, 1
        %s864 = scalar_select %p863, %s48, 1
        %s865 = scalar_lea.vmem %s9, %s864
        %p866 = scmp.lt.s32.totalorder %s48, 1
        %s867 = scalar_select %p866, %s48, 1
        %s868 = scalar_lea.vmem %s10, %s867
        %p869 = scmp.lt.s32.totalorder %s48, 1
        %s870 = scalar_select %p869, %s48, 1
        %s871 = smul.addr %s870, 2
        %s872 = scalar_lea.vmem %s12, %s871
        %p873 = scmp.lt.s32.totalorder %s48, 1
        %s874 = scalar_select %p873, %s48, 1
        %s875 = scalar_lea.vmem %s14, %s874
        %p877 = scmp.eq.s32.totalorder %s48, 0
        // Predicated region
        $region101: #{_lambda_.4} parent=91 // pred_check
          %p878 = pneg %p877
        $region102: #{_lambda_.4} parent=91 // pred_check_branch
          %880 = sbr.rel (%p878) target = $region104
        $region103: #{_lambda_.4} parent=91 // pred_region
          %v881 = vld [vmem:[%s836] sm:$0x1f]
          %v882 = vld [vmem:[%s1] sm:$0x1f]
          %v883 = vadd.f32 %v881, %v882
          %884 = vst [vmem:[#allocation2] sm:$0x1f] %v883
        $region104: #{_lambda_.4} parent=91 // pred_fallthru
          _
        %v885 = vld [vmem:[#allocation2] sm:$0x1f]
        %v886 = vld [vmem:[%s839] sm:$0x1]
        %v887 = vld [vmem:[%s842] sm:$0x1]
        %v888 = vld [vmem:[%s845] sm:$0x1]
        %vm889 = vcmask 1044480
        %v890 = vsel %vm889, %v885, 0.0
        %891 = vadd.xlane.f32.xlu0 %v890
        %v892 = vpop.xlane.xlu0 %891
        %v893 = vrcp.pop 128.0
        %v894 = vmul.f32 128.0, %v893
        %v895 = vsub.f32 1.0, %v894
        %v896 = vmul.f32 %v893, %v895
        %v897 = vadd.f32 %v893, %v896
        %vm898 = vweird.f32 %v893
        %v899 = vsel %vm898, %v893, %v897
        %v900 = vmul.f32 %v892, %v899
        %v901 = vsub.f32 %v885, %v900
        %v902 = vmul.f32 %v901, %v901
        %v903 = vsel %vm889, %v902, 0.0
        %904 = vadd.xlane.f32.xlu0 %v903
        %v905 = vpop.xlane.xlu0 %904
        %v906 = vmul.f32 %v905, %v899
        %v907 = vadd.f32 %v906, 1e-05
        %v908 = vrsqrt.pop %v907
        %v909 = vmul.f32 %v908, %v907
        %v910 = vmul.f32 %v909, %v908
        %v911 = vmul.f32 0.5, %v910
        %v912 = vsub.f32 1.5, %v911
        %v913 = vmul.f32 %v908, %v912
        %vm914 = vweird.f32 %v907
        %vm915 = vweird.f32 %v908
        %vm916 = vmor %vm914, %vm915
        %v917 = vsel %vm916, %v908, %v913
        %v918 = vmul.f32 %v901, %v917
        %v920 = vperm.slane %v887, 0
        %v922 = vmul.f32 %v918, %v920
        %v924 = vperm.slane %v888, 0
        %v926 = vadd.f32 %v922, %v924
        %v927 = vld [vmem:[%s850] sm:$0xf]
        %v928 = vld [vmem:[%s850 + $0x4] sm:$0xf]
        %v929 = vld [vmem:[%s850 + $0x8] sm:$0xf]
        %v930 = vld [vmem:[%s850 + $0xc] sm:$0xf]
        %v931 = vld [vmem:[%s850 + $0x10] sm:$0xf]
        %v932 = vld [vmem:[%s850 + $0x14] sm:$0xf]
        %v933 = vld [vmem:[%s850 + $0x18] sm:$0xf]
        %v934 = vld [vmem:[%s850 + $0x1c] sm:$0xf]
        %v935 = vld [vmem:[%s850 + $0x20] sm:$0xf]
        %v936 = vld [vmem:[%s850 + $0x24] sm:$0xf]
        %v937 = vld [vmem:[%s850 + $0x28] sm:$0xf]
        %v938 = vld [vmem:[%s850 + $0x2c] sm:$0xf]
        %v939 = vld [vmem:[%s850 + $0x30] sm:$0xf]
        %v940 = vld [vmem:[%s850 + $0x34] sm:$0xf]
        %v941 = vld [vmem:[%s850 + $0x38] sm:$0xf]
        %v942 = vld [vmem:[%s850 + $0x3c] sm:$0xf]
        %v943 = vld [vmem:[%s850 + $0x40] sm:$0xf]
        %v944 = vld [vmem:[%s850 + $0x44] sm:$0xf]
        %v945 = vld [vmem:[%s850 + $0x48] sm:$0xf]
        %v946 = vld [vmem:[%s850 + $0x4c] sm:$0xf]
        %v947 = vld [vmem:[%s850 + $0x50] sm:$0xf]
        %v948 = vld [vmem:[%s850 + $0x54] sm:$0xf]
        %v949 = vld [vmem:[%s850 + $0x58] sm:$0xf]
        %v950 = vld [vmem:[%s850 + $0x5c] sm:$0xf]
        %v951 = vld [vmem:[%s850 + $0x60] sm:$0xf]
        %v952 = vld [vmem:[%s850 + $0x64] sm:$0xf]
        %v953 = vld [vmem:[%s850 + $0x68] sm:$0xf]
        %v954 = vld [vmem:[%s850 + $0x6c] sm:$0xf]
        %v955 = vld [vmem:[%s850 + $0x70] sm:$0xf]
        %v956 = vld [vmem:[%s850 + $0x74] sm:$0xf]
        %v957 = vld [vmem:[%s850 + $0x78] sm:$0xf]
        %v958 = vld [vmem:[%s850 + $0x7c] sm:$0xf]
        %v959 = vld [vmem:[%s850 + $0x80] sm:$0xf]
        %v960 = vld [vmem:[%s850 + $0x84] sm:$0xf]
        %v961 = vld [vmem:[%s850 + $0x88] sm:$0xf]
        %v962 = vld [vmem:[%s850 + $0x8c] sm:$0xf]
        %v963 = vld [vmem:[%s850 + $0x90] sm:$0xf]
        %v964 = vld [vmem:[%s850 + $0x94] sm:$0xf]
        %v965 = vld [vmem:[%s850 + $0x98] sm:$0xf]
        %v966 = vld [vmem:[%s850 + $0x9c] sm:$0xf]
        %v967 = vld [vmem:[%s850 + $0xa0] sm:$0xf]
        %v968 = vld [vmem:[%s850 + $0xa4] sm:$0xf]
        %v969 = vld [vmem:[%s850 + $0xa8] sm:$0xf]
        %v970 = vld [vmem:[%s850 + $0xac] sm:$0xf]
        %v971 = vld [vmem:[%s850 + $0xb0] sm:$0xf]
        %v972 = vld [vmem:[%s850 + $0xb4] sm:$0xf]
        %v973 = vld [vmem:[%s850 + $0xb8] sm:$0xf]
        %v974 = vld [vmem:[%s850 + $0xbc] sm:$0xf]
        %v975 = vld [vmem:[%s854] sm:$0x7]
        %v976 = vpack.c.bf16 %v926, %v926
        %v978 = vperm.slane %v975, 0
        %v979 = vperm.slane %v975, 1
        %v980 = vperm.slane %v975, 2
        %v1032 = vunpack.c.l.b16 %v927
        %v1033 = vunpack.c.l.b16 %v928
        %v1034 = vunpack.c.l.b16 %v929
        %v1035 = vunpack.c.l.b16 %v930
        %v1036 = vunpack.c.l.b16 %v931
        %v1037 = vunpack.c.l.b16 %v932
        %v1038 = vunpack.c.l.b16 %v933
        %v1039 = vunpack.c.l.b16 %v934
        %v1040 = vunpack.c.l.b16 %v935
        %v1041 = vunpack.c.l.b16 %v936
        %v1042 = vunpack.c.l.b16 %v937
        %v1043 = vunpack.c.l.b16 %v938
        %v1044 = vunpack.c.l.b16 %v939
        %v1045 = vunpack.c.l.b16 %v940
        %v1046 = vunpack.c.l.b16 %v941
        %v1047 = vunpack.c.l.b16 %v942
        %v1048 = vunpack.c.l.b16 %v943
        %v1049 = vunpack.c.l.b16 %v944
        %v1050 = vunpack.c.l.b16 %v945
        %v1051 = vunpack.c.l.b16 %v946
        %v1052 = vunpack.c.l.b16 %v947
        %v1053 = vunpack.c.l.b16 %v948
        %v1054 = vunpack.c.l.b16 %v949
        %v1055 = vunpack.c.l.b16 %v950
        %v1056 = vunpack.c.l.b16 %v951
        %v1057 = vunpack.c.l.b16 %v952
        %v1058 = vunpack.c.l.b16 %v953
        %v1059 = vunpack.c.l.b16 %v954
        %v1060 = vunpack.c.l.b16 %v955
        %v1061 = vunpack.c.l.b16 %v956
        %v1062 = vunpack.c.l.b16 %v957
        %v1063 = vunpack.c.l.b16 %v958
        %v1064 = vunpack.c.l.b16 %v959
        %v1065 = vunpack.c.l.b16 %v960
        %v1066 = vunpack.c.l.b16 %v961
        %v1067 = vunpack.c.l.b16 %v962
        %v1068 = vunpack.c.l.b16 %v963
        %v1069 = vunpack.c.l.b16 %v964
        %v1070 = vunpack.c.l.b16 %v965
        %v1071 = vunpack.c.l.b16 %v966
        %v1072 = vunpack.c.l.b16 %v967
        %v1073 = vunpack.c.l.b16 %v968
        %v1074 = vunpack.c.l.b16 %v969
        %v1075 = vunpack.c.l.b16 %v970
        %v1076 = vunpack.c.l.b16 %v971
        %v1077 = vunpack.c.l.b16 %v972
        %v1078 = vunpack.c.l.b16 %v973
        %v1079 = vunpack.c.l.b16 %v974
        %v1080 = vpack.c.b16 %v1033, %v1032
        %v1081 = vpack.c.b16 %v1035, %v1034
        %v1082 = vpack.c.b16 %v1037, %v1036
        %v1083 = vpack.c.b16 %v1039, %v1038
        %v1084 = vpack.c.b16 %v1041, %v1040
        %v1085 = vpack.c.b16 %v1043, %v1042
        %v1086 = vpack.c.b16 %v1045, %v1044
        %v1087 = vpack.c.b16 %v1047, %v1046
        %v1088 = vpack.c.b16 %v1049, %v1048
        %v1089 = vpack.c.b16 %v1051, %v1050
        %v1090 = vpack.c.b16 %v1053, %v1052
        %v1091 = vpack.c.b16 %v1055, %v1054
        %v1092 = vpack.c.b16 %v1057, %v1056
        %v1093 = vpack.c.b16 %v1059, %v1058
        %v1094 = vpack.c.b16 %v1061, %v1060
        %v1095 = vpack.c.b16 %v1063, %v1062
        %v1096 = vpack.c.b16 %v1065, %v1064
        %v1097 = vpack.c.b16 %v1067, %v1066
        %v1098 = vpack.c.b16 %v1069, %v1068
        %v1099 = vpack.c.b16 %v1071, %v1070
        %v1100 = vpack.c.b16 %v1073, %v1072
        %v1101 = vpack.c.b16 %v1075, %v1074
        %v1102 = vpack.c.b16 %v1077, %v1076
        %v1103 = vpack.c.b16 %v1079, %v1078
        %1128 = vmatpush.bf16.xpose.msra.mxu0 %v1087
        %1129 = vmatpush.bf16.xpose.msra.mxu0 %v1086
        %1130 = vmatpush.bf16.xpose.msra.mxu0 %v1085
        %1131 = vmatpush.bf16.xpose.msra.mxu0 %v1084
        %1132 = vmatpush.bf16.xpose.msra.mxu0 %v1083
        %1133 = vmatpush.bf16.xpose.msra.mxu0 %v1082
        %1134 = vmatpush.bf16.xpose.msra.mxu0 %v1081
        %1135 = vmatpush.bf16.xpose.msra.mxu0 %v1080
        %1136 = vmatmul.bf16.gmra.mxu0 %v976
        %v1137 = vpop.f32.mrf.mxu0
        %v1138 = vadd.f32 %v978, %v1137
        %v1139 = vpop.f32.mrf.mxu0
        %1140 = vdwg.mxu0
        %1141 = vmatpush.bf16.xpose.msra.mxu0 %v1095
        %1142 = vmatpush.bf16.xpose.msra.mxu0 %v1094
        %1143 = vmatpush.bf16.xpose.msra.mxu0 %v1093
        %1144 = vmatpush.bf16.xpose.msra.mxu0 %v1092
        %1145 = vmatpush.bf16.xpose.msra.mxu0 %v1091
        %1146 = vmatpush.bf16.xpose.msra.mxu0 %v1090
        %1147 = vmatpush.bf16.xpose.msra.mxu0 %v1089
        %1148 = vmatpush.bf16.xpose.msra.mxu0 %v1088
        %1149 = vmatmul.bf16.gmra.mxu0 %v976
        %v1150 = vpop.f32.mrf.mxu0
        %v1151 = vadd.f32 %v979, %v1150
        %v1152 = vpop.f32.mrf.mxu0
        %1153 = vdwg.mxu0
        %1154 = vmatpush.bf16.xpose.msra.mxu0 %v1103
        %1155 = vmatpush.bf16.xpose.msra.mxu0 %v1102
        %1156 = vmatpush.bf16.xpose.msra.mxu0 %v1101
        %1157 = vmatpush.bf16.xpose.msra.mxu0 %v1100
        %1158 = vmatpush.bf16.xpose.msra.mxu0 %v1099
        %1159 = vmatpush.bf16.xpose.msra.mxu0 %v1098
        %1160 = vmatpush.bf16.xpose.msra.mxu0 %v1097
        %1161 = vmatpush.bf16.xpose.msra.mxu0 %v1096
        %1162 = vmatmul.bf16.gmra.mxu0 %v976
        %v1163 = vpop.f32.mrf.mxu0
        %v1164 = vadd.f32 %v980, %v1163
        %v1165 = vpop.f32.mrf.mxu0
        %1166 = vdwg.mxu0
        %v1167 = vmul.f32 %v1138, 0.17677669
        %v1168 = vpack.c.bf16 %v1167, %v1167
        %v1169 = vpack.c.bf16 %v1151, %v1151
        %v1170 = vpack.c.bf16 %v1164, %v1164
        %v1172 = vperm.slane %v886, 0
        %vm1174 = vcmask 261120
        %v1176 = vsel %vm1174, %v1168, 0
        %v1179 = vsel %vm1174, %v1169, 0
        %1181 = vmatpush.bf16.xpose.msra.mxu0 0
        %1182 = vmatpush.bf16.xpose.msra.mxu0 0
        %1183 = vmatpush.bf16.xpose.msra.mxu0 0
        %1184 = vmatpush.bf16.xpose.msra.mxu0 0
        %1185 = vmatpush.bf16.xpose.msra.mxu0 0
        %1186 = vmatpush.bf16.xpose.msra.mxu0 0
        %1187 = vmatpush.bf16.xpose.msra.mxu0 0
        %1188 = vmatpush.bf16.xpose.msra.mxu0 %v1179
        %1189 = vmatmul.bf16.gmra.mxu0 %v1176
        %v1190 = vpop.f32.mrf.mxu0
        %v1191 = vadd.f32 %v1172, %v1190
        %v1192 = vpop.f32.mrf.mxu0
        %1193 = vdwg.mxu0
        %vm1194 = vcmask 36864
        %v1195 = vsel %vm1194, %v1191, -inf
        %1196 = vmax.xlane.f32.xlu0 %v1195
        %v1197 = vpop.xlane.xlu0 %1196
        %v1198 = vsub.f32 %v1191, %v1197
        %v1199 = vmul.f32 %v1198, 1.442695
        %v1200 = vpow.pop %v1199
        %v1201 = vsel %vm1194, %v1200, 0.0
        %1202 = vadd.xlane.f32.xlu0 %v1201
        %v1203 = vpop.xlane.xlu0 %1202
        %v1204 = vrcp.pop %v1203
        %v1205 = vmul.f32 %v1200, %v1204
        %v1206 = vpack.c.bf16 %v1205, %v1205
        %vm1207 = vcmask 39936
        %v1209 = vsel %vm1207, %v1206, 0
        %vm1211 = vcmask 1041408
        %vm1212 = vcmask 1042432
        %v1213 = vsel %vm1211, 4294967295, 65535
        %v1214 = vsel %vm1212, %v1213, 0
        %v1216 = vand.u32 %v1170, %v1214
        %1218 = vmatpush.bf16.msra.mxu0 0
        %1219 = vmatpush.bf16.msra.mxu0 0
        %1220 = vmatpush.bf16.msra.mxu0 0
        %1221 = vmatpush.bf16.msra.mxu0 0
        %1222 = vmatpush.bf16.msra.mxu0 0
        %1223 = vmatpush.bf16.msra.mxu0 0
        %1224 = vmatpush.bf16.msra.mxu0 0
        %1225 = vmatpush.bf16.msra.mxu0 %v1216
        %1226 = vmatmul.bf16.gmra.mxu0 %v1209
        %v1227 = vpop.f32.mrf.mxu0
        %v1228 = vadd.f32 0.0, %v1227
        %v1229 = vpop.f32.mrf.mxu0
        %1230 = vdwg.mxu0
        %1232 = vrot.lane.b32.xlu0 %v1168, 96
        %v1233 = vpop.permute.xlu0 %1232
        %1235 = vrot.lane.b32.xlu0 %v1169, 96
        %v1236 = vpop.permute.xlu0 %1235
        %v1238 = vsel %vm1174, %v1233, 0
        %v1241 = vsel %vm1174, %v1236, 0
        %1243 = vmatpush.bf16.xpose.msra.mxu0 0
        %1244 = vmatpush.bf16.xpose.msra.mxu0 0
        %1245 = vmatpush.bf16.xpose.msra.mxu0 0
        %1246 = vmatpush.bf16.xpose.msra.mxu0 0
        %1247 = vmatpush.bf16.xpose.msra.mxu0 0
        %1248 = vmatpush.bf16.xpose.msra.mxu0 0
        %1249 = vmatpush.bf16.xpose.msra.mxu0 0
        %1250 = vmatpush.bf16.xpose.msra.mxu0 %v1241
        %1251 = vmatmul.bf16.gmra.mxu0 %v1238
        %v1252 = vpop.f32.mrf.mxu0
        %v1253 = vadd.f32 %v1172, %v1252
        %v1254 = vpop.f32.mrf.mxu0
        %1255 = vdwg.mxu0
        %v1256 = vsel %vm1194, %v1253, -inf
        %1257 = vmax.xlane.f32.xlu0 %v1256
        %v1258 = vpop.xlane.xlu0 %1257
        %v1259 = vsub.f32 %v1253, %v1258
        %v1260 = vmul.f32 %v1259, 1.442695
        %v1261 = vpow.pop %v1260
        %v1262 = vsel %vm1194, %v1261, 0.0
        %1263 = vadd.xlane.f32.xlu0 %v1262
        %v1264 = vpop.xlane.xlu0 %1263
        %v1265 = vrcp.pop %v1264
        %v1266 = vmul.f32 %v1261, %v1265
        %v1267 = vpack.c.bf16 %v1266, %v1266
        %1269 = vrot.lane.b32.xlu0 %v1170, 96
        %v1270 = vpop.permute.xlu0 %1269
        %v1272 = vsel %vm1207, %v1267, 0
        %v1275 = vand.u32 %v1270, %v1214
        %1277 = vmatpush.bf16.msra.mxu0 0
        %1278 = vmatpush.bf16.msra.mxu0 0
        %1279 = vmatpush.bf16.msra.mxu0 0
        %1280 = vmatpush.bf16.msra.mxu0 0
        %1281 = vmatpush.bf16.msra.mxu0 0
        %1282 = vmatpush.bf16.msra.mxu0 0
        %1283 = vmatpush.bf16.msra.mxu0 0
        %1284 = vmatpush.bf16.msra.mxu0 %v1275
        %1285 = vmatmul.bf16.gmra.mxu0 %v1272
        %v1286 = vpop.f32.mrf.mxu0
        %v1287 = vadd.f32 0.0, %v1286
        %v1288 = vpop.f32.mrf.mxu0
        %1289 = vdwg.mxu0
        %1290 = vrot.lane.b32.xlu0 %v1168, 64
        %v1291 = vpop.permute.xlu0 %1290
        %1292 = vrot.lane.b32.xlu0 %v1169, 64
        %v1293 = vpop.permute.xlu0 %1292
        %v1295 = vsel %vm1174, %v1291, 0
        %v1298 = vsel %vm1174, %v1293, 0
        %1300 = vmatpush.bf16.xpose.msra.mxu0 0
        %1301 = vmatpush.bf16.xpose.msra.mxu0 0
        %1302 = vmatpush.bf16.xpose.msra.mxu0 0
        %1303 = vmatpush.bf16.xpose.msra.mxu0 0
        %1304 = vmatpush.bf16.xpose.msra.mxu0 0
        %1305 = vmatpush.bf16.xpose.msra.mxu0 0
        %1306 = vmatpush.bf16.xpose.msra.mxu0 0
        %1307 = vmatpush.bf16.xpose.msra.mxu0 %v1298
        %1308 = vmatmul.bf16.gmra.mxu0 %v1295
        %v1309 = vpop.f32.mrf.mxu0
        %v1310 = vadd.f32 %v1172, %v1309
        %v1311 = vpop.f32.mrf.mxu0
        %1312 = vdwg.mxu0
        %v1313 = vsel %vm1194, %v1310, -inf
        %1314 = vmax.xlane.f32.xlu0 %v1313
        %v1315 = vpop.xlane.xlu0 %1314
        %v1316 = vsub.f32 %v1310, %v1315
        %v1317 = vmul.f32 %v1316, 1.442695
        %v1318 = vpow.pop %v1317
        %v1319 = vsel %vm1194, %v1318, 0.0
        %1320 = vadd.xlane.f32.xlu0 %v1319
        %v1321 = vpop.xlane.xlu0 %1320
        %v1322 = vrcp.pop %v1321
        %v1323 = vmul.f32 %v1318, %v1322
        %v1324 = vpack.c.bf16 %v1323, %v1323
        %1325 = vrot.lane.b32.xlu0 %v1170, 64
        %v1326 = vpop.permute.xlu0 %1325
        %v1328 = vsel %vm1207, %v1324, 0
        %v1331 = vand.u32 %v1326, %v1214
        %1333 = vmatpush.bf16.msra.mxu0 0
        %1334 = vmatpush.bf16.msra.mxu0 0
        %1335 = vmatpush.bf16.msra.mxu0 0
        %1336 = vmatpush.bf16.msra.mxu0 0
        %1337 = vmatpush.bf16.msra.mxu0 0
        %1338 = vmatpush.bf16.msra.mxu0 0
        %1339 = vmatpush.bf16.msra.mxu0 0
        %1340 = vmatpush.bf16.msra.mxu0 %v1331
        %1341 = vmatmul.bf16.gmra.mxu0 %v1328
        %v1342 = vpop.f32.mrf.mxu0
        %v1343 = vadd.f32 0.0, %v1342
        %v1344 = vpop.f32.mrf.mxu0
        %1345 = vdwg.mxu0
        %1346 = vrot.lane.b32.xlu0 %v1168, 32
        %v1347 = vpop.permute.xlu0 %1346
        %1348 = vrot.lane.b32.xlu0 %v1169, 32
        %v1349 = vpop.permute.xlu0 %1348
        %v1351 = vsel %vm1174, %v1347, 0
        %v1354 = vsel %vm1174, %v1349, 0
        %1356 = vmatpush.bf16.xpose.msra.mxu0 0
        %1357 = vmatpush.bf16.xpose.msra.mxu0 0
        %1358 = vmatpush.bf16.xpose.msra.mxu0 0
        %1359 = vmatpush.bf16.xpose.msra.mxu0 0
        %1360 = vmatpush.bf16.xpose.msra.mxu0 0
        %1361 = vmatpush.bf16.xpose.msra.mxu0 0
        %1362 = vmatpush.bf16.xpose.msra.mxu0 0
        %1363 = vmatpush.bf16.xpose.msra.mxu0 %v1354
        %1364 = vmatmul.bf16.gmra.mxu0 %v1351
        %v1365 = vpop.f32.mrf.mxu0
        %v1366 = vadd.f32 %v1172, %v1365
        %v1367 = vpop.f32.mrf.mxu0
        %1368 = vdwg.mxu0
        %v1369 = vsel %vm1194, %v1366, -inf
        %1370 = vmax.xlane.f32.xlu0 %v1369
        %v1371 = vpop.xlane.xlu0 %1370
        %v1372 = vsub.f32 %v1366, %v1371
        %v1373 = vmul.f32 %v1372, 1.442695
        %v1374 = vpow.pop %v1373
        %v1375 = vsel %vm1194, %v1374, 0.0
        %1376 = vadd.xlane.f32.xlu0 %v1375
        %v1377 = vpop.xlane.xlu0 %1376
        %v1378 = vrcp.pop %v1377
        %v1379 = vmul.f32 %v1374, %v1378
        %v1380 = vpack.c.bf16 %v1379, %v1379
        %1381 = vrot.lane.b32.xlu0 %v1170, 32
        %v1382 = vpop.permute.xlu0 %1381
        %v1384 = vsel %vm1207, %v1380, 0
        %v1387 = vand.u32 %v1382, %v1214
        %1389 = vmatpush.bf16.msra.mxu0 0
        %1390 = vmatpush.bf16.msra.mxu0 0
        %1391 = vmatpush.bf16.msra.mxu0 0
        %1392 = vmatpush.bf16.msra.mxu0 0
        %1393 = vmatpush.bf16.msra.mxu0 0
        %1394 = vmatpush.bf16.msra.mxu0 0
        %1395 = vmatpush.bf16.msra.mxu0 0
        %1396 = vmatpush.bf16.msra.mxu0 %v1387
        %1397 = vmatmul.bf16.gmra.mxu0 %v1384
        %v1398 = vpop.f32.mrf.mxu0
        %v1399 = vadd.f32 0.0, %v1398
        %v1400 = vpop.f32.mrf.mxu0
        %1401 = vdwg.mxu0
        %1403 = vrot.lane.b32.xlu0 %v1287, 32
        %v1404 = vpop.permute.xlu0 %1403
        %1407 = vrot.lane.b32.xlu0 %v1343, 64
        %v1408 = vpop.permute.xlu0 %1407
        %1411 = vrot.lane.b32.xlu0 %v1399, 96
        %v1412 = vpop.permute.xlu0 %1411
        %v1414 = vsel %vm1174, %v1228, %v1404
        %vm1415 = vcmask 523264
        %v1416 = vsel %vm1415, %v1414, %v1408
        %vm1417 = vcmask 785408
        %v1418 = vsel %vm1417, %v1416, %v1412
        %v1419 = vld [vmem:[%s859] sm:$0xf]
        %v1420 = vld [vmem:[%s859 + $0x4] sm:$0xf]
        %v1421 = vld [vmem:[%s859 + $0x8] sm:$0xf]
        %v1422 = vld [vmem:[%s859 + $0xc] sm:$0xf]
        %v1423 = vld [vmem:[%s859 + $0x10] sm:$0xf]
        %v1424 = vld [vmem:[%s859 + $0x14] sm:$0xf]
        %v1425 = vld [vmem:[%s859 + $0x18] sm:$0xf]
        %v1426 = vld [vmem:[%s859 + $0x1c] sm:$0xf]
        %v1427 = vld [vmem:[%s859 + $0x20] sm:$0xf]
        %v1428 = vld [vmem:[%s859 + $0x24] sm:$0xf]
        %v1429 = vld [vmem:[%s859 + $0x28] sm:$0xf]
        %v1430 = vld [vmem:[%s859 + $0x2c] sm:$0xf]
        %v1431 = vld [vmem:[%s859 + $0x30] sm:$0xf]
        %v1432 = vld [vmem:[%s859 + $0x34] sm:$0xf]
        %v1433 = vld [vmem:[%s859 + $0x38] sm:$0xf]
        %v1434 = vld [vmem:[%s859 + $0x3c] sm:$0xf]
        %v1435 = vld [vmem:[%s862] sm:$0x1]
        %v1436 = vpack.c.bf16 %v1418, %v1418
        %v1438 = vperm.slane %v1435, 0
        %v1456 = vunpack.c.l.b16 %v1419
        %v1457 = vunpack.c.l.b16 %v1420
        %v1458 = vunpack.c.l.b16 %v1421
        %v1459 = vunpack.c.l.b16 %v1422
        %v1460 = vunpack.c.l.b16 %v1423
        %v1461 = vunpack.c.l.b16 %v1424
        %v1462 = vunpack.c.l.b16 %v1425
        %v1463 = vunpack.c.l.b16 %v1426
        %v1464 = vunpack.c.l.b16 %v1427
        %v1465 = vunpack.c.l.b16 %v1428
        %v1466 = vunpack.c.l.b16 %v1429
        %v1467 = vunpack.c.l.b16 %v1430
        %v1468 = vunpack.c.l.b16 %v1431
        %v1469 = vunpack.c.l.b16 %v1432
        %v1470 = vunpack.c.l.b16 %v1433
        %v1471 = vunpack.c.l.b16 %v1434
        %v1472 = vpack.c.b16 %v1457, %v1456
        %v1473 = vpack.c.b16 %v1459, %v1458
        %v1474 = vpack.c.b16 %v1461, %v1460
        %v1475 = vpack.c.b16 %v1463, %v1462
        %v1476 = vpack.c.b16 %v1465, %v1464
        %v1477 = vpack.c.b16 %v1467, %v1466
        %v1478 = vpack.c.b16 %v1469, %v1468
        %v1479 = vpack.c.b16 %v1471, %v1470
        %1488 = vmatpush.bf16.xpose.msra.mxu0 %v1479
        %1489 = vmatpush.bf16.xpose.msra.mxu0 %v1478
        %1490 = vmatpush.bf16.xpose.msra.mxu0 %v1477
        %1491 = vmatpush.bf16.xpose.msra.mxu0 %v1476
        %1492 = vmatpush.bf16.xpose.msra.mxu0 %v1475
        %1493 = vmatpush.bf16.xpose.msra.mxu0 %v1474
        %1494 = vmatpush.bf16.xpose.msra.mxu0 %v1473
        %1495 = vmatpush.bf16.xpose.msra.mxu0 %v1472
        %1496 = vmatmul.bf16.gmra.mxu0 %v1436
        %v1497 = vpop.f32.mrf.mxu0
        %v1498 = vadd.f32 %v1438, %v1497
        %v1499 = vpop.f32.mrf.mxu0
        %1500 = vdwg.mxu0
        %v1501 = vadd.f32 %v885, %v1498
        %v1502 = vld [vmem:[%s865] sm:$0x1]
        %v1503 = vld [vmem:[%s868] sm:$0x1]
        %v1504 = vsel %vm889, %v1501, 0.0
        %1505 = vadd.xlane.f32.xlu0 %v1504
        %v1506 = vpop.xlane.xlu0 %1505
        %v1507 = vmul.f32 %v1506, %v899
        %v1508 = vsub.f32 %v1501, %v1507
        %v1509 = vmul.f32 %v1508, %v1508
        %v1510 = vsel %vm889, %v1509, 0.0
        %1511 = vadd.xlane.f32.xlu0 %v1510
        %v1512 = vpop.xlane.xlu0 %1511
        %v1513 = vmul.f32 %v1512, %v899
        %v1514 = vadd.f32 %v1513, 1e-05
        %v1515 = vrsqrt.pop %v1514
        %v1516 = vmul.f32 %v1515, %v1514
        %v1517 = vmul.f32 %v1516, %v1515
        %v1518 = vmul.f32 0.5, %v1517
        %v1519 = vsub.f32 1.5, %v1518
        %v1520 = vmul.f32 %v1515, %v1519
        %vm1521 = vweird.f32 %v1514
        %vm1522 = vweird.f32 %v1515
        %vm1523 = vmor %vm1521, %vm1522
        %v1524 = vsel %vm1523, %v1515, %v1520
        %v1525 = vmul.f32 %v1508, %v1524
        %v1527 = vperm.slane %v1502, 0
        %v1529 = vmul.f32 %v1525, %v1527
        %v1531 = vperm.slane %v1503, 0
        %v1533 = vadd.f32 %v1529, %v1531
        %v1534 = vld [vmem:[%s715] sm:$0xf]
        %v1535 = vld [vmem:[%s715 + $0x4] sm:$0xf]
        %v1536 = vld [vmem:[%s715 + $0x8] sm:$0xf]
        %v1537 = vld [vmem:[%s715 + $0xc] sm:$0xf]
        %v1538 = vld [vmem:[%s715 + $0x10] sm:$0xf]
        %v1539 = vld [vmem:[%s715 + $0x14] sm:$0xf]
        %v1540 = vld [vmem:[%s715 + $0x18] sm:$0xf]
        %v1541 = vld [vmem:[%s715 + $0x1c] sm:$0xf]
        %v1542 = vld [vmem:[%s715 + $0x20] sm:$0xf]
        %v1543 = vld [vmem:[%s715 + $0x24] sm:$0xf]
        %v1544 = vld [vmem:[%s715 + $0x28] sm:$0xf]
        %v1545 = vld [vmem:[%s715 + $0x2c] sm:$0xf]
        %v1546 = vld [vmem:[%s715 + $0x30] sm:$0xf]
        %v1547 = vld [vmem:[%s715 + $0x34] sm:$0xf]
        %v1548 = vld [vmem:[%s715 + $0x38] sm:$0xf]
        %v1549 = vld [vmem:[%s715 + $0x3c] sm:$0xf]
        %v1550 = vld [vmem:[%s715 + $0x40] sm:$0xf]
        %v1551 = vld [vmem:[%s715 + $0x44] sm:$0xf]
        %v1552 = vld [vmem:[%s715 + $0x48] sm:$0xf]
        %v1553 = vld [vmem:[%s715 + $0x4c] sm:$0xf]
        %v1554 = vld [vmem:[%s715 + $0x50] sm:$0xf]
        %v1555 = vld [vmem:[%s715 + $0x54] sm:$0xf]
        %v1556 = vld [vmem:[%s715 + $0x58] sm:$0xf]
        %v1557 = vld [vmem:[%s715 + $0x5c] sm:$0xf]
        %v1558 = vld [vmem:[%s715 + $0x60] sm:$0xf]
        %v1559 = vld [vmem:[%s715 + $0x64] sm:$0xf]
        %v1560 = vld [vmem:[%s715 + $0x68] sm:$0xf]
        %v1561 = vld [vmem:[%s715 + $0x6c] sm:$0xf]
        %v1562 = vld [vmem:[%s715 + $0x70] sm:$0xf]
        %v1563 = vld [vmem:[%s715 + $0x74] sm:$0xf]
        %v1564 = vld [vmem:[%s715 + $0x78] sm:$0xf]
        %v1565 = vld [vmem:[%s715 + $0x7c] sm:$0xf]
        %v1566 = vld [vmem:[%s872] sm:$0x3]
        %v1567 = vpack.c.bf16 %v1533, %v1533
        %v1569 = vperm.slane %v1566, 0
        %v1570 = vperm.slane %v1566, 1
        %v1605 = vunpack.c.l.b16 %v1534
        %v1606 = vunpack.c.l.b16 %v1535
        %v1607 = vunpack.c.l.b16 %v1536
        %v1608 = vunpack.c.l.b16 %v1537
        %v1609 = vunpack.c.l.b16 %v1538
        %v1610 = vunpack.c.l.b16 %v1539
        %v1611 = vunpack.c.l.b16 %v1540
        %v1612 = vunpack.c.l.b16 %v1541
        %v1613 = vunpack.c.l.b16 %v1542
        %v1614 = vunpack.c.l.b16 %v1543
        %v1615 = vunpack.c.l.b16 %v1544
        %v1616 = vunpack.c.l.b16 %v1545
        %v1617 = vunpack.c.l.b16 %v1546
        %v1618 = vunpack.c.l.b16 %v1547
        %v1619 = vunpack.c.l.b16 %v1548
        %v1620 = vunpack.c.l.b16 %v1549
        %v1621 = vunpack.c.l.b16 %v1550
        %v1622 = vunpack.c.l.b16 %v1551
        %v1623 = vunpack.c.l.b16 %v1552
        %v1624 = vunpack.c.l.b16 %v1553
        %v1625 = vunpack.c.l.b16 %v1554
        %v1626 = vunpack.c.l.b16 %v1555
        %v1627 = vunpack.c.l.b16 %v1556
        %v1628 = vunpack.c.l.b16 %v1557
        %v1629 = vunpack.c.l.b16 %v1558
        %v1630 = vunpack.c.l.b16 %v1559
        %v1631 = vunpack.c.l.b16 %v1560
        %v1632 = vunpack.c.l.b16 %v1561
        %v1633 = vunpack.c.l.b16 %v1562
        %v1634 = vunpack.c.l.b16 %v1563
        %v1635 = vunpack.c.l.b16 %v1564
        %v1636 = vunpack.c.l.b16 %v1565
        %v1637 = vpack.c.b16 %v1606, %v1605
        %v1638 = vpack.c.b16 %v1608, %v1607
        %v1639 = vpack.c.b16 %v1610, %v1609
        %v1640 = vpack.c.b16 %v1612, %v1611
        %v1641 = vpack.c.b16 %v1614, %v1613
        %v1642 = vpack.c.b16 %v1616, %v1615
        %v1643 = vpack.c.b16 %v1618, %v1617
        %v1644 = vpack.c.b16 %v1620, %v1619
        %v1645 = vpack.c.b16 %v1622, %v1621
        %v1646 = vpack.c.b16 %v1624, %v1623
        %v1647 = vpack.c.b16 %v1626, %v1625
        %v1648 = vpack.c.b16 %v1628, %v1627
        %v1649 = vpack.c.b16 %v1630, %v1629
        %v1650 = vpack.c.b16 %v1632, %v1631
        %v1651 = vpack.c.b16 %v1634, %v1633
        %v1652 = vpack.c.b16 %v1636, %v1635
        %1669 = vmatpush.bf16.xpose.msra.mxu0 %v1644
        %1670 = vmatpush.bf16.xpose.msra.mxu0 %v1643
        %1671 = vmatpush.bf16.xpose.msra.mxu0 %v1642
        %1672 = vmatpush.bf16.xpose.msra.mxu0 %v1641
        %1673 = vmatpush.bf16.xpose.msra.mxu0 %v1640
        %1674 = vmatpush.bf16.xpose.msra.mxu0 %v1639
        %1675 = vmatpush.bf16.xpose.msra.mxu0 %v1638
        %1676 = vmatpush.bf16.xpose.msra.mxu0 %v1637
        %1677 = vmatmul.bf16.gmra.mxu0 %v1567
        %v1678 = vpop.f32.mrf.mxu0
        %v1679 = vadd.f32 %v1569, %v1678
        %v1680 = vpop.f32.mrf.mxu0
        %1681 = vdwg.mxu0
        %1682 = vmatpush.bf16.xpose.msra.mxu0 %v1652
        %1683 = vmatpush.bf16.xpose.msra.mxu0 %v1651
        %1684 = vmatpush.bf16.xpose.msra.mxu0 %v1650
        %1685 = vmatpush.bf16.xpose.msra.mxu0 %v1649
        %1686 = vmatpush.bf16.xpose.msra.mxu0 %v1648
        %1687 = vmatpush.bf16.xpose.msra.mxu0 %v1647
        %1688 = vmatpush.bf16.xpose.msra.mxu0 %v1646
        %1689 = vmatpush.bf16.xpose.msra.mxu0 %v1645
        %1690 = vmatmul.bf16.gmra.mxu0 %v1567
        %v1691 = vpop.f32.mrf.mxu0
        %v1692 = vadd.f32 %v1570, %v1691
        %v1693 = vpop.f32.mrf.mxu0
        %1694 = vdwg.mxu0
        %v1695 = vmul.f32 %v1679, 0.5
        %v1696 = vmul.f32 %v1692, 0.5
        %v1697 = vmul.f32 %v1679, 0.70710677
        %v1698 = vmul.f32 %v1692, 0.70710677
        %v1699 = vmul.f32 %v1697, %v1697
        %v1700 = vmin.f32 16.0, %v1699
        %v1701 = vmul.f32 %v1700, 2.1237322e-06
        %v1702 = vadd.f32 %v1701, 0.00028619796
        %v1703 = vmul.f32 %v1700, %v1702
        %v1704 = vadd.f32 %v1703, 0.0036580483
        %v1705 = vmul.f32 %v1700, %v1704
        %v1706 = vadd.f32 %v1705, 0.05243302
        %v1707 = vmul.f32 %v1700, %v1706
        %v1708 = vadd.f32 %v1707, 0.18741608
        %v1709 = vmul.f32 %v1700, %v1708
        %v1710 = vadd.f32 %v1709, 1.1283791
        %v1711 = vmul.f32 %v1697, %v1710
        %v1712 = vmul.f32 %v1700, 3.8918573e-05
        %v1713 = vadd.f32 %v1712, 0.001143296
        %v1714 = vmul.f32 %v1700, %v1713
        %v1715 = vadd.f32 %v1714, 0.014752088
        %v1716 = vmul.f32 %v1700, %v1715
        %v1717 = vadd.f32 %v1716, 0.112945676
        %v1718 = vmul.f32 %v1700, %v1717
        %v1719 = vadd.f32 %v1718, 0.4994258
        %v1720 = vmul.f32 %v1700, %v1719
        %v1721 = vadd.f32 %v1720, 1.0
        %v1722 = vrcp.pop %v1721
        %v1723 = vmul.f32 %v1721, %v1722
        %v1724 = vsub.f32 1.0, %v1723
        %v1725 = vmul.f32 %v1722, %v1724
        %v1726 = vadd.f32 %v1722, %v1725
        %vm1727 = vweird.f32 %v1721
        %vm1728 = vweird.f32 %v1722
        %vm1729 = vmor %vm1727, %vm1728
        %v1730 = vsel %vm1729, %v1722, %v1726
        %v1731 = vand.u32 2147483647, %v1721
        %vm1732 = vcmp.eq.f32.partialorder %v1731, 8.507059e+37
        %v1733 = vand.u32 %v1721, 2147483648
        %v1734 = vor.u32 1.1754944e-38, %v1733
        %v1735 = vsel %vm1732, %v1734, %v1730
        %v1736 = vmul.f32 %v1711, %v1735
        %v1737 = vmin.f32 %v1736, 1.0
        %v1738 = vmax.f32 %v1737, -1.0
        %v1739 = vmul.f32 %v1698, %v1698
        %v1740 = vmin.f32 16.0, %v1739
        %v1741 = vmul.f32 %v1740, 2.1237322e-06
        %v1742 = vadd.f32 %v1741, 0.00028619796
        %v1743 = vmul.f32 %v1740, %v1742
        %v1744 = vadd.f32 %v1743, 0.0036580483
        %v1745 = vmul.f32 %v1740, %v1744
        %v1746 = vadd.f32 %v1745, 0.05243302
        %v1747 = vmul.f32 %v1740, %v1746
        %v1748 = vadd.f32 %v1747, 0.18741608
        %v1749 = vmul.f32 %v1740, %v1748
        %v1750 = vadd.f32 %v1749, 1.1283791
        %v1751 = vmul.f32 %v1698, %v1750
        %v1752 = vmul.f32 %v1740, 3.8918573e-05
        %v1753 = vadd.f32 %v1752, 0.001143296
        %v1754 = vmul.f32 %v1740, %v1753
        %v1755 = vadd.f32 %v1754, 0.014752088
        %v1756 = vmul.f32 %v1740, %v1755
        %v1757 = vadd.f32 %v1756, 0.112945676
        %v1758 = vmul.f32 %v1740, %v1757
        %v1759 = vadd.f32 %v1758, 0.4994258
        %v1760 = vmul.f32 %v1740, %v1759
        %v1761 = vadd.f32 %v1760, 1.0
        %v1762 = vrcp.pop %v1761
        %v1763 = vmul.f32 %v1761, %v1762
        %v1764 = vsub.f32 1.0, %v1763
        %v1765 = vmul.f32 %v1762, %v1764
        %v1766 = vadd.f32 %v1762, %v1765
        %vm1767 = vweird.f32 %v1761
        %vm1768 = vweird.f32 %v1762
        %vm1769 = vmor %vm1767, %vm1768
        %v1770 = vsel %vm1769, %v1762, %v1766
        %v1771 = vand.u32 2147483647, %v1761
        %vm1772 = vcmp.eq.f32.partialorder %v1771, 8.507059e+37
        %v1773 = vand.u32 %v1761, 2147483648
        %v1774 = vor.u32 1.1754944e-38, %v1773
        %v1775 = vsel %vm1772, %v1774, %v1770
        %v1776 = vmul.f32 %v1751, %v1775
        %v1777 = vmin.f32 %v1776, 1.0
        %v1778 = vmax.f32 %v1777, -1.0
        %v1779 = vadd.f32 %v1738, 1.0
        %v1780 = vadd.f32 %v1778, 1.0
        %v1781 = vmul.f32 %v1695, %v1779
        %v1782 = vmul.f32 %v1696, %v1780
        %v1783 = vld [vmem:[%s725] sm:$0xff]
        %v1784 = vld [vmem:[%s725 + $0x8] sm:$0xff]
        %v1785 = vld [vmem:[%s725 + $0x10] sm:$0xff]
        %v1786 = vld [vmem:[%s725 + $0x18] sm:$0xff]
        %v1787 = vld [vmem:[%s725 + $0x20] sm:$0xff]
        %v1788 = vld [vmem:[%s725 + $0x28] sm:$0xff]
        %v1789 = vld [vmem:[%s725 + $0x30] sm:$0xff]
        %v1790 = vld [vmem:[%s725 + $0x38] sm:$0xff]
        %v1791 = vld [vmem:[%s725 + $0x40] sm:$0xff]
        %v1792 = vld [vmem:[%s725 + $0x48] sm:$0xff]
        %v1793 = vld [vmem:[%s725 + $0x50] sm:$0xff]
        %v1794 = vld [vmem:[%s725 + $0x58] sm:$0xff]
        %v1795 = vld [vmem:[%s725 + $0x60] sm:$0xff]
        %v1796 = vld [vmem:[%s725 + $0x68] sm:$0xff]
        %v1797 = vld [vmem:[%s725 + $0x70] sm:$0xff]
        %v1798 = vld [vmem:[%s725 + $0x78] sm:$0xff]
        %v1799 = vld [vmem:[%s875] sm:$0x1]
        %v1800 = vpack.c.bf16 %v1781, %v1781
        %v1801 = vpack.c.bf16 %v1782, %v1782
        %v1803 = vperm.slane %v1799, 0
        %v1821 = vunpack.c.l.b16 %v1783
        %v1822 = vunpack.c.h.b16 %v1783
        %v1823 = vunpack.c.l.b16 %v1784
        %v1824 = vunpack.c.h.b16 %v1784
        %v1825 = vunpack.c.l.b16 %v1785
        %v1826 = vunpack.c.h.b16 %v1785
        %v1827 = vunpack.c.l.b16 %v1786
        %v1828 = vunpack.c.h.b16 %v1786
        %v1829 = vunpack.c.l.b16 %v1787
        %v1830 = vunpack.c.h.b16 %v1787
        %v1831 = vunpack.c.l.b16 %v1788
        %v1832 = vunpack.c.h.b16 %v1788
        %v1833 = vunpack.c.l.b16 %v1789
        %v1834 = vunpack.c.h.b16 %v1789
        %v1835 = vunpack.c.l.b16 %v1790
        %v1836 = vunpack.c.h.b16 %v1790
        %v1837 = vunpack.c.l.b16 %v1791
        %v1838 = vunpack.c.h.b16 %v1791
        %v1839 = vunpack.c.l.b16 %v1792
        %v1840 = vunpack.c.h.b16 %v1792
        %v1841 = vunpack.c.l.b16 %v1793
        %v1842 = vunpack.c.h.b16 %v1793
        %v1843 = vunpack.c.l.b16 %v1794
        %v1844 = vunpack.c.h.b16 %v1794
        %v1845 = vunpack.c.l.b16 %v1795
        %v1846 = vunpack.c.h.b16 %v1795
        %v1847 = vunpack.c.l.b16 %v1796
        %v1848 = vunpack.c.h.b16 %v1796
        %v1849 = vunpack.c.l.b16 %v1797
        %v1850 = vunpack.c.h.b16 %v1797
        %v1851 = vunpack.c.l.b16 %v1798
        %v1852 = vunpack.c.h.b16 %v1798
        %v1853 = vpack.c.b16 %v1823, %v1821
        %v1854 = vpack.c.b16 %v1824, %v1822
        %v1855 = vpack.c.b16 %v1827, %v1825
        %v1856 = vpack.c.b16 %v1828, %v1826
        %v1857 = vpack.c.b16 %v1831, %v1829
        %v1858 = vpack.c.b16 %v1832, %v1830
        %v1859 = vpack.c.b16 %v1835, %v1833
        %v1860 = vpack.c.b16 %v1836, %v1834
        %v1861 = vpack.c.b16 %v1839, %v1837
        %v1862 = vpack.c.b16 %v1840, %v1838
        %v1863 = vpack.c.b16 %v1843, %v1841
        %v1864 = vpack.c.b16 %v1844, %v1842
        %v1865 = vpack.c.b16 %v1847, %v1845
        %v1866 = vpack.c.b16 %v1848, %v1846
        %v1867 = vpack.c.b16 %v1851, %v1849
        %v1868 = vpack.c.b16 %v1852, %v1850
        %1885 = vmatpush.bf16.xpose.msra.mxu0 %v1867
        %1886 = vmatpush.bf16.xpose.msra.mxu0 %v1865
        %1887 = vmatpush.bf16.xpose.msra.mxu0 %v1863
        %1888 = vmatpush.bf16.xpose.msra.mxu0 %v1861
        %1889 = vmatpush.bf16.xpose.msra.mxu0 %v1859
        %1890 = vmatpush.bf16.xpose.msra.mxu0 %v1857
        %1891 = vmatpush.bf16.xpose.msra.mxu0 %v1855
        %1892 = vmatpush.bf16.xpose.msra.mxu0 %v1853
        %1893 = vmatmul.bf16.gmra.mxu0 %v1800
        %v1894 = vpop.f32.mrf.mxu0
        %v1895 = vadd.f32 %v1803, %v1894
        %v1896 = vpop.f32.mrf.mxu0
        %1897 = vdwg.mxu0
        %1898 = vmatpush.bf16.xpose.msra.mxu0 %v1868
        %1899 = vmatpush.bf16.xpose.msra.mxu0 %v1866
        %1900 = vmatpush.bf16.xpose.msra.mxu0 %v1864
        %1901 = vmatpush.bf16.xpose.msra.mxu0 %v1862
        %1902 = vmatpush.bf16.xpose.msra.mxu0 %v1860
        %1903 = vmatpush.bf16.xpose.msra.mxu0 %v1858
        %1904 = vmatpush.bf16.xpose.msra.mxu0 %v1856
        %1905 = vmatpush.bf16.xpose.msra.mxu0 %v1854
        %1906 = vmatmul.bf16.gmra.mxu0 %v1801
        %v1907 = vpop.f32.mrf.mxu0
        %v1908 = vadd.f32 %v1895, %v1907
        %v1909 = vpop.f32.mrf.mxu0
        %1910 = vdwg.mxu0
        %v1911 = vadd.f32 %v1501, %v1908
        %1912 = vst [vmem:[#allocation2] sm:$0x1f] %v1911
        %p1913 = scmp.eq.s32.totalorder %s48, 1
        // Predicated region
        $region105: #{_lambda_.4} parent=91 // pred_check
          %p1914 = pneg %p1913
        $region106: #{_lambda_.4} parent=91 // pred_check_branch
          %1916 = sbr.rel (%p1914) target = $region108
        $region107: #{_lambda_.4} parent=91 // pred_region
          %v1917 = vld [vmem:[%s15] sm:$0x1]
          %v1918 = vld [vmem:[%s16] sm:$0x1]
          %v1919 = vsel %vm889, %v1911, 0.0
          %1920 = vadd.xlane.f32.xlu0 %v1919
          %v1921 = vpop.xlane.xlu0 %1920
          %v1922 = vmul.f32 %v1921, %v899
          %v1923 = vsub.f32 %v1911, %v1922
          %v1924 = vmul.f32 %v1923, %v1923
          %v1925 = vsel %vm889, %v1924, 0.0
          %1926 = vadd.xlane.f32.xlu0 %v1925
          %v1927 = vpop.xlane.xlu0 %1926
          %v1928 = vmul.f32 %v1927, %v899
          %v1929 = vadd.f32 %v1928, 1e-05
          %v1930 = vrsqrt.pop %v1929
          %v1931 = vmul.f32 %v1930, %v1929
          %v1932 = vmul.f32 %v1931, %v1930
          %v1933 = vmul.f32 0.5, %v1932
          %v1934 = vsub.f32 1.5, %v1933
          %v1935 = vmul.f32 %v1930, %v1934
          %vm1936 = vweird.f32 %v1929
          %vm1937 = vweird.f32 %v1930
          %vm1938 = vmor %vm1936, %vm1937
          %v1939 = vsel %vm1938, %v1930, %v1935
          %v1940 = vmul.f32 %v1923, %v1939
          %v1942 = vperm.slane %v1917, 0
          %v1944 = vmul.f32 %v1940, %v1942
          %v1946 = vperm.slane %v1918, 0
          %v1948 = vadd.f32 %v1944, %v1946
          %1949 = vst [vmem:[%s826] sm:$0x1f] %v1948
          %v1950 = vpack.c.bf16 %v1948, %v1948
          %v1951 = vld [vmem:[%s17] sm:$0xf]
          %v1952 = vld [vmem:[%s17 + $0x4] sm:$0xf]
          %v1953 = vld [vmem:[%s17 + $0x8] sm:$0xf]
          %v1954 = vld [vmem:[%s17 + $0xc] sm:$0xf]
          %v1955 = vld [vmem:[%s17 + $0x10] sm:$0xf]
          %v1956 = vld [vmem:[%s17 + $0x14] sm:$0xf]
          %v1957 = vld [vmem:[%s17 + $0x18] sm:$0xf]
          %v1958 = vld [vmem:[%s17 + $0x1c] sm:$0xf]
          %v1959 = vld [vmem:[%s17 + $0x20] sm:$0xf]
          %v1960 = vld [vmem:[%s17 + $0x24] sm:$0xf]
          %v1961 = vld [vmem:[%s17 + $0x28] sm:$0xf]
          %v1962 = vld [vmem:[%s17 + $0x2c] sm:$0xf]
          %v1963 = vld [vmem:[%s17 + $0x30] sm:$0xf]
          %v1964 = vld [vmem:[%s17 + $0x34] sm:$0xf]
          %v1965 = vld [vmem:[%s17 + $0x38] sm:$0xf]
          %v1966 = vld [vmem:[%s17 + $0x3c] sm:$0xf]
          %v1983 = vunpack.c.l.b16 %v1951
          %v1984 = vunpack.c.l.b16 %v1952
          %v1985 = vunpack.c.l.b16 %v1953
          %v1986 = vunpack.c.l.b16 %v1954
          %v1987 = vunpack.c.l.b16 %v1955
          %v1988 = vunpack.c.l.b16 %v1956
          %v1989 = vunpack.c.l.b16 %v1957
          %v1990 = vunpack.c.l.b16 %v1958
          %v1991 = vunpack.c.l.b16 %v1959
          %v1992 = vunpack.c.l.b16 %v1960
          %v1993 = vunpack.c.l.b16 %v1961
          %v1994 = vunpack.c.l.b16 %v1962
          %v1995 = vunpack.c.l.b16 %v1963
          %v1996 = vunpack.c.l.b16 %v1964
          %v1997 = vunpack.c.l.b16 %v1965
          %v1998 = vunpack.c.l.b16 %v1966
          %v1999 = vpack.c.b16 %v1984, %v1983
          %v2000 = vpack.c.b16 %v1986, %v1985
          %v2001 = vpack.c.b16 %v1988, %v1987
          %v2002 = vpack.c.b16 %v1990, %v1989
          %v2003 = vpack.c.b16 %v1992, %v1991
          %v2004 = vpack.c.b16 %v1994, %v1993
          %v2005 = vpack.c.b16 %v1996, %v1995
          %v2006 = vpack.c.b16 %v1998, %v1997
          %2015 = vmatpush.bf16.xpose.msra.mxu0 %v2006
          %2016 = vmatpush.bf16.xpose.msra.mxu0 %v2005
          %2017 = vmatpush.bf16.xpose.msra.mxu0 %v2004
          %2018 = vmatpush.bf16.xpose.msra.mxu0 %v2003
          %2019 = vmatpush.bf16.xpose.msra.mxu0 %v2002
          %2020 = vmatpush.bf16.xpose.msra.mxu0 %v2001
          %2021 = vmatpush.bf16.xpose.msra.mxu0 %v2000
          %2022 = vmatpush.bf16.xpose.msra.mxu0 %v1999
          %2023 = vmatmul.bf16.gmra.mxu0 %v1950
          %v2024 = vpop.f32.mrf.mxu0
          %v2025 = vadd.f32 0.0, %v2024
          %v2026 = vpop.f32.mrf.mxu0
          %2027 = vdwg.mxu0
          %v2028 = vmul.f32 %v2025, %v2025
          %vm2029 = vcmask 1040384
          %v2030 = vsel %vm2029, %v2028, 0.0
          %2031 = vadd.xlane.f32.xlu0 %v2030
          %v2032 = vpop.xlane.xlu0 %2031
          %v2033 = vmax.f32 %v2032, 1e-24
          %v2034 = vrsqrt.pop %v2033
          %v2035 = vmul.f32 %v2034, %v2033
          %v2036 = vmul.f32 %v2035, %v2034
          %v2037 = vmul.f32 0.5, %v2036
          %v2038 = vsub.f32 1.5, %v2037
          %v2039 = vmul.f32 %v2034, %v2038
          %vm2040 = vweird.f32 %v2033
          %vm2041 = vweird.f32 %v2034
          %vm2042 = vmor %vm2040, %vm2041
          %v2043 = vsel %vm2042, %v2034, %v2039
          %v2044 = vmul.f32 %v2025, %v2043
          %2045 = vst [vmem:[%s832] sm:$0x1] %v2044
        $region108: #{_lambda_.4} parent=91 // pred_fallthru
          _
        %s2046 = sand.u32 %s511, 1
        %s2047 = scalar_lea.sflag [#allocation5], %s2046
        %s2048 = sand.u32 %s511, 1
        %s2049 = smul.addr %s2048, 8
        %s2050 = scalar_lea.vmem [#allocation8], %s2049
        %s2051 = sand.u32 %s537, 1
        %s2052 = scalar_lea.sflag [#allocation10], %s2051
        %s2053 = sand.u32 %s537, 1
        %s2054 = scalar_lea.vmem [#allocation9], %s2053
        // Predicated region
        $region109: #{_lambda_.4} parent=91 // pred_check
          %p2055 = pneg %p521
        $region110: #{_lambda_.4} parent=91 // pred_check_branch
          %2057 = sbr.rel (%p2055) target = $region112
        $region111: #{_lambda_.4} parent=91 // pred_region
          %2059 = vsyncadd %s2047, 0
          %s2060 = smul.addr %s47, 8
          %s2061 = scalar_lea.hbm %s18, %s2060
          %s2063 = sshll.u32 %s2050, 4
          %s2064 = int_to_ptr.vmem [resolvable:$true] %s2063
          %s2065 = sshll.u32 %s2061, 4
          %s2066 = int_to_ptr.hbm [resolvable:$true] %s2065
          %2068 = dma.vmem_to_hbm [thread:$0]  %s2064, 128, %s2066, %s2047
        $region112: #{_lambda_.4} parent=91 // pred_fallthru
          _
        // Predicated region
        $region113: #{_lambda_.4} parent=91 // pred_check
          %p2069 = pneg %p547
        $region114: #{_lambda_.4} parent=91 // pred_check_branch
          %2071 = sbr.rel (%p2069) target = $region116
        $region115: #{_lambda_.4} parent=91 // pred_region
          %2073 = vsyncadd %s2052, 0
          %s2074 = scalar_lea.hbm %s19, %s47
          %s2076 = sshll.u32 %s2054, 4
          %s2077 = int_to_ptr.vmem [resolvable:$true] %s2076
          %s2078 = sshll.u32 %s2074, 4
          %s2079 = int_to_ptr.hbm [resolvable:$true] %s2078
          %2081 = dma.vmem_to_hbm [thread:$0]  %s2077, 16, %s2079, %s2052
        $region116: #{_lambda_.4} parent=91 // pred_fallthru
          _
      $region92: #{_lambda_.4} parent=5 // pred_fallthru
        _
      %p2082 = scmp.le.s32.totalorder 2, %s38
      // Predicated region
      $region117: #{_lambda_.4} parent=5 // pred_check
        %p2083 = pneg %p2082
      $region118: #{_lambda_.4} parent=5 // pred_check_branch
        %2085 = sbr.rel (%p2083) target = $region120
      $region119: #{_lambda_.4} parent=5 // pred_region
        %s2086 = ssub.s32 %s38, 2
        // Predicated region
        $region121: #{_lambda_.4} parent=119 // pred_check
          %p2087 = pneg %p527
        $region122: #{_lambda_.4} parent=119 // pred_check_branch
          %2089 = sbr.rel (%p2087) target = $region124
        $region123: #{_lambda_.4} parent=119 // pred_region
          %s2090 = sand.u32 %s512, 1
          %s2091 = scalar_lea.sflag [#allocation5], %s2090
          %s2092 = sand.u32 %s512, 1
          %s2093 = smul.addr %s2092, 8
          %s2094 = scalar_lea.vmem [#allocation8], %s2093
          %2096 = dma.done %s2091, 128
        $region124: #{_lambda_.4} parent=119 // pred_fallthru
          _
        // Predicated region
        $region125: #{_lambda_.4} parent=119 // pred_check
          %p2097 = pneg %p553
        $region126: #{_lambda_.4} parent=119 // pred_check_branch
          %2099 = sbr.rel (%p2097) target = $region128
        $region127: #{_lambda_.4} parent=119 // pred_region
          %s2100 = sand.u32 %s538, 1
          %s2101 = scalar_lea.sflag [#allocation10], %s2100
          %s2102 = sand.u32 %s538, 1
          %s2103 = scalar_lea.vmem [#allocation9], %s2102
          %2105 = dma.done %s2101, 16
        $region128: #{_lambda_.4} parent=119 // pred_fallthru
          _
      $region120: #{_lambda_.4} parent=5 // pred_fallthru
        _
    $region6: #{_lambda_.4} parent=1 // loop_footer
      %s42 = sadd.s32 1, %s38
    $region7: #{_lambda_.4} parent=1 // loop_footer_branch
      %37 = sbr.rel target = $region3
    $region8: #{_lambda_.4} parent=1 // loop_exit
      _
    %2106 = vsyncpa [#allocation4], 1
    %s2107 = scalar_lea.sflag [#allocation4], 1
    %2108 = vsyncpa %s2107, 1
    %2109 = vsyncpa [#allocation7], 1
    %s2110 = scalar_lea.sflag [#allocation7], 1
    %2111 = vsyncpa %s2110, 1
    %2112 = vsyncpa [#allocation5], 1
    %s2113 = scalar_lea.sflag [#allocation5], 1
    %2114 = vsyncpa %s2113, 1
    %2115 = vsyncpa [#allocation10], 1
    %s2116 = scalar_lea.sflag [#allocation10], 1
    %2117 = vsyncpa %s2116, 1

</llo_original>
